<compile_context>
chip_gen: v7x
topology: tpu7x:2x2x1
jax: 0.10.0
libtpu: 0.0.40
codegen_flags: <defaults>
</compile_context>

<pallas_src>
import math
import functools

import numpy as np
import jax
import jax.numpy as jnp
from jax.experimental import pallas as pl
from jax.experimental.pallas import tpu as pltpu


def _round_up(x, m):
    return ((x + m - 1) // m) * m


def _vmem_limit_bytes():
    # Generation-aware budget: ~3/4 of physical VMEM (v7x: 48 MiB, v5e/v6e: 96 MiB).
    try:
        info = pltpu.get_tpu_info()
        cap = getattr(info, "vmem_capacity_bytes", None)
        if cap:
            return int(min(cap * 3 // 4, 100 * 1024 * 1024))
    except Exception:
        pass
    return 32 * 1024 * 1024


def _exp_dtype():
    # bf16 exp only where the EUP has a bf16 path (v6e / v7x); f32 elsewhere.
    try:
        kind = jax.devices()[0].device_kind.lower()
    except Exception:
        kind = ""
    return jnp.bfloat16 if ("v6" in kind or "v7" in kind) else jnp.float32


# ---------------------------------------------------------------------------
# Kernel A: depthwise conv + mask + tLN + 1x1 q/k/v projections.
# grid = (B, T/tA); 8-row halos come in as two extra blocked views of x.
# ---------------------------------------------------------------------------
def _qkv_kernel(x_ref, xp_ref, xn_ref, m_ref, dww_ref, lnw_ref, wqkv_ref,
                bqkv_ref, q_ref, k_ref, v_ref, *, n_head, t_tile, t_total):
    t0 = pl.program_id(1) * t_tile
    x = x_ref[...]                                    # (tA, C) f32
    m = m_ref[...]                                    # (tA, 1) f32 in {0, 1}
    tA, C = x.shape
    hd = C // n_head

    # Shifted taps for the depthwise k=3 / pad=1 / stride=1 conv.  The in-tile
    # shift is an XLU roll; the boundary rows come from the halo blocks (zeroed
    # at the global sequence edges to emulate zero padding).
    rows = jax.lax.broadcasted_iota(jnp.int32, (tA, 1), 0)
    row_prev = jnp.where(t0 > 0, xp_ref[7:8, :], 0.0)             # x[t0-1]
    row_next = jnp.where(t0 + t_tile < t_total, xn_ref[0:1, :], 0.0)
    x_prev = jnp.where(rows == 0, row_prev, pltpu.roll(x, 1, 0))
    x_next = jnp.where(rows == tA - 1, row_next, pltpu.roll(x, tA - 1, 0))

    def branch(bi):
        w = dww_ref[bi]                               # (3, C) conv taps
        y = x_prev * w[0:1, :] + x * w[1:2, :] + x_next * w[2:3, :]
        y = y * m                                     # MaskedConv1d: out * mask
        # 'tLN': LayerNorm over channels (biased var, eps = 1e-5).
        mu = jnp.mean(y, axis=1, keepdims=True)
        r = y - mu
        var = jnp.mean(r * r, axis=1, keepdims=True)
        g = lnw_ref[bi]                               # (2, C): gamma, beta
        yn = r * jax.lax.rsqrt(var + 1e-5) * g[0:1, :] + g[1:2, :]
        # 1x1 conv: bf16 operands on the MXU, f32 accumulation.  The 1/sqrt(hd)
        # scale is already folded into wqkv[0]/bqkv[0] by the wrapper.
        return jnp.dot(yn.astype(jnp.bfloat16), wqkv_ref[bi],
                       preferred_element_type=jnp.float32) + bqkv_ref[bi]

    for bi, out_ref in ((0, q_ref), (1, k_ref), (2, v_ref)):
        p = branch(bi)                                # (tA, C) f32
        for h in range(n_head):                       # direct per-head stores
            out_ref[h] = p[:, h * hd:(h + 1) * hd].astype(jnp.bfloat16)


# ---------------------------------------------------------------------------
# Kernel B: banded local attention + fused output projection.
# grid = (B, T/tq); K/V windows are manually DMA'd from HBM (pl.ANY).
# ---------------------------------------------------------------------------
def _local_attn_kernel(sel_ref, q_ref, k_hbm, v_hbm, band_ref, kb_ref, qm_ref,
                       wp_ref, bp_ref, o_ref, kbuf, vbuf, sem,
                       *, t_total, tq, lk, w_pad, n_head, exp_dtype):
    b = pl.program_id(0)
    qi = pl.program_id(1)
    q0 = qi * tq
    # Static-size key window covering the +-w band of every query in the tile.
    # Must match the numpy `starts` used for the band / key-bias precompute.
    start = jnp.clip(q0 - w_pad, 0, t_total - lk)
    start = pl.multiple_of(start, 16)                 # 16-aligned by design

    ck = pltpu.make_async_copy(k_hbm.at[b, :, pl.ds(start, lk), :], kbuf,
                               sem.at[0])
    cv = pltpu.make_async_copy(v_hbm.at[b, :, pl.ds(start, lk), :], vbuf,
                               sem.at[1])
    ck.start()
    cv.start()

    q3 = q_ref[...]                                   # (H, tq, hd) bf16
    bias = band_ref[...] + kb_ref[...]                # (tq, lk) f32

    ck.wait()
    # Scores, batched over heads (bf16 MXU, f32 accumulate): (H, tq, lk).
    att = jax.lax.dot_general(q3, kbuf[...], (((2,), (2,)), ((0,), (0,))),
                              preferred_element_type=jnp.float32)
    att = att + bias[None, :, :]
    att = att - jnp.max(att, axis=-1, keepdims=True)
    p = jnp.exp(att.astype(exp_dtype))                # bf16 EUP on v6e/v7x
    denom = jnp.sum(p, axis=-1, keepdims=True, dtype=jnp.float32)  # (H, tq, 1)

    cv.wait()
    o3 = jax.lax.dot_general(p.astype(jnp.bfloat16), vbuf[...],
                             (((2,), (1,)), ((0,), (0,))),
                             preferred_element_type=jnp.float32)   # (H, tq, hd)
    o3 = o3 * pl.reciprocal(denom, approx=True)       # normalize the output

    # Head -> channel relayout (lane-axis concat) + single (tq,C)x(C,C) matmul.
    o_tc = jnp.concatenate([o3[h] for h in range(n_head)], axis=-1)  # (tq, C)
    out = jnp.dot(o_tc.astype(jnp.bfloat16), wp_ref[...],
                  preferred_element_type=jnp.float32) + bp_ref[...]
    out = out * qm_ref[...]                           # * qx_mask (stride 1)
    o_ref[...] = out.astype(o_ref.dtype)


# ---------------------------------------------------------------------------
# Wrapper
# ---------------------------------------------------------------------------
def local_masked_mhca(x_bct, mask_b1t, params, n_head, window_size, *,
                      q_tile=256):
    """Pallas forward of LocalMaskedMHCA.

    x: (B, C, T) f32 (PyTorch NCT layout), mask: (B, 1, T) bool.
    Returns (out (B, C, T) f32, qx_mask (B, 1, T) bool).
    """
    B, C, T = x_bct.shape
    H = n_head
    assert C % H == 0
    hd = C // H
    w = window_size // 2
    scale = 1.0 / math.sqrt(hd)

    # Tiling (all 16-aligned for bf16 sublane packing); pad T instead of
    # falling back to tq = T.
    tq = max(16, min(_round_up(q_tile, 16), _round_up(T, 16)))
    Tp = _round_up(T, tq)
    n_qt = Tp // tq
    w_pad = max(16, _round_up(w, 16))
    lk = min(Tp, tq + 2 * w_pad)                      # static key-window length
    tA = tq                                           # kernel-A time tile
    n_tA = Tp // tA
    blkA = tA // 8

    # Channels-last, padded activations.
    x_btc = jnp.transpose(x_bct, (0, 2, 1)).astype(jnp.float32)   # (B, T, C)
    x_btc = jnp.pad(x_btc, ((0, 0), (0, Tp - T), (0, 0)))         # (B, Tp, C)
    m_f = jnp.pad(mask_b1t.astype(jnp.float32)[:, 0, :],
                  ((0, 0), (0, Tp - T)))                          # (B, Tp)
    m_col = m_f[:, :, None]                                       # (B, Tp, 1)

    # Fold the 1/sqrt(hd) scale into the q projection.
    sc = jnp.array([scale, 1.0, 1.0], jnp.float32).reshape(3, 1, 1)
    wqkv = (params["wqkv"].astype(jnp.float32) * sc).astype(jnp.bfloat16)
    bqkv = params["bqkv"].astype(jnp.float32) * sc
    wp = params["wp"].astype(jnp.bfloat16)
    bp = params["bp"].astype(jnp.float32)

    vmem_cap = _vmem_limit_bytes()

    # ---------------- kernel A: conv + mask + tLN + 1x1 q/k/v ----------------
    qkv_kernel = functools.partial(_qkv_kernel, n_head=H, t_tile=tA, t_total=Tp)
    cp_a = pltpu.CompilerParams(dimension_semantics=("parallel", "parallel"),
                                vmem_limit_bytes=vmem_cap)
    q, k, v = pl.pallas_call(
        qkv_kernel,
        out_shape=[jax.ShapeDtypeStruct((B, H, Tp, hd), jnp.bfloat16)] * 3,
        grid=(B, n_tA),
        in_specs=[
            pl.BlockSpec((None, tA, C), lambda b, i: (b, i, 0)),      # x tile
            pl.BlockSpec((None, 8, C),                                # prev halo
                         lambda b, i: (b, jnp.maximum(i * blkA - 1, 0), 0)),
            pl.BlockSpec((None, 8, C),                                # next halo
                         lambda b, i: (b, jnp.minimum((i + 1) * blkA,
                                                      Tp // 8 - 1), 0)),
            pl.BlockSpec((None, tA, 1), lambda b, i: (b, i, 0)),      # mask col
            pl.BlockSpec((3, 3, C), lambda b, i: (0, 0, 0)),          # dw taps
            pl.BlockSpec((3, 2, C), lambda b, i: (0, 0, 0)),          # tLN g/b
            pl.BlockSpec((3, C, C), lambda b, i: (0, 0, 0)),          # 1x1 W bf16
            pl.BlockSpec((3, 1, C), lambda b, i: (0, 0, 0)),          # 1x1 bias
        ],
        out_specs=[pl.BlockSpec((None, H, tA, hd),
                                lambda b, i: (b, 0, i, 0))] * 3,
        compiler_params=cp_a,
    )(x_btc, x_btc, x_btc, m_col, params["dww"], params["lnw"], wqkv, bqkv)

    # Precompute (numpy) per-tile window starts, the de-duplicated band bias
    # blocks and the tile -> band-block selector, plus the windowed key-mask
    # bias (0 valid / -1e4 masked), so the kernel only does one bias add.
    q0s = np.arange(n_qt) * tq
    starts = np.clip(q0s - w_pad, 0, Tp - lk)
    uniq_d, sel = np.unique(q0s - starts, return_inverse=True)
    sel = jnp.asarray(sel.astype(np.int32))                       # (n_qt,)
    rr = np.arange(tq)[:, None]
    cc = np.arange(lk)[None, :]
    delta = uniq_d[:, None, None] + rr - cc                       # q_idx - k_idx
    band = jnp.asarray(
        np.where(np.abs(delta) <= w, 0.0, -1e30).astype(np.float32))

    idx = starts[:, None] + np.arange(lk)[None, :]                # (n_qt, lk)
    kbias = ((m_f[:, idx] - 1.0) * 10000.0).reshape(B * n_qt, 1, lk)

    # ---------------- kernel B: banded attention + projection ----------------
    attn_kernel = functools.partial(
        _local_attn_kernel, t_total=Tp, tq=tq, lk=lk, w_pad=w_pad,
        n_head=H, exp_dtype=_exp_dtype())
    cp_b = pltpu.CompilerParams(dimension_semantics=("parallel", "parallel"),
                                vmem_limit_bytes=vmem_cap)
    out_btc = pl.pallas_call(
        attn_kernel,
        out_shape=jax.ShapeDtypeStruct((B, Tp, C), jnp.float32),
        grid_spec=pltpu.PrefetchScalarGridSpec(
            num_scalar_prefetch=1,
            grid=(B, n_qt),
            in_specs=[
                pl.BlockSpec((None, H, tq, hd), lambda b, i, s: (b, 0, i, 0)),
                pl.BlockSpec(memory_space=pl.ANY),      # K (full HBM, windowed DMA)
                pl.BlockSpec(memory_space=pl.ANY),      # V
                pl.BlockSpec((None, tq, lk), lambda b, i, s: (s[i], 0, 0)),
                pl.BlockSpec((None, 1, lk),
                             lambda b, i, s: (b * n_qt + i, 0, 0)),
                pl.BlockSpec((None, tq, 1), lambda b, i, s: (b, i, 0)),
                pl.BlockSpec((C, C), lambda b, i, s: (0, 0)),
                pl.BlockSpec((1, C), lambda b, i, s: (0, 0)),
            ],
            out_specs=pl.BlockSpec((None, tq, C), lambda b, i, s: (b, i, 0)),
            scratch_shapes=[
                pltpu.VMEM((H, lk, hd), jnp.bfloat16),   # K window
                pltpu.VMEM((H, lk, hd), jnp.bfloat16),   # V window
                pltpu.SemaphoreType.DMA((2,)),
            ],
        ),
        compiler_params=cp_b,
    )(sel, q, k, v, band, kbias, m_col, wp, bp)

    out_bct = jnp.transpose(out_btc[:, :T, :], (0, 2, 1))
    return out_bct, mask_b1t.astype(bool)


# ---------------------------------------------------------------------------
# Pure-JAX f32 reference (dense formulation of the banded attention).
# ---------------------------------------------------------------------------
def ref_local_masked_mhca(x_bct, mask_b1t, params, n_head, window_size):
    x = jnp.transpose(x_bct, (0, 2, 1)).astype(jnp.float32)   # (B, T, C)
    B, T, C = x.shape
    hd = C // n_head
    w = window_size // 2
    m = mask_b1t[:, 0, :].astype(jnp.float32)                 # (B, T)
    mc = m[:, :, None]
    xp = jnp.pad(x, ((0, 0), (1, 1), (0, 0)))
    x_prev, x_next = xp[:, :T], xp[:, 2:]

    def conv_ln(i):
        wt = params["dww"][i]
        y = x_prev * wt[0] + x * wt[1] + x_next * wt[2]
        y = y * mc
        mu = y.mean(-1, keepdims=True)
        r = y - mu
        var = (r * r).mean(-1, keepdims=True)
        return (r / jnp.sqrt(var + 1e-5)) * params["lnw"][i, 0] + params["lnw"][i, 1]

    wqkv = params["wqkv"].astype(jnp.float32)
    q = (conv_ln(0) @ wqkv[0] + params["bqkv"][0]) / math.sqrt(hd)
    k = conv_ln(1) @ wqkv[1] + params["bqkv"][1]
    v = conv_ln(2) @ wqkv[2] + params["bqkv"][2]
    qh = q.reshape(B, T, n_head, hd)
    kh = k.reshape(B, T, n_head, hd)
    vh = v.reshape(B, T, n_head, hd)
    att = jnp.einsum("bqhd,bkhd->bhqk", qh, kh)
    idx = jnp.arange(T)
    band = jnp.abs(idx[:, None] - idx[None, :]) <= w          # local window
    att = jnp.where(band[None, None], att, -jnp.inf)          # hard band mask
    att = att + (m[:, None, None, :] - 1.0) * 10000.0         # soft key mask
    att = jax.nn.softmax(att, axis=-1)
    att = att * m[:, None, :, None]                           # zero masked-query rows
    o = jnp.einsum("bhqk,bkhd->bqhd", att, vh).reshape(B, T, C)
    o = (o @ params["wp"].astype(jnp.float32) + params["bp"]) * mc
    return jnp.transpose(o, (0, 2, 1)), mask_b1t.astype(bool)


if __name__ == "__main__":
    B, n_embd, n_head, T, window_size = 2, 128, 4, 200, 9
    C = n_embd
    key = jax.random.PRNGKey(0)
    ks = jax.random.split(key, 8)

    # Deterministic synthetic parameters (shapes from LocalMaskedMHCA.__init__).
    params = {
        # depthwise convs (q/k/v): torch weight (C, 1, 3) stored as (3 branch, 3 tap, C)
        "dww": 0.3 * jax.random.normal(ks[0], (3, 3, C), jnp.float32),
        # tLN per branch: (3 branches, [gamma, beta], C)
        "lnw": jnp.stack(
            [1.0 + 0.1 * jax.random.normal(ks[1], (3, C), jnp.float32),
             0.05 * jax.random.normal(ks[2], (3, C), jnp.float32)], axis=1),
        # 1x1 q/k/v convs, stored (3, C_in, C_out) in bf16 (MXU operand dtype)
        "wqkv": (jax.random.normal(ks[3], (3, C, C), jnp.float32)
                 / math.sqrt(C)).astype(jnp.bfloat16),
        "bqkv": 0.02 * jax.random.normal(ks[4], (3, 1, C), jnp.float32),
        # output 1x1 conv
        "wp": (jax.random.normal(ks[5], (C, C), jnp.float32)
               / math.sqrt(C)).astype(jnp.bfloat16),
        "bp": 0.02 * jax.random.normal(ks[6], (1, C), jnp.float32),
    }

    x = jax.random.normal(ks[7], (B, C, T), jnp.float32)            # PyTorch NCT
    lengths = jnp.array([200, 137])
    mask = (jnp.arange(T)[None, :] < lengths[:, None])[:, None, :]  # (B, 1, T) bool

    # Small q_tile so the test exercises multiple query tiles, T padding,
    # band de-duplication and the windowed K/V DMA path.
    out, qx_mask = local_masked_mhca(x, mask, params, n_head, window_size,
                                     q_tile=64)
    out = jax.block_until_ready(out)

    ref_out, _ = ref_local_masked_mhca(x, mask, params, n_head, window_size)
    err = float(jnp.max(jnp.abs(out - ref_out)))
    # bf16 MXU operands / bf16 exp (f32 accumulation) vs the f32 reference.
    assert err < 1e-1, f"kernel/reference mismatch: max abs err = {err}"
    print("KERNEL_OK")
</pallas_src>

<mosaic_0001>
module attributes {stable_mosaic.version = 11 : i64} {
  func.func @_qkv_kernel(%arg0: i32, %arg1: i32, %arg2: memref<1x64x128xf32, #tpu.memory_space<vmem>>, %arg3: memref<1x8x128xf32, #tpu.memory_space<vmem>>, %arg4: memref<1x8x128xf32, #tpu.memory_space<vmem>>, %arg5: memref<1x64x1xf32, #tpu.memory_space<vmem>>, %arg6: memref<3x3x128xf32, #tpu.memory_space<vmem>>, %arg7: memref<3x2x128xf32, #tpu.memory_space<vmem>>, %arg8: memref<3x128x128xbf16, #tpu.memory_space<vmem>>, %arg9: memref<3x1x128xf32, #tpu.memory_space<vmem>>, %arg10: memref<1x4x64x32xbf16, #tpu.memory_space<vmem>>, %arg11: memref<1x4x64x32xbf16, #tpu.memory_space<vmem>>, %arg12: memref<1x4x64x32xbf16, #tpu.memory_space<vmem>>) attributes {dimension_semantics = [#tpu.dimension_semantics<parallel>, #tpu.dimension_semantics<parallel>], iteration_bounds = array<i64: 2, 4>, scalar_prefetch = 0 : i64, scratch_operands = 0 : i64, tpu.core_type = #tpu.core_type<tc>, window_params = [{transform_indices = @transform_0, window_bounds = array<i64: 1, 64, 128>}, {transform_indices = @transform_1, window_bounds = array<i64: 1, 8, 128>}, {transform_indices = @transform_2, window_bounds = array<i64: 1, 8, 128>}, {transform_indices = @transform_3, window_bounds = array<i64: 1, 64, 1>}, {pipeline_mode = #tpu.pipeline_mode<synchronous>, transform_indices = @transform_4, window_bounds = array<i64: 3, 3, 128>}, {pipeline_mode = #tpu.pipeline_mode<synchronous>, transform_indices = @transform_5, window_bounds = array<i64: 3, 2, 128>}, {pipeline_mode = #tpu.pipeline_mode<synchronous>, transform_indices = @transform_6, window_bounds = array<i64: 3, 128, 128>}, {pipeline_mode = #tpu.pipeline_mode<synchronous>, transform_indices = @transform_7, window_bounds = array<i64: 3, 1, 128>}, {transform_indices = @transform_8, window_bounds = array<i64: 1, 4, 64, 32>}, {transform_indices = @transform_9, window_bounds = array<i64: 1, 4, 64, 32>}, {transform_indices = @transform_10, window_bounds = array<i64: 1, 4, 64, 32>}]} {
    %c64_i32 = arith.constant 64 : i32
    %0 = arith.muli %arg1, %c64_i32 : i32
    %c0 = arith.constant 0 : index
    %c0_0 = arith.constant 0 : index
    %c0_1 = arith.constant 0 : index
    %1 = vector.load %arg2[%c0, %c0_0, %c0_1] : memref<1x64x128xf32, #tpu.memory_space<vmem>>, vector<1x64x128xf32>
    %2 = vector.shape_cast %1 : vector<1x64x128xf32> to vector<64x128xf32>
    %c0_2 = arith.constant 0 : index
    %c0_3 = arith.constant 0 : index
    %c0_4 = arith.constant 0 : index
    %3 = vector.load %arg5[%c0_2, %c0_3, %c0_4] : memref<1x64x1xf32, #tpu.memory_space<vmem>>, vector<1x64x1xf32>
    %4 = vector.shape_cast %3 : vector<1x64x1xf32> to vector<64x1xf32>
    %5 = tpu.iota {dimensions = array<i32: 0>} : vector<64x1xi32>
    %c0_i32 = arith.constant 0 : i32
    %6 = arith.cmpi sgt, %0, %c0_i32 : i32
    %c0_5 = arith.constant 0 : index
    %c7 = arith.constant 7 : index
    %c0_6 = arith.constant 0 : index
    %7 = vector.load %arg3[%c0_5, %c7, %c0_6] : memref<1x8x128xf32, #tpu.memory_space<vmem>>, vector<1x1x128xf32>
    %8 = vector.shape_cast %7 : vector<1x1x128xf32> to vector<1x128xf32>
    %cst = arith.constant 0.000000e+00 : f32
    %9 = vector.broadcast %cst : f32 to vector<1x128xf32>
    %10 = arith.select %6, %8, %9 : vector<1x128xf32>
    %c64_i32_7 = arith.constant 64 : i32
    %11 = arith.addi %0, %c64_i32_7 : i32
    %c256_i32 = arith.constant 256 : i32
    %12 = arith.cmpi slt, %11, %c256_i32 : i32
    %c0_8 = arith.constant 0 : index
    %c0_9 = arith.constant 0 : index
    %c0_10 = arith.constant 0 : index
    %13 = vector.load %arg4[%c0_8, %c0_9, %c0_10] : memref<1x8x128xf32, #tpu.memory_space<vmem>>, vector<1x1x128xf32>
    %14 = vector.shape_cast %13 : vector<1x1x128xf32> to vector<1x128xf32>
    %cst_11 = arith.constant 0.000000e+00 : f32
    %15 = vector.broadcast %cst_11 : f32 to vector<1x128xf32>
    %16 = arith.select %12, %14, %15 : vector<1x128xf32>
    %c0_i32_12 = arith.constant 0 : i32
    %17 = vector.broadcast %c0_i32_12 : i32 to vector<64x1xi32>
    %18 = arith.cmpi eq, %5, %17 : vector<64x1xi32>
    %c1_i32 = arith.constant 1 : i32
    %19 = tpu.dynamic_rotate %2 by %c1_i32 dim 0 : vector<64x128xf32>, i32 -> vector<64x128xf32>
    %20 = vector.shape_cast %18 : vector<64x1xi1> to vector<64x1xi1>
    %21 = vector.broadcast %20 : vector<64x1xi1> to vector<64x128xi1>
    %22 = vector.shape_cast %10 : vector<1x128xf32> to vector<1x128xf32>
    %23 = vector.broadcast %22 : vector<1x128xf32> to vector<64x128xf32>
    %24 = arith.select %21, %23, %19 : vector<64x128xi1>, vector<64x128xf32>
    %c63_i32 = arith.constant 63 : i32
    %25 = vector.broadcast %c63_i32 : i32 to vector<64x1xi32>
    %26 = arith.cmpi eq, %5, %25 : vector<64x1xi32>
    %c63_i32_13 = arith.constant 63 : i32
    %27 = tpu.dynamic_rotate %2 by %c63_i32_13 dim 0 : vector<64x128xf32>, i32 -> vector<64x128xf32>
    %28 = vector.shape_cast %26 : vector<64x1xi1> to vector<64x1xi1>
    %29 = vector.broadcast %28 : vector<64x1xi1> to vector<64x128xi1>
    %30 = vector.shape_cast %16 : vector<1x128xf32> to vector<1x128xf32>
    %31 = vector.broadcast %30 : vector<1x128xf32> to vector<64x128xf32>
    %32 = arith.select %29, %31, %27 : vector<64x128xi1>, vector<64x128xf32>
    %c0_14 = arith.constant 0 : index
    %c0_15 = arith.constant 0 : index
    %c0_16 = arith.constant 0 : index
    %33 = vector.load %arg6[%c0_14, %c0_15, %c0_16] : memref<3x3x128xf32, #tpu.memory_space<vmem>>, vector<1x3x128xf32>
    %34 = vector.shape_cast %33 : vector<1x3x128xf32> to vector<3x128xf32>
    %35 = vector.extract_strided_slice %34 {offsets = [0, 0], sizes = [1, 128], strides = [1, 1]} : vector<3x128xf32> to vector<1x128xf32>
    %36 = vector.broadcast %35 : vector<1x128xf32> to vector<64x128xf32>
    %37 = arith.mulf %24, %36 : vector<64x128xf32>
    %38 = vector.extract_strided_slice %34 {offsets = [1, 0], sizes = [1, 128], strides = [1, 1]} : vector<3x128xf32> to vector<1x128xf32>
    %39 = vector.broadcast %38 : vector<1x128xf32> to vector<64x128xf32>
    %40 = arith.mulf %2, %39 : vector<64x128xf32>
    %41 = arith.addf %37, %40 : vector<64x128xf32>
    %42 = vector.extract_strided_slice %34 {offsets = [2, 0], sizes = [1, 128], strides = [1, 1]} : vector<3x128xf32> to vector<1x128xf32>
    %43 = vector.broadcast %42 : vector<1x128xf32> to vector<64x128xf32>
    %44 = arith.mulf %32, %43 : vector<64x128xf32>
    %45 = arith.addf %41, %44 : vector<64x128xf32>
    %46 = vector.broadcast %4 : vector<64x1xf32> to vector<64x128xf32>
    %47 = arith.mulf %45, %46 : vector<64x128xf32>
    %cst_17 = arith.constant dense<0.000000e+00> : vector<64xf32>
    %48 = vector.multi_reduction <add>, %47, %cst_17 [1] : vector<64x128xf32> to vector<64xf32>
    %49 = vector.shape_cast %48 : vector<64xf32> to vector<64x1xf32>
    %cst_18 = arith.constant 1.280000e+02 : f32
    %50 = vector.broadcast %cst_18 : f32 to vector<64x1xf32>
    %51 = arith.divf %49, %50 : vector<64x1xf32>
    %52 = vector.broadcast %51 : vector<64x1xf32> to vector<64x128xf32>
    %53 = arith.subf %47, %52 : vector<64x128xf32>
    %54 = arith.mulf %53, %53 : vector<64x128xf32>
    %cst_19 = arith.constant dense<0.000000e+00> : vector<64xf32>
    %55 = vector.multi_reduction <add>, %54, %cst_19 [1] : vector<64x128xf32> to vector<64xf32>
    %56 = vector.shape_cast %55 : vector<64xf32> to vector<64x1xf32>
    %cst_20 = arith.constant 1.280000e+02 : f32
    %57 = vector.broadcast %cst_20 : f32 to vector<64x1xf32>
    %58 = arith.divf %56, %57 : vector<64x1xf32>
    %c0_21 = arith.constant 0 : index
    %c0_22 = arith.constant 0 : index
    %c0_23 = arith.constant 0 : index
    %59 = vector.load %arg7[%c0_21, %c0_22, %c0_23] : memref<3x2x128xf32, #tpu.memory_space<vmem>>, vector<1x2x128xf32>
    %60 = vector.shape_cast %59 : vector<1x2x128xf32> to vector<2x128xf32>
    %cst_24 = arith.constant 9.99999974E-6 : f32
    %61 = vector.broadcast %cst_24 : f32 to vector<64x1xf32>
    %62 = arith.addf %58, %61 : vector<64x1xf32>
    %63 = math.rsqrt %62 : vector<64x1xf32>
    %64 = vector.broadcast %63 : vector<64x1xf32> to vector<64x128xf32>
    %65 = arith.mulf %53, %64 : vector<64x128xf32>
    %66 = vector.extract_strided_slice %60 {offsets = [0, 0], sizes = [1, 128], strides = [1, 1]} : vector<2x128xf32> to vector<1x128xf32>
    %67 = vector.broadcast %66 : vector<1x128xf32> to vector<64x128xf32>
    %68 = arith.mulf %65, %67 : vector<64x128xf32>
    %69 = vector.extract_strided_slice %60 {offsets = [1, 0], sizes = [1, 128], strides = [1, 1]} : vector<2x128xf32> to vector<1x128xf32>
    %70 = vector.broadcast %69 : vector<1x128xf32> to vector<64x128xf32>
    %71 = arith.addf %68, %70 : vector<64x128xf32>
    %72 = arith.truncf %71 : vector<64x128xf32> to vector<64x128xbf16>
    %c0_25 = arith.constant 0 : index
    %c0_26 = arith.constant 0 : index
    %c0_27 = arith.constant 0 : index
    %73 = vector.load %arg8[%c0_25, %c0_26, %c0_27] : memref<3x128x128xbf16, #tpu.memory_space<vmem>>, vector<1x128x128xbf16>
    %74 = vector.shape_cast %73 : vector<1x128x128xbf16> to vector<128x128xbf16>
    %cst_28 = arith.constant dense<0.000000e+00> : vector<64x128xf32>
    %75 = tpu.matmul %72, %74, %cst_28 {dimension_numbers = #tpu.dot_dimension_numbers<[1], [0], [0], [1], [0, 0, 1, 1], [], []>} : vector<64x128xbf16>, vector<128x128xbf16>, vector<64x128xf32> -> vector<64x128xf32>
    %c0_29 = arith.constant 0 : index
    %c0_30 = arith.constant 0 : index
    %c0_31 = arith.constant 0 : index
    %76 = vector.load %arg9[%c0_29, %c0_30, %c0_31] : memref<3x1x128xf32, #tpu.memory_space<vmem>>, vector<1x1x128xf32>
    %77 = vector.shape_cast %76 : vector<1x1x128xf32> to vector<1x128xf32>
    %78 = vector.broadcast %77 : vector<1x128xf32> to vector<64x128xf32>
    %79 = arith.addf %75, %78 : vector<64x128xf32>
    %80 = vector.extract_strided_slice %79 {offsets = [0, 0], sizes = [64, 32], strides = [1, 1]} : vector<64x128xf32> to vector<64x32xf32>
    %81 = arith.truncf %80 : vector<64x32xf32> to vector<64x32xbf16>
    %c0_32 = arith.constant 0 : index
    %c0_33 = arith.constant 0 : index
    %c0_34 = arith.constant 0 : index
    %c0_35 = arith.constant 0 : index
    %82 = vector.load %arg10[%c0_32, %c0_33, %c0_34, %c0_35] : memref<1x4x64x32xbf16, #tpu.memory_space<vmem>>, vector<1x1x64x32xbf16>
    %83 = vector.shape_cast %82 : vector<1x1x64x32xbf16> to vector<64x32xbf16>
    %84 = vector.shape_cast %81 : vector<64x32xbf16> to vector<1x1x64x32xbf16>
    tpu.vector_store %arg10[%c0_32, %c0_33, %c0_34, %c0_35], %84 {strides = array<i32>} : memref<1x4x64x32xbf16, #tpu.memory_space<vmem>>, vector<1x1x64x32xbf16>,
    %85 = vector.extract_strided_slice %79 {offsets = [0, 32], sizes = [64, 32], strides = [1, 1]} : vector<64x128xf32> to vector<64x32xf32>
    %86 = arith.truncf %85 : vector<64x32xf32> to vector<64x32xbf16>
    %c0_36 = arith.constant 0 : index
    %c1 = arith.constant 1 : index
    %c0_37 = arith.constant 0 : index
    %c0_38 = arith.constant 0 : index
    %87 = vector.load %arg10[%c0_36, %c1, %c0_37, %c0_38] : memref<1x4x64x32xbf16, #tpu.memory_space<vmem>>, vector<1x1x64x32xbf16>
    %88 = vector.shape_cast %87 : vector<1x1x64x32xbf16> to vector<64x32xbf16>
    %89 = vector.shape_cast %86 : vector<64x32xbf16> to vector<1x1x64x32xbf16>
    tpu.vector_store %arg10[%c0_36, %c1, %c0_37, %c0_38], %89 {strides = array<i32>} : memref<1x4x64x32xbf16, #tpu.memory_space<vmem>>, vector<1x1x64x32xbf16>,
    %90 = vector.extract_strided_slice %79 {offsets = [0, 64], sizes = [64, 32], strides = [1, 1]} : vector<64x128xf32> to vector<64x32xf32>
    %91 = arith.truncf %90 : vector<64x32xf32> to vector<64x32xbf16>
    %c0_39 = arith.constant 0 : index
    %c2 = arith.constant 2 : index
    %c0_40 = arith.constant 0 : index
    %c0_41 = arith.constant 0 : index
    %92 = vector.load %arg10[%c0_39, %c2, %c0_40, %c0_41] : memref<1x4x64x32xbf16, #tpu.memory_space<vmem>>, vector<1x1x64x32xbf16>
    %93 = vector.shape_cast %92 : vector<1x1x64x32xbf16> to vector<64x32xbf16>
    %94 = vector.shape_cast %91 : vector<64x32xbf16> to vector<1x1x64x32xbf16>
    tpu.vector_store %arg10[%c0_39, %c2, %c0_40, %c0_41], %94 {strides = array<i32>} : memref<1x4x64x32xbf16, #tpu.memory_space<vmem>>, vector<1x1x64x32xbf16>,
    %95 = vector.extract_strided_slice %79 {offsets = [0, 96], sizes = [64, 32], strides = [1, 1]} : vector<64x128xf32> to vector<64x32xf32>
    %96 = arith.truncf %95 : vector<64x32xf32> to vector<64x32xbf16>
    %c0_42 = arith.constant 0 : index
    %c3 = arith.constant 3 : index
    %c0_43 = arith.constant 0 : index
    %c0_44 = arith.constant 0 : index
    %97 = vector.load %arg10[%c0_42, %c3, %c0_43, %c0_44] : memref<1x4x64x32xbf16, #tpu.memory_space<vmem>>, vector<1x1x64x32xbf16>
    %98 = vector.shape_cast %97 : vector<1x1x64x32xbf16> to vector<64x32xbf16>
    %99 = vector.shape_cast %96 : vector<64x32xbf16> to vector<1x1x64x32xbf16>
    tpu.vector_store %arg10[%c0_42, %c3, %c0_43, %c0_44], %99 {strides = array<i32>} : memref<1x4x64x32xbf16, #tpu.memory_space<vmem>>, vector<1x1x64x32xbf16>,
    %c1_45 = arith.constant 1 : index
    %c0_46 = arith.constant 0 : index
    %c0_47 = arith.constant 0 : index
    %100 = vector.load %arg6[%c1_45, %c0_46, %c0_47] : memref<3x3x128xf32, #tpu.memory_space<vmem>>, vector<1x3x128xf32>
    %101 = vector.shape_cast %100 : vector<1x3x128xf32> to vector<3x128xf32>
    %102 = vector.extract_strided_slice %101 {offsets = [0, 0], sizes = [1, 128], strides = [1, 1]} : vector<3x128xf32> to vector<1x128xf32>
    %103 = vector.broadcast %102 : vector<1x128xf32> to vector<64x128xf32>
    %104 = arith.mulf %24, %103 : vector<64x128xf32>
    %105 = vector.extract_strided_slice %101 {offsets = [1, 0], sizes = [1, 128], strides = [1, 1]} : vector<3x128xf32> to vector<1x128xf32>
    %106 = vector.broadcast %105 : vector<1x128xf32> to vector<64x128xf32>
    %107 = arith.mulf %2, %106 : vector<64x128xf32>
    %108 = arith.addf %104, %107 : vector<64x128xf32>
    %109 = vector.extract_strided_slice %101 {offsets = [2, 0], sizes = [1, 128], strides = [1, 1]} : vector<3x128xf32> to vector<1x128xf32>
    %110 = vector.broadcast %109 : vector<1x128xf32> to vector<64x128xf32>
    %111 = arith.mulf %32, %110 : vector<64x128xf32>
    %112 = arith.addf %108, %111 : vector<64x128xf32>
    %113 = vector.broadcast %4 : vector<64x1xf32> to vector<64x128xf32>
    %114 = arith.mulf %112, %113 : vector<64x128xf32>
    %cst_48 = arith.constant dense<0.000000e+00> : vector<64xf32>
    %115 = vector.multi_reduction <add>, %114, %cst_48 [1] : vector<64x128xf32> to vector<64xf32>
    %116 = vector.shape_cast %115 : vector<64xf32> to vector<64x1xf32>
    %cst_49 = arith.constant 1.280000e+02 : f32
    %117 = vector.broadcast %cst_49 : f32 to vector<64x1xf32>
    %118 = arith.divf %116, %117 : vector<64x1xf32>
    %119 = vector.broadcast %118 : vector<64x1xf32> to vector<64x128xf32>
    %120 = arith.subf %114, %119 : vector<64x128xf32>
    %121 = arith.mulf %120, %120 : vector<64x128xf32>
    %cst_50 = arith.constant dense<0.000000e+00> : vector<64xf32>
    %122 = vector.multi_reduction <add>, %121, %cst_50 [1] : vector<64x128xf32> to vector<64xf32>
    %123 = vector.shape_cast %122 : vector<64xf32> to vector<64x1xf32>
    %cst_51 = arith.constant 1.280000e+02 : f32
    %124 = vector.broadcast %cst_51 : f32 to vector<64x1xf32>
    %125 = arith.divf %123, %124 : vector<64x1xf32>
    %c1_52 = arith.constant 1 : index
    %c0_53 = arith.constant 0 : index
    %c0_54 = arith.constant 0 : index
    %126 = vector.load %arg7[%c1_52, %c0_53, %c0_54] : memref<3x2x128xf32, #tpu.memory_space<vmem>>, vector<1x2x128xf32>
    %127 = vector.shape_cast %126 : vector<1x2x128xf32> to vector<2x128xf32>
    %cst_55 = arith.constant 9.99999974E-6 : f32
    %128 = vector.broadcast %cst_55 : f32 to vector<64x1xf32>
    %129 = arith.addf %125, %128 : vector<64x1xf32>
    %130 = math.rsqrt %129 : vector<64x1xf32>
    %131 = vector.broadcast %130 : vector<64x1xf32> to vector<64x128xf32>
    %132 = arith.mulf %120, %131 : vector<64x128xf32>
    %133 = vector.extract_strided_slice %127 {offsets = [0, 0], sizes = [1, 128], strides = [1, 1]} : vector<2x128xf32> to vector<1x128xf32>
    %134 = vector.broadcast %133 : vector<1x128xf32> to vector<64x128xf32>
    %135 = arith.mulf %132, %134 : vector<64x128xf32>
    %136 = vector.extract_strided_slice %127 {offsets = [1, 0], sizes = [1, 128], strides = [1, 1]} : vector<2x128xf32> to vector<1x128xf32>
    %137 = vector.broadcast %136 : vector<1x128xf32> to vector<64x128xf32>
    %138 = arith.addf %135, %137 : vector<64x128xf32>
    %139 = arith.truncf %138 : vector<64x128xf32> to vector<64x128xbf16>
    %c1_56 = arith.constant 1 : index
    %c0_57 = arith.constant 0 : index
    %c0_58 = arith.constant 0 : index
    %140 = vector.load %arg8[%c1_56, %c0_57, %c0_58] : memref<3x128x128xbf16, #tpu.memory_space<vmem>>, vector<1x128x128xbf16>
    %141 = vector.shape_cast %140 : vector<1x128x128xbf16> to vector<128x128xbf16>
    %cst_59 = arith.constant dense<0.000000e+00> : vector<64x128xf32>
    %142 = tpu.matmul %139, %141, %cst_59 {dimension_numbers = #tpu.dot_dimension_numbers<[1], [0], [0], [1], [0, 0, 1, 1], [], []>} : vector<64x128xbf16>, vector<128x128xbf16>, vector<64x128xf32> -> vector<64x128xf32>
    %c1_60 = arith.constant 1 : index
    %c0_61 = arith.constant 0 : index
    %c0_62 = arith.constant 0 : index
    %143 = vector.load %arg9[%c1_60, %c0_61, %c0_62] : memref<3x1x128xf32, #tpu.memory_space<vmem>>, vector<1x1x128xf32>
    %144 = vector.shape_cast %143 : vector<1x1x128xf32> to vector<1x128xf32>
    %145 = vector.broadcast %144 : vector<1x128xf32> to vector<64x128xf32>
    %146 = arith.addf %142, %145 : vector<64x128xf32>
    %147 = vector.extract_strided_slice %146 {offsets = [0, 0], sizes = [64, 32], strides = [1, 1]} : vector<64x128xf32> to vector<64x32xf32>
    %148 = arith.truncf %147 : vector<64x32xf32> to vector<64x32xbf16>
    %c0_63 = arith.constant 0 : index
    %c0_64 = arith.constant 0 : index
    %c0_65 = arith.constant 0 : index
    %c0_66 = arith.constant 0 : index
    %149 = vector.load %arg11[%c0_63, %c0_64, %c0_65, %c0_66] : memref<1x4x64x32xbf16, #tpu.memory_space<vmem>>, vector<1x1x64x32xbf16>
    %150 = vector.shape_cast %149 : vector<1x1x64x32xbf16> to vector<64x32xbf16>
    %151 = vector.shape_cast %148 : vector<64x32xbf16> to vector<1x1x64x32xbf16>
    tpu.vector_store %arg11[%c0_63, %c0_64, %c0_65, %c0_66], %151 {strides = array<i32>} : memref<1x4x64x32xbf16, #tpu.memory_space<vmem>>, vector<1x1x64x32xbf16>,
    %152 = vector.extract_strided_slice %146 {offsets = [0, 32], sizes = [64, 32], strides = [1, 1]} : vector<64x128xf32> to vector<64x32xf32>
    %153 = arith.truncf %152 : vector<64x32xf32> to vector<64x32xbf16>
    %c0_67 = arith.constant 0 : index
    %c1_68 = arith.constant 1 : index
    %c0_69 = arith.constant 0 : index
    %c0_70 = arith.constant 0 : index
    %154 = vector.load %arg11[%c0_67, %c1_68, %c0_69, %c0_70] : memref<1x4x64x32xbf16, #tpu.memory_space<vmem>>, vector<1x1x64x32xbf16>
    %155 = vector.shape_cast %154 : vector<1x1x64x32xbf16> to vector<64x32xbf16>
    %156 = vector.shape_cast %153 : vector<64x32xbf16> to vector<1x1x64x32xbf16>
    tpu.vector_store %arg11[%c0_67, %c1_68, %c0_69, %c0_70], %156 {strides = array<i32>} : memref<1x4x64x32xbf16, #tpu.memory_space<vmem>>, vector<1x1x64x32xbf16>,
    %157 = vector.extract_strided_slice %146 {offsets = [0, 64], sizes = [64, 32], strides = [1, 1]} : vector<64x128xf32> to vector<64x32xf32>
    %158 = arith.truncf %157 : vector<64x32xf32> to vector<64x32xbf16>
    %c0_71 = arith.constant 0 : index
    %c2_72 = arith.constant 2 : index
    %c0_73 = arith.constant 0 : index
    %c0_74 = arith.constant 0 : index
    %159 = vector.load %arg11[%c0_71, %c2_72, %c0_73, %c0_74] : memref<1x4x64x32xbf16, #tpu.memory_space<vmem>>, vector<1x1x64x32xbf16>
    %160 = vector.shape_cast %159 : vector<1x1x64x32xbf16> to vector<64x32xbf16>
    %161 = vector.shape_cast %158 : vector<64x32xbf16> to vector<1x1x64x32xbf16>
    tpu.vector_store %arg11[%c0_71, %c2_72, %c0_73, %c0_74], %161 {strides = array<i32>} : memref<1x4x64x32xbf16, #tpu.memory_space<vmem>>, vector<1x1x64x32xbf16>,
    %162 = vector.extract_strided_slice %146 {offsets = [0, 96], sizes = [64, 32], strides = [1, 1]} : vector<64x128xf32> to vector<64x32xf32>
    %163 = arith.truncf %162 : vector<64x32xf32> to vector<64x32xbf16>
    %c0_75 = arith.constant 0 : index
    %c3_76 = arith.constant 3 : index
    %c0_77 = arith.constant 0 : index
    %c0_78 = arith.constant 0 : index
    %164 = vector.load %arg11[%c0_75, %c3_76, %c0_77, %c0_78] : memref<1x4x64x32xbf16, #tpu.memory_space<vmem>>, vector<1x1x64x32xbf16>
    %165 = vector.shape_cast %164 : vector<1x1x64x32xbf16> to vector<64x32xbf16>
    %166 = vector.shape_cast %163 : vector<64x32xbf16> to vector<1x1x64x32xbf16>
    tpu.vector_store %arg11[%c0_75, %c3_76, %c0_77, %c0_78], %166 {strides = array<i32>} : memref<1x4x64x32xbf16, #tpu.memory_space<vmem>>, vector<1x1x64x32xbf16>,
    %c2_79 = arith.constant 2 : index
    %c0_80 = arith.constant 0 : index
    %c0_81 = arith.constant 0 : index
    %167 = vector.load %arg6[%c2_79, %c0_80, %c0_81] : memref<3x3x128xf32, #tpu.memory_space<vmem>>, vector<1x3x128xf32>
    %168 = vector.shape_cast %167 : vector<1x3x128xf32> to vector<3x128xf32>
    %169 = vector.extract_strided_slice %168 {offsets = [0, 0], sizes = [1, 128], strides = [1, 1]} : vector<3x128xf32> to vector<1x128xf32>
    %170 = vector.broadcast %169 : vector<1x128xf32> to vector<64x128xf32>
    %171 = arith.mulf %24, %170 : vector<64x128xf32>
    %172 = vector.extract_strided_slice %168 {offsets = [1, 0], sizes = [1, 128], strides = [1, 1]} : vector<3x128xf32> to vector<1x128xf32>
    %173 = vector.broadcast %172 : vector<1x128xf32> to vector<64x128xf32>
    %174 = arith.mulf %2, %173 : vector<64x128xf32>
    %175 = arith.addf %171, %174 : vector<64x128xf32>
    %176 = vector.extract_strided_slice %168 {offsets = [2, 0], sizes = [1, 128], strides = [1, 1]} : vector<3x128xf32> to vector<1x128xf32>
    %177 = vector.broadcast %176 : vector<1x128xf32> to vector<64x128xf32>
    %178 = arith.mulf %32, %177 : vector<64x128xf32>
    %179 = arith.addf %175, %178 : vector<64x128xf32>
    %180 = vector.broadcast %4 : vector<64x1xf32> to vector<64x128xf32>
    %181 = arith.mulf %179, %180 : vector<64x128xf32>
    %cst_82 = arith.constant dense<0.000000e+00> : vector<64xf32>
    %182 = vector.multi_reduction <add>, %181, %cst_82 [1] : vector<64x128xf32> to vector<64xf32>
    %183 = vector.shape_cast %182 : vector<64xf32> to vector<64x1xf32>
    %cst_83 = arith.constant 1.280000e+02 : f32
    %184 = vector.broadcast %cst_83 : f32 to vector<64x1xf32>
    %185 = arith.divf %183, %184 : vector<64x1xf32>
    %186 = vector.broadcast %185 : vector<64x1xf32> to vector<64x128xf32>
    %187 = arith.subf %181, %186 : vector<64x128xf32>
    %188 = arith.mulf %187, %187 : vector<64x128xf32>
    %cst_84 = arith.constant dense<0.000000e+00> : vector<64xf32>
    %189 = vector.multi_reduction <add>, %188, %cst_84 [1] : vector<64x128xf32> to vector<64xf32>
    %190 = vector.shape_cast %189 : vector<64xf32> to vector<64x1xf32>
    %cst_85 = arith.constant 1.280000e+02 : f32
    %191 = vector.broadcast %cst_85 : f32 to vector<64x1xf32>
    %192 = arith.divf %190, %191 : vector<64x1xf32>
    %c2_86 = arith.constant 2 : index
    %c0_87 = arith.constant 0 : index
    %c0_88 = arith.constant 0 : index
    %193 = vector.load %arg7[%c2_86, %c0_87, %c0_88] : memref<3x2x128xf32, #tpu.memory_space<vmem>>, vector<1x2x128xf32>
    %194 = vector.shape_cast %193 : vector<1x2x128xf32> to vector<2x128xf32>
    %cst_89 = arith.constant 9.99999974E-6 : f32
    %195 = vector.broadcast %cst_89 : f32 to vector<64x1xf32>
    %196 = arith.addf %192, %195 : vector<64x1xf32>
    %197 = math.rsqrt %196 : vector<64x1xf32>
    %198 = vector.broadcast %197 : vector<64x1xf32> to vector<64x128xf32>
    %199 = arith.mulf %187, %198 : vector<64x128xf32>
    %200 = vector.extract_strided_slice %194 {offsets = [0, 0], sizes = [1, 128], strides = [1, 1]} : vector<2x128xf32> to vector<1x128xf32>
    %201 = vector.broadcast %200 : vector<1x128xf32> to vector<64x128xf32>
    %202 = arith.mulf %199, %201 : vector<64x128xf32>
    %203 = vector.extract_strided_slice %194 {offsets = [1, 0], sizes = [1, 128], strides = [1, 1]} : vector<2x128xf32> to vector<1x128xf32>
    %204 = vector.broadcast %203 : vector<1x128xf32> to vector<64x128xf32>
    %205 = arith.addf %202, %204 : vector<64x128xf32>
    %206 = arith.truncf %205 : vector<64x128xf32> to vector<64x128xbf16>
    %c2_90 = arith.constant 2 : index
    %c0_91 = arith.constant 0 : index
    %c0_92 = arith.constant 0 : index
    %207 = vector.load %arg8[%c2_90, %c0_91, %c0_92] : memref<3x128x128xbf16, #tpu.memory_space<vmem>>, vector<1x128x128xbf16>
    %208 = vector.shape_cast %207 : vector<1x128x128xbf16> to vector<128x128xbf16>
    %cst_93 = arith.constant dense<0.000000e+00> : vector<64x128xf32>
    %209 = tpu.matmul %206, %208, %cst_93 {dimension_numbers = #tpu.dot_dimension_numbers<[1], [0], [0], [1], [0, 0, 1, 1], [], []>} : vector<64x128xbf16>, vector<128x128xbf16>, vector<64x128xf32> -> vector<64x128xf32>
    %c2_94 = arith.constant 2 : index
    %c0_95 = arith.constant 0 : index
    %c0_96 = arith.constant 0 : index
    %210 = vector.load %arg9[%c2_94, %c0_95, %c0_96] : memref<3x1x128xf32, #tpu.memory_space<vmem>>, vector<1x1x128xf32>
    %211 = vector.shape_cast %210 : vector<1x1x128xf32> to vector<1x128xf32>
    %212 = vector.broadcast %211 : vector<1x128xf32> to vector<64x128xf32>
    %213 = arith.addf %209, %212 : vector<64x128xf32>
    %214 = vector.extract_strided_slice %213 {offsets = [0, 0], sizes = [64, 32], strides = [1, 1]} : vector<64x128xf32> to vector<64x32xf32>
    %215 = arith.truncf %214 : vector<64x32xf32> to vector<64x32xbf16>
    %c0_97 = arith.constant 0 : index
    %c0_98 = arith.constant 0 : index
    %c0_99 = arith.constant 0 : index
    %c0_100 = arith.constant 0 : index
    %216 = vector.load %arg12[%c0_97, %c0_98, %c0_99, %c0_100] : memref<1x4x64x32xbf16, #tpu.memory_space<vmem>>, vector<1x1x64x32xbf16>
    %217 = vector.shape_cast %216 : vector<1x1x64x32xbf16> to vector<64x32xbf16>
    %218 = vector.shape_cast %215 : vector<64x32xbf16> to vector<1x1x64x32xbf16>
    tpu.vector_store %arg12[%c0_97, %c0_98, %c0_99, %c0_100], %218 {strides = array<i32>} : memref<1x4x64x32xbf16, #tpu.memory_space<vmem>>, vector<1x1x64x32xbf16>,
    %219 = vector.extract_strided_slice %213 {offsets = [0, 32], sizes = [64, 32], strides = [1, 1]} : vector<64x128xf32> to vector<64x32xf32>
    %220 = arith.truncf %219 : vector<64x32xf32> to vector<64x32xbf16>
    %c0_101 = arith.constant 0 : index
    %c1_102 = arith.constant 1 : index
    %c0_103 = arith.constant 0 : index
    %c0_104 = arith.constant 0 : index
    %221 = vector.load %arg12[%c0_101, %c1_102, %c0_103, %c0_104] : memref<1x4x64x32xbf16, #tpu.memory_space<vmem>>, vector<1x1x64x32xbf16>
    %222 = vector.shape_cast %221 : vector<1x1x64x32xbf16> to vector<64x32xbf16>
    %223 = vector.shape_cast %220 : vector<64x32xbf16> to vector<1x1x64x32xbf16>
    tpu.vector_store %arg12[%c0_101, %c1_102, %c0_103, %c0_104], %223 {strides = array<i32>} : memref<1x4x64x32xbf16, #tpu.memory_space<vmem>>, vector<1x1x64x32xbf16>,
    %224 = vector.extract_strided_slice %213 {offsets = [0, 64], sizes = [64, 32], strides = [1, 1]} : vector<64x128xf32> to vector<64x32xf32>
    %225 = arith.truncf %224 : vector<64x32xf32> to vector<64x32xbf16>
    %c0_105 = arith.constant 0 : index
    %c2_106 = arith.constant 2 : index
    %c0_107 = arith.constant 0 : index
    %c0_108 = arith.constant 0 : index
    %226 = vector.load %arg12[%c0_105, %c2_106, %c0_107, %c0_108] : memref<1x4x64x32xbf16, #tpu.memory_space<vmem>>, vector<1x1x64x32xbf16>
    %227 = vector.shape_cast %226 : vector<1x1x64x32xbf16> to vector<64x32xbf16>
    %228 = vector.shape_cast %225 : vector<64x32xbf16> to vector<1x1x64x32xbf16>
    tpu.vector_store %arg12[%c0_105, %c2_106, %c0_107, %c0_108], %228 {strides = array<i32>} : memref<1x4x64x32xbf16, #tpu.memory_space<vmem>>, vector<1x1x64x32xbf16>,
    %229 = vector.extract_strided_slice %213 {offsets = [0, 96], sizes = [64, 32], strides = [1, 1]} : vector<64x128xf32> to vector<64x32xf32>
    %230 = arith.truncf %229 : vector<64x32xf32> to vector<64x32xbf16>
    %c0_109 = arith.constant 0 : index
    %c3_110 = arith.constant 3 : index
    %c0_111 = arith.constant 0 : index
    %c0_112 = arith.constant 0 : index
    %231 = vector.load %arg12[%c0_109, %c3_110, %c0_111, %c0_112] : memref<1x4x64x32xbf16, #tpu.memory_space<vmem>>, vector<1x1x64x32xbf16>
    %232 = vector.shape_cast %231 : vector<1x1x64x32xbf16> to vector<64x32xbf16>
    %233 = vector.shape_cast %230 : vector<64x32xbf16> to vector<1x1x64x32xbf16>
    tpu.vector_store %arg12[%c0_109, %c3_110, %c0_111, %c0_112], %233 {strides = array<i32>} : memref<1x4x64x32xbf16, #tpu.memory_space<vmem>>, vector<1x1x64x32xbf16>,
    return
  }
  func.func @transform_0(%arg0: i32, %arg1: i32) -> (i32, i32, i32) {
    %c0_i32 = arith.constant 0 : i32
    %c0_i32_0 = arith.constant 0 : i32
    return %arg0, %arg1, %c0_i32 : i32, i32, i32
  }
  func.func @transform_1(%arg0: i32, %arg1: i32) -> (i32, i32, i32) {
    %c8_i32 = arith.constant 8 : i32
    %0 = arith.muli %arg1, %c8_i32 : i32
    %c1_i32 = arith.constant 1 : i32
    %1 = arith.subi %0, %c1_i32 : i32
    %c0_i32 = arith.constant 0 : i32
    %2 = arith.maxsi %1, %c0_i32 : i32
    %c0_i32_0 = arith.constant 0 : i32
    %c0_i32_1 = arith.constant 0 : i32
    return %arg0, %2, %c0_i32_0 : i32, i32, i32
  }
  func.func @transform_2(%arg0: i32, %arg1: i32) -> (i32, i32, i32) {
    %c1_i32 = arith.constant 1 : i32
    %0 = arith.addi %arg1, %c1_i32 : i32
    %c8_i32 = arith.constant 8 : i32
    %1 = arith.muli %0, %c8_i32 : i32
    %c31_i32 = arith.constant 31 : i32
    %2 = arith.minsi %1, %c31_i32 : i32
    %c0_i32 = arith.constant 0 : i32
    %c0_i32_0 = arith.constant 0 : i32
    return %arg0, %2, %c0_i32 : i32, i32, i32
  }
  func.func @transform_3(%arg0: i32, %arg1: i32) -> (i32, i32, i32) {
    %c0_i32 = arith.constant 0 : i32
    %c0_i32_0 = arith.constant 0 : i32
    return %arg0, %arg1, %c0_i32 : i32, i32, i32
  }
  func.func @transform_4(%arg0: i32, %arg1: i32) -> (i32, i32, i32) {
    %c0_i32 = arith.constant 0 : i32
    %c0_i32_0 = arith.constant 0 : i32
    %c0_i32_1 = arith.constant 0 : i32
    %c0_i32_2 = arith.constant 0 : i32
    return %c0_i32, %c0_i32_0, %c0_i32_1 : i32, i32, i32
  }
  func.func @transform_5(%arg0: i32, %arg1: i32) -> (i32, i32, i32) {
    %c0_i32 = arith.constant 0 : i32
    %c0_i32_0 = arith.constant 0 : i32
    %c0_i32_1 = arith.constant 0 : i32
    %c0_i32_2 = arith.constant 0 : i32
    return %c0_i32, %c0_i32_0, %c0_i32_1 : i32, i32, i32
  }
  func.func @transform_6(%arg0: i32, %arg1: i32) -> (i32, i32, i32) {
    %c0_i32 = arith.constant 0 : i32
    %c0_i32_0 = arith.constant 0 : i32
    %c0_i32_1 = arith.constant 0 : i32
    %c0_i32_2 = arith.constant 0 : i32
    return %c0_i32, %c0_i32_0, %c0_i32_1 : i32, i32, i32
  }
  func.func @transform_7(%arg0: i32, %arg1: i32) -> (i32, i32, i32) {
    %c0_i32 = arith.constant 0 : i32
    %c0_i32_0 = arith.constant 0 : i32
    %c0_i32_1 = arith.constant 0 : i32
    %c0_i32_2 = arith.constant 0 : i32
    return %c0_i32, %c0_i32_0, %c0_i32_1 : i32, i32, i32
  }
  func.func @transform_8(%arg0: i32, %arg1: i32) -> (i32, i32, i32, i32) {
    %c0_i32 = arith.constant 0 : i32
    %c0_i32_0 = arith.constant 0 : i32
    %c0_i32_1 = arith.constant 0 : i32
    return %arg0, %c0_i32, %arg1, %c0_i32_0 : i32, i32, i32, i32
  }
  func.func @transform_9(%arg0: i32, %arg1: i32) -> (i32, i32, i32, i32) {
    %c0_i32 = arith.constant 0 : i32
    %c0_i32_0 = arith.constant 0 : i32
    %c0_i32_1 = arith.constant 0 : i32
    return %arg0, %c0_i32, %arg1, %c0_i32_0 : i32, i32, i32, i32
  }
  func.func @transform_10(%arg0: i32, %arg1: i32) -> (i32, i32, i32, i32) {
    %c0_i32 = arith.constant 0 : i32
    %c0_i32_0 = arith.constant 0 : i32
    %c0_i32_1 = arith.constant 0 : i32
    return %arg0, %c0_i32, %arg1, %c0_i32_0 : i32, i32, i32, i32
  }
}

</mosaic_0001>

<llo_original>
// kernel: tpu_custom_call.1
$region0: #{tpu_custom_call.1}
  #allocation0 [shape = 'u32[]', space=smem, size = 0x4, offset = 0x4, fixed_abs, tag = 'smem constant byte address 0x4 - core index']
  #allocation1 [shape = 'u32[144,128]{1,0:T(1,128)}', space=vmem, size = 0x12000, scoped, tag = 'internal scratch']
  %s0 = inlined_call_operand.vmem [shape: f32[2,256,128], index: 0, kind: input, shape index: {}]
  %s1 = inlined_call_operand.hbm [shape: f32[2,256,128], index: 1, kind: input, shape index: {}]
  %s2 = inlined_call_operand.hbm [shape: f32[2,256,128], index: 2, kind: input, shape index: {}]
  %s3 = inlined_call_operand.vmem [shape: f32[2,256,1], index: 3, kind: input, shape index: {}]
  %s4 = inlined_call_operand.vmem [shape: f32[3,3,128], index: 4, kind: input, shape index: {}]
  %s5 = inlined_call_operand.vmem [shape: f32[3,2,128], index: 5, kind: input, shape index: {}]
  %s6 = inlined_call_operand.hbm [shape: bf16[3,128,128], index: 6, kind: input, shape index: {}]
  %s7 = inlined_call_operand.vmem [shape: f32[3,1,128], index: 7, kind: input, shape index: {}]
  %s8 = inlined_call_operand.vmem [shape: bf16[2,4,256,32], index: 8, kind: output, shape index: {0}]
  %s9 = inlined_call_operand.vmem [shape: bf16[2,4,256,32], index: 9, kind: output, shape index: {1}]
  %s10 = inlined_call_operand.vmem [shape: bf16[2,4,256,32], index: 10, kind: output, shape index: {2}]
  %11 = xla_tuple %s8, %s9, %s10
  %s12 = sld [smem:[#allocation0]]
  $region204: #{tpu_custom_call.1} parent=0
    _
  %s14 = ssub.s32 1, %s12
  %s15 = scalar_select 0, %s14, %s12
  $region1: #{tpu_custom_call.1} parent=0
    #allocation2 [shape = 'u8[8192]{0}', space=vmem, size = 0x2000, scoped, tag = 'input window, operand 1']
    #allocation3 [shape = 's32[2]{0}', space=sflag, size = 0x8, scoped, tag = 'scoped memory for tpu_custom_call.1']
    #allocation4 [shape = 'u8[8192]{0}', space=vmem, size = 0x2000, scoped, tag = 'input window, operand 2']
    #allocation5 [shape = 's32[2]{0}', space=sflag, size = 0x8, scoped, tag = 'scoped memory for tpu_custom_call.1']
    #allocation6 [shape = 'u8[98304]{0}', space=vmem, size = 0x18000, scoped, tag = 'input window, operand 6, single buffered']
    #allocation7 [shape = 'u8[131072]{0}', space=vmem, size = 0x20000, scoped, tag = 'output window, operand 0']
    #allocation8 [shape = 'u8[131072]{0}', space=vmem, size = 0x20000, scoped, tag = 'output window, operand 1']
    #allocation9 [shape = 'u8[131072]{0}', space=vmem, size = 0x20000, scoped, tag = 'output window, operand 2']
    %16 = vsyncpa [#allocation3], 0
    %s17 = scalar_lea.sflag [#allocation3], 1
    %18 = vsyncpa %s17, 0
    %19 = vsyncpa [#allocation5], 0
    %s20 = scalar_lea.sflag [#allocation5], 1
    %21 = vsyncpa %s20, 0
    loop: start=0, step=1, limit=10
    $region2: #{tpu_custom_call.1} parent=1 // loop_pre_header
      _
    $region3: #{tpu_custom_call.1} parent=1 // loop_header
      %s23 = sphi 0, %s27
      %p24 = scmp.ge.s32.totalorder %s23, 10
      %s30 = sphi 0, %s42
      %s31 = sphi 0, %s38
      %s32 = sphi 0, %s30
      %s33 = sphi 0, %s31
      %s34 = sphi 0, %s32
      %s35 = sphi 0, %s33
      %s47 = sphi 0, %s49
      %s50 = sphi 0, %s47
      %s51 = sphi 0, %s50
      %s67 = sphi 0, %s51
      %s83 = sphi 0, %s85
      %s86 = sphi 0, %s83
      %s87 = sphi 0, %s86
      %s103 = sphi 0, %s87
      %s119 = sphi 0, %s121
      %s122 = sphi 0, %s119
      %s123 = sphi 0, %s122
      %s139 = sphi 0, %s123
      %s147 = sphi 0, %s149
      %s150 = sphi 0, %s147
      %s151 = sphi 0, %s150
      %s167 = sphi 0, %s151
      %s171 = sphi 0, %s171
      %s173 = sphi 0, %s171
      %s174 = sphi 0, %s173
      %s188 = sphi 0, %s174
      %s192 = sphi 0, %s192
      %s194 = sphi 0, %s192
      %s195 = sphi 0, %s194
      %s209 = sphi 0, %s195
      %s213 = sphi 0, %s213
      %s215 = sphi 0, %s213
      %s216 = sphi 0, %s215
      %s230 = sphi 0, %s216
      %s234 = sphi 0, %s234
      %s236 = sphi 0, %s234
      %s237 = sphi 0, %s236
      %s251 = sphi 0, %s237
      %s259 = sphi 0, %s261
      %s262 = sphi 0, %s259
      %s263 = sphi 0, %s262
      %s279 = sphi 0, %s263
      %s287 = sphi 0, %s289
      %s290 = sphi 0, %s287
      %s291 = sphi 0, %s290
      %s307 = sphi 0, %s291
      %s315 = sphi 0, %s317
      %s318 = sphi 0, %s315
      %s319 = sphi 0, %s318
      %s335 = sphi 0, %s319
    $region4: #{tpu_custom_call.1} parent=1 // loop_header_branch
      %26 = sbr.rel (%p24) target = $region8
    $region5: #{tpu_custom_call.1} parent=1 // loop_body
      %s28 = ssub.s32 %s23, 1
      %s29 = ssub.s32 %s23, 2
      %s36 = sadd.s32 1, %s31
      %p37 = scmp.ge.s32.totalorder %s36, 4
      %s38 = scalar_select %p37, 0, %s36
      %s39 = sadd.s32 1, %s30
      %s40 = scalar_select %p37, %s39, %s30
      %p41 = scmp.ge.s32.totalorder %s40, 2
      %s42 = scalar_select %p41, 0, %s40
      %s43 = ssub.s32 %s30, %s42
      %s44 = ssub.s32 %s31, %s38
      %s45 = sor.u32 %s43, %s44
      %p46 = scmp.eq.s32.totalorder %s45, 0
      %s48 = sadd.s32 %s47, 1
      %s49 = scalar_select %p46, %s47, %s48
      %p52 = pneg %p46
      %p53 = scmp.eq.s32.totalorder %s23, 7
      %p54 = por %p52, %p53
      %p55 = scmp.ne.s32.totalorder %s47, %s50
      %p56 = scmp.eq.s32.totalorder %s23, 0
      %p57 = por %p55, %p56
      %p58 = scmp.ne.s32.totalorder %s47, %s50
      %p59 = scmp.eq.s32.totalorder %s28, 7
      %p60 = por %p58, %p59
      %p61 = scmp.ne.s32.totalorder %s50, %s51
      %p62 = scmp.eq.s32.totalorder %s28, 0
      %p63 = por %p61, %p62
      %p64 = scmp.ne.s32.totalorder %s50, %s51
      %p65 = scmp.eq.s32.totalorder %s29, 7
      %p66 = por %p64, %p65
      %p68 = scmp.ne.s32.totalorder %s51, %s67
      %p69 = scmp.eq.s32.totalorder %s29, 0
      %p70 = por %p68, %p69
      %s71 = smul.u32 %s31, 8
      %s72 = ssub.s32 %s71, 1
      %p73 = scmp.gt.s32.totalorder %s72, 0
      %s74 = scalar_select %p73, %s72, 0
      %s75 = smul.u32 %s38, 8
      %s76 = ssub.s32 %s75, 1
      %p77 = scmp.gt.s32.totalorder %s76, 0
      %s78 = scalar_select %p77, %s76, 0
      %s79 = ssub.s32 %s30, %s42
      %s80 = ssub.s32 %s74, %s78
      %s81 = sor.u32 %s79, %s80
      %p82 = scmp.eq.s32.totalorder %s81, 0
      %s84 = sadd.s32 %s83, 1
      %s85 = scalar_select %p82, %s83, %s84
      %p88 = pneg %p82
      %p89 = scmp.eq.s32.totalorder %s23, 7
      %p90 = por %p88, %p89
      %p91 = scmp.ne.s32.totalorder %s83, %s86
      %p92 = scmp.eq.s32.totalorder %s23, 0
      %p93 = por %p91, %p92
      %p94 = scmp.ne.s32.totalorder %s83, %s86
      %p95 = scmp.eq.s32.totalorder %s28, 7
      %p96 = por %p94, %p95
      %p97 = scmp.ne.s32.totalorder %s86, %s87
      %p98 = scmp.eq.s32.totalorder %s28, 0
      %p99 = por %p97, %p98
      %p100 = scmp.ne.s32.totalorder %s86, %s87
      %p101 = scmp.eq.s32.totalorder %s29, 7
      %p102 = por %p100, %p101
      %p104 = scmp.ne.s32.totalorder %s87, %s103
      %p105 = scmp.eq.s32.totalorder %s29, 0
      %p106 = por %p104, %p105
      %s107 = sadd.s32 %s31, 1
      %s108 = smul.u32 %s107, 8
      %p109 = scmp.lt.s32.totalorder %s108, 31
      %s110 = scalar_select %p109, %s108, 31
      %s111 = sadd.s32 %s38, 1
      %s112 = smul.u32 %s111, 8
      %p113 = scmp.lt.s32.totalorder %s112, 31
      %s114 = scalar_select %p113, %s112, 31
      %s115 = ssub.s32 %s30, %s42
      %s116 = ssub.s32 %s110, %s114
      %s117 = sor.u32 %s115, %s116
      %p118 = scmp.eq.s32.totalorder %s117, 0
      %s120 = sadd.s32 %s119, 1
      %s121 = scalar_select %p118, %s119, %s120
      %p124 = pneg %p118
      %p125 = scmp.eq.s32.totalorder %s23, 7
      %p126 = por %p124, %p125
      %p127 = scmp.ne.s32.totalorder %s119, %s122
      %p128 = scmp.eq.s32.totalorder %s23, 0
      %p129 = por %p127, %p128
      %p130 = scmp.ne.s32.totalorder %s119, %s122
      %p131 = scmp.eq.s32.totalorder %s28, 7
      %p132 = por %p130, %p131
      %p133 = scmp.ne.s32.totalorder %s122, %s123
      %p134 = scmp.eq.s32.totalorder %s28, 0
      %p135 = por %p133, %p134
      %p136 = scmp.ne.s32.totalorder %s122, %s123
      %p137 = scmp.eq.s32.totalorder %s29, 7
      %p138 = por %p136, %p137
      %p140 = scmp.ne.s32.totalorder %s123, %s139
      %p141 = scmp.eq.s32.totalorder %s29, 0
      %p142 = por %p140, %p141
      %s143 = ssub.s32 %s30, %s42
      %s144 = ssub.s32 %s31, %s38
      %s145 = sor.u32 %s143, %s144
      %p146 = scmp.eq.s32.totalorder %s145, 0
      %s148 = sadd.s32 %s147, 1
      %s149 = scalar_select %p146, %s147, %s148
      %p152 = pneg %p146
      %p153 = scmp.eq.s32.totalorder %s23, 7
      %p154 = por %p152, %p153
      %p155 = scmp.ne.s32.totalorder %s147, %s150
      %p156 = scmp.eq.s32.totalorder %s23, 0
      %p157 = por %p155, %p156
      %p158 = scmp.ne.s32.totalorder %s147, %s150
      %p159 = scmp.eq.s32.totalorder %s28, 7
      %p160 = por %p158, %p159
      %p161 = scmp.ne.s32.totalorder %s150, %s151
      %p162 = scmp.eq.s32.totalorder %s28, 0
      %p163 = por %p161, %p162
      %p164 = scmp.ne.s32.totalorder %s150, %s151
      %p165 = scmp.eq.s32.totalorder %s29, 7
      %p166 = por %p164, %p165
      %p168 = scmp.ne.s32.totalorder %s151, %s167
      %p169 = scmp.eq.s32.totalorder %s29, 0
      %p170 = por %p168, %p169
      %s172 = sadd.s32 %s171, 1
      %p175 = scmp.eq.s32.totalorder %s23, 7
      %p176 = scmp.ne.s32.totalorder %s171, %s173
      %p177 = scmp.eq.s32.totalorder %s23, 0
      %p178 = por %p176, %p177
      %p179 = scmp.ne.s32.totalorder %s171, %s173
      %p180 = scmp.eq.s32.totalorder %s28, 7
      %p181 = por %p179, %p180
      %p182 = scmp.ne.s32.totalorder %s173, %s174
      %p183 = scmp.eq.s32.totalorder %s28, 0
      %p184 = por %p182, %p183
      %p185 = scmp.ne.s32.totalorder %s173, %s174
      %p186 = scmp.eq.s32.totalorder %s29, 7
      %p187 = por %p185, %p186
      %p189 = scmp.ne.s32.totalorder %s174, %s188
      %p190 = scmp.eq.s32.totalorder %s29, 0
      %p191 = por %p189, %p190
      %s193 = sadd.s32 %s192, 1
      %p196 = scmp.eq.s32.totalorder %s23, 7
      %p197 = scmp.ne.s32.totalorder %s192, %s194
      %p198 = scmp.eq.s32.totalorder %s23, 0
      %p199 = por %p197, %p198
      %p200 = scmp.ne.s32.totalorder %s192, %s194
      %p201 = scmp.eq.s32.totalorder %s28, 7
      %p202 = por %p200, %p201
      %p203 = scmp.ne.s32.totalorder %s194, %s195
      %p204 = scmp.eq.s32.totalorder %s28, 0
      %p205 = por %p203, %p204
      %p206 = scmp.ne.s32.totalorder %s194, %s195
      %p207 = scmp.eq.s32.totalorder %s29, 7
      %p208 = por %p206, %p207
      %p210 = scmp.ne.s32.totalorder %s195, %s209
      %p211 = scmp.eq.s32.totalorder %s29, 0
      %p212 = por %p210, %p211
      %s214 = sadd.s32 %s213, 1
      %p217 = scmp.eq.s32.totalorder %s23, 7
      %p218 = scmp.ne.s32.totalorder %s213, %s215
      %p219 = scmp.eq.s32.totalorder %s23, 0
      %p220 = por %p218, %p219
      %p221 = scmp.ne.s32.totalorder %s213, %s215
      %p222 = scmp.eq.s32.totalorder %s28, 7
      %p223 = por %p221, %p222
      %p224 = scmp.ne.s32.totalorder %s215, %s216
      %p225 = scmp.eq.s32.totalorder %s28, 0
      %p226 = por %p224, %p225
      %p227 = scmp.ne.s32.totalorder %s215, %s216
      %p228 = scmp.eq.s32.totalorder %s29, 7
      %p229 = por %p227, %p228
      %p231 = scmp.ne.s32.totalorder %s216, %s230
      %p232 = scmp.eq.s32.totalorder %s29, 0
      %p233 = por %p231, %p232
      %s235 = sadd.s32 %s234, 1
      %p238 = scmp.eq.s32.totalorder %s23, 7
      %p239 = scmp.ne.s32.totalorder %s234, %s236
      %p240 = scmp.eq.s32.totalorder %s23, 0
      %p241 = por %p239, %p240
      %p242 = scmp.ne.s32.totalorder %s234, %s236
      %p243 = scmp.eq.s32.totalorder %s28, 7
      %p244 = por %p242, %p243
      %p245 = scmp.ne.s32.totalorder %s236, %s237
      %p246 = scmp.eq.s32.totalorder %s28, 0
      %p247 = por %p245, %p246
      %p248 = scmp.ne.s32.totalorder %s236, %s237
      %p249 = scmp.eq.s32.totalorder %s29, 7
      %p250 = por %p248, %p249
      %p252 = scmp.ne.s32.totalorder %s237, %s251
      %p253 = scmp.eq.s32.totalorder %s29, 0
      %p254 = por %p252, %p253
      %s255 = ssub.s32 %s30, %s42
      %s256 = ssub.s32 %s31, %s38
      %s257 = sor.u32 %s255, %s256
      %p258 = scmp.eq.s32.totalorder %s257, 0
      %s260 = sadd.s32 %s259, 1
      %s261 = scalar_select %p258, %s259, %s260
      %p264 = pneg %p258
      %p265 = scmp.eq.s32.totalorder %s23, 7
      %p266 = por %p264, %p265
      %p267 = scmp.ne.s32.totalorder %s259, %s262
      %p268 = scmp.eq.s32.totalorder %s23, 0
      %p269 = por %p267, %p268
      %p270 = scmp.ne.s32.totalorder %s259, %s262
      %p271 = scmp.eq.s32.totalorder %s28, 7
      %p272 = por %p270, %p271
      %p273 = scmp.ne.s32.totalorder %s262, %s263
      %p274 = scmp.eq.s32.totalorder %s28, 0
      %p275 = por %p273, %p274
      %p276 = scmp.ne.s32.totalorder %s262, %s263
      %p277 = scmp.eq.s32.totalorder %s29, 7
      %p278 = por %p276, %p277
      %p280 = scmp.ne.s32.totalorder %s263, %s279
      %p281 = scmp.eq.s32.totalorder %s29, 0
      %p282 = por %p280, %p281
      %s283 = ssub.s32 %s30, %s42
      %s284 = ssub.s32 %s31, %s38
      %s285 = sor.u32 %s283, %s284
      %p286 = scmp.eq.s32.totalorder %s285, 0
      %s288 = sadd.s32 %s287, 1
      %s289 = scalar_select %p286, %s287, %s288
      %p292 = pneg %p286
      %p293 = scmp.eq.s32.totalorder %s23, 7
      %p294 = por %p292, %p293
      %p295 = scmp.ne.s32.totalorder %s287, %s290
      %p296 = scmp.eq.s32.totalorder %s23, 0
      %p297 = por %p295, %p296
      %p298 = scmp.ne.s32.totalorder %s287, %s290
      %p299 = scmp.eq.s32.totalorder %s28, 7
      %p300 = por %p298, %p299
      %p301 = scmp.ne.s32.totalorder %s290, %s291
      %p302 = scmp.eq.s32.totalorder %s28, 0
      %p303 = por %p301, %p302
      %p304 = scmp.ne.s32.totalorder %s290, %s291
      %p305 = scmp.eq.s32.totalorder %s29, 7
      %p306 = por %p304, %p305
      %p308 = scmp.ne.s32.totalorder %s291, %s307
      %p309 = scmp.eq.s32.totalorder %s29, 0
      %p310 = por %p308, %p309
      %s311 = ssub.s32 %s30, %s42
      %s312 = ssub.s32 %s31, %s38
      %s313 = sor.u32 %s311, %s312
      %p314 = scmp.eq.s32.totalorder %s313, 0
      %s316 = sadd.s32 %s315, 1
      %s317 = scalar_select %p314, %s315, %s316
      %p320 = pneg %p314
      %p321 = scmp.eq.s32.totalorder %s23, 7
      %p322 = por %p320, %p321
      %p323 = scmp.ne.s32.totalorder %s315, %s318
      %p324 = scmp.eq.s32.totalorder %s23, 0
      %p325 = por %p323, %p324
      %p326 = scmp.ne.s32.totalorder %s315, %s318
      %p327 = scmp.eq.s32.totalorder %s28, 7
      %p328 = por %p326, %p327
      %p329 = scmp.ne.s32.totalorder %s318, %s319
      %p330 = scmp.eq.s32.totalorder %s28, 0
      %p331 = por %p329, %p330
      %p332 = scmp.ne.s32.totalorder %s318, %s319
      %p333 = scmp.eq.s32.totalorder %s29, 7
      %p334 = por %p332, %p333
      %p336 = scmp.ne.s32.totalorder %s319, %s335
      %p337 = scmp.eq.s32.totalorder %s29, 0
      %p338 = por %p336, %p337
      %p339 = scmp.le.s32.totalorder 1, %s23
      %p340 = scmp.lt.s32.totalorder %s23, 9
      %p341 = pnand %p339, %p340
      %p342 = pneg %p341
      // Predicated region
      $region9: #{tpu_custom_call.1} parent=5 // pred_check
        _
      $region10: #{tpu_custom_call.1} parent=5 // pred_check_branch
        %344 = sbr.rel (%p341) target = $region12
      $region11: #{tpu_custom_call.1} parent=5 // pred_region
        %s345 = ssub.s32 %s23, 1
        // Predicated region
        $region13: #{tpu_custom_call.1} parent=11 // pred_check
          %p346 = pneg %p184
        $region14: #{tpu_custom_call.1} parent=11 // pred_check_branch
          %348 = sbr.rel (%p346) target = $region16
        $region15: #{tpu_custom_call.1} parent=11 // pred_region
          _
        $region16: #{tpu_custom_call.1} parent=11 // pred_fallthru
          _
        // Predicated region
        $region17: #{tpu_custom_call.1} parent=11 // pred_check
          %p349 = pneg %p205
        $region18: #{tpu_custom_call.1} parent=11 // pred_check_branch
          %351 = sbr.rel (%p349) target = $region20
        $region19: #{tpu_custom_call.1} parent=11 // pred_region
          _
        $region20: #{tpu_custom_call.1} parent=11 // pred_fallthru
          _
        // Predicated region
        $region21: #{tpu_custom_call.1} parent=11 // pred_check
          %p352 = pneg %p226
        $region22: #{tpu_custom_call.1} parent=11 // pred_check_branch
          %354 = sbr.rel (%p352) target = $region24
        $region23: #{tpu_custom_call.1} parent=11 // pred_region
          %s356 = ssub.s32 3072, 3072
          %357 = vsyncadd [#allocation5], %s356
          %s358 = sshll.u32 [#allocation6], 4
          %s359 = int_to_ptr.vmem [resolvable:$true] %s358
          %364 = dma.hbm_to_vmem [thread:$0]  %s6, 3072, %s359, [#allocation5], 64, 64, 4
        $region24: #{tpu_custom_call.1} parent=11 // pred_fallthru
          _
        // Predicated region
        $region25: #{tpu_custom_call.1} parent=11 // pred_check
          %p365 = pneg %p247
        $region26: #{tpu_custom_call.1} parent=11 // pred_check_branch
          %367 = sbr.rel (%p365) target = $region28
        $region27: #{tpu_custom_call.1} parent=11 // pred_region
          _
        $region28: #{tpu_custom_call.1} parent=11 // pred_fallthru
          _
      $region12: #{tpu_custom_call.1} parent=5 // pred_fallthru
        _
      %p368 = scmp.lt.s32.totalorder %s23, 8
      // Predicated region
      $region29: #{tpu_custom_call.1} parent=5 // pred_check
        %p369 = pneg %p368
      $region30: #{tpu_custom_call.1} parent=5 // pred_check_branch
        %371 = sbr.rel (%p369) target = $region32
      $region31: #{tpu_custom_call.1} parent=5 // pred_region
        // Predicated region
        $region33: #{tpu_custom_call.1} parent=31 // pred_check
          %p372 = pneg %p57
        $region34: #{tpu_custom_call.1} parent=31 // pred_check_branch
          %374 = sbr.rel (%p372) target = $region36
        $region35: #{tpu_custom_call.1} parent=31 // pred_region
          %s375 = smul.u32 8, %s31
          %p376 = scmp.lt.s32.totalorder %s30, 1
          %s377 = scalar_select %p376, %s30, 1
          %p378 = scmp.lt.s32.totalorder %s375, 31
          %s379 = scalar_select %p378, %s375, 31
          %s380 = smul.addr %s377, 32
          %s381 = sadd.s32 %s379, %s380
          %s382 = smul.addr %s381, 8
          %s383 = scalar_lea.vmem %s0, %s382
          %s384 = smul.u32 8, %s31
        $region36: #{tpu_custom_call.1} parent=31 // pred_fallthru
          _
        // Predicated region
        $region37: #{tpu_custom_call.1} parent=31 // pred_check
          %p385 = pneg %p93
        $region38: #{tpu_custom_call.1} parent=31 // pred_check_branch
          %387 = sbr.rel (%p385) target = $region40
        $region39: #{tpu_custom_call.1} parent=31 // pred_region
          %s388 = sand.u32 %s83, 1
          %s389 = scalar_lea.sflag [#allocation3], %s388
          %s390 = sand.u32 %s83, 1
          %s391 = smul.addr %s390, 8
          %s392 = scalar_lea.vmem [#allocation2], %s391
          %s393 = smul.u32 %s31, 8
          %s394 = ssub.s32 %s393, 1
          %p395 = scmp.gt.s32.totalorder %s394, 0
          %s396 = scalar_select %p395, %s394, 0
          %s398 = ssub.s32 128, 128
          %399 = vsyncadd %s389, %s398
          %s400 = smul.addr %s30, 32
          %s401 = sadd.s32 %s396, %s400
          %s402 = smul.addr %s401, 128
          %s403 = scalar_lea.hbm %s1, %s402
          %s405 = sshll.u32 %s392, 4
          %s406 = int_to_ptr.vmem [resolvable:$true] %s405
          %408 = dma.hbm_to_vmem [thread:$0]  %s403, 128, %s406, %s389
        $region40: #{tpu_custom_call.1} parent=31 // pred_fallthru
          _
        // Predicated region
        $region41: #{tpu_custom_call.1} parent=31 // pred_check
          %p409 = pneg %p129
        $region42: #{tpu_custom_call.1} parent=31 // pred_check_branch
          %411 = sbr.rel (%p409) target = $region44
        $region43: #{tpu_custom_call.1} parent=31 // pred_region
          %s412 = sand.u32 %s23, 1
          %s413 = scalar_lea.sflag [#allocation5], %s412
          %s414 = sand.u32 %s119, 1
          %s415 = smul.addr %s414, 8
          %s416 = scalar_lea.vmem [#allocation4], %s415
          %s417 = sadd.s32 %s31, 1
          %s418 = smul.u32 %s417, 8
          %p419 = scmp.lt.s32.totalorder %s418, 31
          %s420 = scalar_select %p419, %s418, 31
          %s422 = ssub.s32 128, 128
          %423 = vsyncadd %s413, %s422
          %s424 = smul.addr %s30, 32
          %s425 = sadd.s32 %s420, %s424
          %s426 = smul.addr %s425, 128
          %s427 = scalar_lea.hbm %s2, %s426
          %s429 = sshll.u32 %s416, 4
          %s430 = int_to_ptr.vmem [resolvable:$true] %s429
          %432 = dma.hbm_to_vmem [thread:$0]  %s427, 128, %s430, %s413
        $region44: #{tpu_custom_call.1} parent=31 // pred_fallthru
          _
        // Predicated region
        $region45: #{tpu_custom_call.1} parent=31 // pred_check
          %p433 = pneg %p157
        $region46: #{tpu_custom_call.1} parent=31 // pred_check_branch
          %435 = sbr.rel (%p433) target = $region48
        $region47: #{tpu_custom_call.1} parent=31 // pred_region
          %s436 = smul.u32 8, %s31
          %p437 = scmp.lt.s32.totalorder %s30, 1
          %s438 = scalar_select %p437, %s30, 1
          %p439 = scmp.lt.s32.totalorder %s436, 31
          %s440 = scalar_select %p439, %s436, 31
          %s441 = smul.addr %s438, 32
          %s442 = sadd.s32 %s440, %s441
          %s443 = smul.addr %s442, 8
          %s444 = scalar_lea.vmem %s3, %s443
          %s445 = smul.u32 8, %s31
        $region48: #{tpu_custom_call.1} parent=31 // pred_fallthru
          _
      $region32: #{tpu_custom_call.1} parent=5 // pred_fallthru
        _
      %p446 = scmp.le.s32.totalorder 1, %s23
      %p447 = scmp.lt.s32.totalorder %s23, 9
      %p448 = pnand %p446, %p447
      %p449 = pneg %p448
      // Predicated region
      $region49: #{tpu_custom_call.1} parent=5 // pred_check
        _
      $region50: #{tpu_custom_call.1} parent=5 // pred_check_branch
        %451 = sbr.rel (%p448) target = $region52
      $region51: #{tpu_custom_call.1} parent=5 // pred_region
        %s452 = ssub.s32 %s23, 1
        %s453 = sand.u32 %s86, 1
        %s454 = scalar_lea.sflag [#allocation3], %s453
        %s455 = sand.u32 %s86, 1
        %s456 = smul.addr %s455, 8
        %s457 = scalar_lea.vmem [#allocation2], %s456
        // Predicated region
        $region53: #{tpu_custom_call.1} parent=51 // pred_check
          %p458 = pneg %p99
        $region54: #{tpu_custom_call.1} parent=51 // pred_check_branch
          %460 = sbr.rel (%p458) target = $region56
        $region55: #{tpu_custom_call.1} parent=51 // pred_region
          %461 = dma.done %s454, 128
        $region56: #{tpu_custom_call.1} parent=51 // pred_fallthru
          _
        %s462 = sand.u32 %s28, 1
        %s463 = scalar_lea.sflag [#allocation5], %s462
        %s464 = sand.u32 %s122, 1
        %s465 = smul.addr %s464, 8
        %s466 = scalar_lea.vmem [#allocation4], %s465
        // Predicated region
        $region57: #{tpu_custom_call.1} parent=51 // pred_check
          %p467 = pneg %p135
        $region58: #{tpu_custom_call.1} parent=51 // pred_check_branch
          %469 = sbr.rel (%p467) target = $region60
        $region59: #{tpu_custom_call.1} parent=51 // pred_region
          %470 = dma.done %s463, 128
        $region60: #{tpu_custom_call.1} parent=51 // pred_fallthru
          _
        // Predicated region
        $region61: #{tpu_custom_call.1} parent=51 // pred_check
          %p471 = pneg %p226
        $region62: #{tpu_custom_call.1} parent=51 // pred_check_branch
          %473 = sbr.rel (%p471) target = $region64
        $region63: #{tpu_custom_call.1} parent=51 // pred_region
          %474 = dma.done [#allocation5], 3072
        $region64: #{tpu_custom_call.1} parent=51 // pred_fallthru
          _
        %s475 = smul.u32 8, %s33
        %p476 = scmp.lt.s32.totalorder %s32, 1
        %s477 = scalar_select %p476, %s32, 1
        %p478 = scmp.lt.s32.totalorder %s475, 31
        %s479 = scalar_select %p478, %s475, 31
        %s480 = smul.addr %s477, 32
        %s481 = sadd.s32 %s479, %s480
        %s482 = smul.addr %s481, 8
        %s483 = scalar_lea.vmem %s0, %s482
        %p484 = pneg %p63
        %p485 = pneg %p60
        %s486 = sand.u32 %s86, 1
        %s487 = scalar_lea.sflag [#allocation3], %s486
        %s488 = sand.u32 %s86, 1
        %s489 = smul.addr %s488, 8
        %s490 = scalar_lea.vmem [#allocation2], %s489
        %p491 = pneg %p99
        %p492 = pneg %p96
        %s493 = sand.u32 %s28, 1
        %s494 = scalar_lea.sflag [#allocation5], %s493
        %s495 = sand.u32 %s122, 1
        %s496 = smul.addr %s495, 8
        %s497 = scalar_lea.vmem [#allocation4], %s496
        %p498 = pneg %p135
        %p499 = pneg %p132
        %s500 = smul.u32 8, %s33
        %p501 = scmp.lt.s32.totalorder %s32, 1
        %s502 = scalar_select %p501, %s32, 1
        %p503 = scmp.lt.s32.totalorder %s500, 31
        %s504 = scalar_select %p503, %s500, 31
        %s505 = smul.addr %s502, 32
        %s506 = sadd.s32 %s504, %s505
        %s507 = smul.addr %s506, 8
        %s508 = scalar_lea.vmem %s3, %s507
        %p509 = pneg %p163
        %p510 = pneg %p160
        %p511 = pneg %p184
        %p512 = pneg %p181
        %p513 = pneg %p205
        %p514 = pneg %p202
        %p515 = pneg %p226
        %p516 = pneg %p223
        %p517 = pneg %p247
        %p518 = pneg %p244
        %p519 = pneg %p275
        %p520 = pneg %p272
        %s521 = sand.u32 %s262, 1
        %s522 = sand.u32 %s262, 1
        %s523 = smul.addr %s522, 128
        %s524 = scalar_lea.vmem [#allocation7], %s523
        %p525 = pneg %p303
        %p526 = pneg %p300
        %s527 = sand.u32 %s290, 1
        %s528 = sand.u32 %s290, 1
        %s529 = smul.addr %s528, 128
        %s530 = scalar_lea.vmem [#allocation8], %s529
        %p531 = pneg %p331
        %p532 = pneg %p328
        %s533 = sand.u32 %s318, 1
        %s534 = sand.u32 %s318, 1
        %s535 = smul.addr %s534, 128
        %s536 = scalar_lea.vmem [#allocation9], %s535
        %s537 = smul.u32 8, %s33
        %p538 = scmp.lt.s32.totalorder %s32, 1
        %s539 = scalar_select %p538, %s32, 1
        %p540 = scmp.lt.s32.totalorder %s537, 31
        %s541 = scalar_select %p540, %s537, 31
        %s542 = smul.addr %s539, 32
        %s543 = sadd.s32 %s541, %s542
        %s544 = smul.addr %s543, 8
        %s545 = scalar_lea.vmem %s0, %s544
        %s546 = smul.u32 8, %s33
        %s547 = smul.u32 %s33, 8
        %s548 = ssub.s32 %s547, 1
        %p549 = scmp.gt.s32.totalorder %s548, 0
        %s550 = scalar_select %p549, %s548, 0
        %s551 = sadd.s32 %s33, 1
        %s552 = smul.u32 %s551, 8
        %p553 = scmp.lt.s32.totalorder %s552, 31
        %s554 = scalar_select %p553, %s552, 31
        %s555 = smul.u32 8, %s33
        %p556 = scmp.lt.s32.totalorder %s32, 1
        %s557 = scalar_select %p556, %s32, 1
        %p558 = scmp.lt.s32.totalorder %s555, 31
        %s559 = scalar_select %p558, %s555, 31
        %s560 = smul.addr %s557, 32
        %s561 = sadd.s32 %s559, %s560
        %s562 = smul.addr %s561, 8
        %s563 = scalar_lea.vmem %s3, %s562
        %s564 = smul.u32 8, %s33
        %s565 = smul.u32 8, %s33
        %s566 = smul.u32 8, %s33
        %s567 = smul.u32 8, %s33
        %s569 = smul.u32 %s33, 64
        %v570 = vld [vmem:[%s545] sm:$0xff]
        %v571 = vld [vmem:[%s545 + $0x8] sm:$0xff]
        %v572 = vld [vmem:[%s545 + $0x10] sm:$0xff]
        %v573 = vld [vmem:[%s545 + $0x18] sm:$0xff]
        %v574 = vld [vmem:[%s545 + $0x20] sm:$0xff]
        %v575 = vld [vmem:[%s545 + $0x28] sm:$0xff]
        %v576 = vld [vmem:[%s545 + $0x30] sm:$0xff]
        %v577 = vld [vmem:[%s545 + $0x38] sm:$0xff]
        %v578 = vld [vmem:[%s563] sm:$0xff]
        %v579 = vld [vmem:[%s563 + $0x8] sm:$0xff]
        %v580 = vld [vmem:[%s563 + $0x10] sm:$0xff]
        %v581 = vld [vmem:[%s563 + $0x18] sm:$0xff]
        %v582 = vld [vmem:[%s563 + $0x20] sm:$0xff]
        %v583 = vld [vmem:[%s563 + $0x28] sm:$0xff]
        %v584 = vld [vmem:[%s563 + $0x30] sm:$0xff]
        %v585 = vld [vmem:[%s563 + $0x38] sm:$0xff]
        %v586 = vlaneseq
        %v587 = vshrl.u32 %v586, 7
        %v588 = vadd.s32 %v587, 8
        %v589 = vadd.s32 %v587, 16
        %v590 = vadd.s32 %v587, 24
        %v591 = vadd.s32 %v587, 32
        %v592 = vadd.s32 %v587, 40
        %v593 = vadd.s32 %v587, 48
        %v594 = vadd.s32 %v587, 56
        %p595 = scmp.gt.s32.totalorder %s569, 0
        %v596 = vld [vmem:[%s457 + $0x7] sm:$0x1]
        %s597 = scalar_select %p595, 1, 0
        %v598 = vstv %s597
        %vm599 = vcmp.eq.s32.totalorder %v598, 1
        %v600 = vsel %vm599, %v596, 0.0
        %s601 = sadd.s32 %s569, 64
        %p602 = scmp.lt.s32.totalorder %s601, 256
        %v603 = vld [vmem:[%s466] sm:$0x1]
        %s604 = scalar_select %p602, 1, 0
        %v605 = vstv %s604
        %vm606 = vcmp.eq.s32.totalorder %v605, 1
        %v607 = vsel %vm606, %v603, 0.0
        %vm608 = vcmp.eq.s32.totalorder %v587, 0
        %vm609 = vcmp.eq.s32.totalorder %v588, 0
        %vm610 = vcmp.eq.s32.totalorder %v589, 0
        %vm611 = vcmp.eq.s32.totalorder %v590, 0
        %vm612 = vcmp.eq.s32.totalorder %v591, 0
        %vm613 = vcmp.eq.s32.totalorder %v592, 0
        %vm614 = vcmp.eq.s32.totalorder %v593, 0
        %vm615 = vcmp.eq.s32.totalorder %v594, 0
        %v616 = vrot.slane %v570, 7
        %v617 = vrot.slane %v571, 7
        %v618 = vrot.slane %v572, 7
        %v619 = vrot.slane %v573, 7
        %v620 = vrot.slane %v574, 7
        %v621 = vrot.slane %v575, 7
        %v622 = vrot.slane %v576, 7
        %v623 = vrot.slane %v577, 7
        %vm624 = vcmp.lt.s32.totalorder %v587, 1
        %v625 = vsel %vm624, %v622, %v623
        %v626 = vsel %vm624, %v621, %v622
        %v627 = vsel %vm624, %v620, %v621
        %v628 = vsel %vm624, %v619, %v620
        %v629 = vsel %vm624, %v618, %v619
        %v630 = vsel %vm624, %v617, %v618
        %v631 = vsel %vm624, %v616, %v617
        %v632 = vsel %vm624, %v623, %v616
        %v633 = vsel %vm608, 1, 0
        %v634 = vsel %vm609, 1, 0
        %v635 = vsel %vm610, 1, 0
        %v636 = vsel %vm611, 1, 0
        %v637 = vsel %vm612, 1, 0
        %v638 = vsel %vm613, 1, 0
        %v639 = vsel %vm614, 1, 0
        %v640 = vsel %vm615, 1, 0
        %vm641 = vcmp.eq.s32.totalorder %v633, 1
        %vm642 = vcmp.eq.s32.totalorder %v634, 1
        %vm643 = vcmp.eq.s32.totalorder %v635, 1
        %vm644 = vcmp.eq.s32.totalorder %v636, 1
        %vm645 = vcmp.eq.s32.totalorder %v637, 1
        %vm646 = vcmp.eq.s32.totalorder %v638, 1
        %vm647 = vcmp.eq.s32.totalorder %v639, 1
        %vm648 = vcmp.eq.s32.totalorder %v640, 1
        %v649 = vlaneseq
        %v650 = vshrl.u32 %v649, 7
        %v651 = vsub.s32 0, %v650
        %v652 = vrot.slane %v600, %v651
        %v653 = vsel %vm641, %v652, %v632
        %v654 = vsel %vm642, %v652, %v631
        %v655 = vsel %vm643, %v652, %v630
        %v656 = vsel %vm644, %v652, %v629
        %v657 = vsel %vm645, %v652, %v628
        %v658 = vsel %vm646, %v652, %v627
        %v659 = vsel %vm647, %v652, %v626
        %v660 = vsel %vm648, %v652, %v625
        %vm661 = vcmp.eq.s32.totalorder %v587, 63
        %vm662 = vcmp.eq.s32.totalorder %v588, 63
        %vm663 = vcmp.eq.s32.totalorder %v589, 63
        %vm664 = vcmp.eq.s32.totalorder %v590, 63
        %vm665 = vcmp.eq.s32.totalorder %v591, 63
        %vm666 = vcmp.eq.s32.totalorder %v592, 63
        %vm667 = vcmp.eq.s32.totalorder %v593, 63
        %vm668 = vcmp.eq.s32.totalorder %v594, 63
        %v669 = vrot.slane %v570, 1
        %v670 = vrot.slane %v571, 1
        %v671 = vrot.slane %v572, 1
        %v672 = vrot.slane %v573, 1
        %v673 = vrot.slane %v574, 1
        %v674 = vrot.slane %v575, 1
        %v675 = vrot.slane %v576, 1
        %v676 = vrot.slane %v577, 1
        %vm677 = vcmp.lt.s32.totalorder %v587, 7
        %v678 = vsel %vm677, %v675, %v676
        %v679 = vsel %vm677, %v674, %v675
        %v680 = vsel %vm677, %v673, %v674
        %v681 = vsel %vm677, %v672, %v673
        %v682 = vsel %vm677, %v671, %v672
        %v683 = vsel %vm677, %v670, %v671
        %v684 = vsel %vm677, %v669, %v670
        %v685 = vsel %vm677, %v676, %v669
        %v686 = vsel %vm661, 1, 0
        %v687 = vsel %vm662, 1, 0
        %v688 = vsel %vm663, 1, 0
        %v689 = vsel %vm664, 1, 0
        %v690 = vsel %vm665, 1, 0
        %v691 = vsel %vm666, 1, 0
        %v692 = vsel %vm667, 1, 0
        %v693 = vsel %vm668, 1, 0
        %vm694 = vcmp.eq.s32.totalorder %v686, 1
        %vm695 = vcmp.eq.s32.totalorder %v687, 1
        %vm696 = vcmp.eq.s32.totalorder %v688, 1
        %vm697 = vcmp.eq.s32.totalorder %v689, 1
        %vm698 = vcmp.eq.s32.totalorder %v690, 1
        %vm699 = vcmp.eq.s32.totalorder %v691, 1
        %vm700 = vcmp.eq.s32.totalorder %v692, 1
        %vm701 = vcmp.eq.s32.totalorder %v693, 1
        %v702 = vlaneseq
        %v703 = vshrl.u32 %v702, 7
        %v704 = vsub.s32 0, %v703
        %v705 = vrot.slane %v607, %v704
        %v706 = vsel %vm694, %v705, %v684
        %v707 = vsel %vm695, %v705, %v683
        %v708 = vsel %vm696, %v705, %v682
        %v709 = vsel %vm697, %v705, %v681
        %v710 = vsel %vm698, %v705, %v680
        %v711 = vsel %vm699, %v705, %v679
        %v712 = vsel %vm700, %v705, %v678
        %v713 = vsel %vm701, %v705, %v685
        %v714 = vld [vmem:[%s4] sm:$0x7]
        %v715 = vlaneseq
        %v716 = vshrl.u32 %v715, 7
        %v717 = vsub.s32 0, %v716
        %v718 = vrot.slane %v714, %v717
        %v719 = vmul.f32 %v653, %v718
        %v720 = vmul.f32 %v654, %v718
        %v721 = vmul.f32 %v655, %v718
        %v722 = vmul.f32 %v656, %v718
        %v723 = vmul.f32 %v657, %v718
        %v724 = vmul.f32 %v658, %v718
        %v725 = vmul.f32 %v659, %v718
        %v726 = vmul.f32 %v660, %v718
        %v727 = vlaneseq
        %v728 = vshrl.u32 %v727, 7
        %v729 = vsub.s32 1, %v728
        %v730 = vrot.slane %v714, %v729
        %v731 = vmul.f32 %v570, %v730
        %v732 = vmul.f32 %v571, %v730
        %v733 = vmul.f32 %v572, %v730
        %v734 = vmul.f32 %v573, %v730
        %v735 = vmul.f32 %v574, %v730
        %v736 = vmul.f32 %v575, %v730
        %v737 = vmul.f32 %v576, %v730
        %v738 = vmul.f32 %v577, %v730
        %v739 = vadd.f32 %v719, %v731
        %v740 = vadd.f32 %v720, %v732
        %v741 = vadd.f32 %v721, %v733
        %v742 = vadd.f32 %v722, %v734
        %v743 = vadd.f32 %v723, %v735
        %v744 = vadd.f32 %v724, %v736
        %v745 = vadd.f32 %v725, %v737
        %v746 = vadd.f32 %v726, %v738
        %v747 = vlaneseq
        %v748 = vshrl.u32 %v747, 7
        %v749 = vsub.s32 2, %v748
        %v750 = vrot.slane %v714, %v749
        %v751 = vmul.f32 %v706, %v750
        %v752 = vmul.f32 %v707, %v750
        %v753 = vmul.f32 %v708, %v750
        %v754 = vmul.f32 %v709, %v750
        %v755 = vmul.f32 %v710, %v750
        %v756 = vmul.f32 %v711, %v750
        %v757 = vmul.f32 %v712, %v750
        %v758 = vmul.f32 %v713, %v750
        %v759 = vadd.f32 %v739, %v751
        %v760 = vadd.f32 %v740, %v752
        %v761 = vadd.f32 %v741, %v753
        %v762 = vadd.f32 %v742, %v754
        %v763 = vadd.f32 %v743, %v755
        %v764 = vadd.f32 %v744, %v756
        %v765 = vadd.f32 %v745, %v757
        %v766 = vadd.f32 %v746, %v758
        %768 = vset.pattern.permute.xlu0 0
        %769 = vperm.xlu0 %768, %v578
        %v770 = vpop.permute.xlu0 %769
        %773 = vset.pattern.permute.xlu0 0
        %774 = vperm.xlu0 %773, %v579
        %v775 = vpop.permute.xlu0 %774
        %778 = vset.pattern.permute.xlu0 0
        %779 = vperm.xlu0 %778, %v580
        %v780 = vpop.permute.xlu0 %779
        %783 = vset.pattern.permute.xlu0 0
        %784 = vperm.xlu0 %783, %v581
        %v785 = vpop.permute.xlu0 %784
        %788 = vset.pattern.permute.xlu0 0
        %789 = vperm.xlu0 %788, %v582
        %v790 = vpop.permute.xlu0 %789
        %793 = vset.pattern.permute.xlu0 0
        %794 = vperm.xlu0 %793, %v583
        %v795 = vpop.permute.xlu0 %794
        %798 = vset.pattern.permute.xlu0 0
        %799 = vperm.xlu0 %798, %v584
        %v800 = vpop.permute.xlu0 %799
        %803 = vset.pattern.permute.xlu0 0
        %804 = vperm.xlu0 %803, %v585
        %v805 = vpop.permute.xlu0 %804
        %v807 = vmul.f32 %v759, %v770
        %v808 = vmul.f32 %v760, %v775
        %v809 = vmul.f32 %v761, %v780
        %v810 = vmul.f32 %v762, %v785
        %v811 = vmul.f32 %v763, %v790
        %v812 = vmul.f32 %v764, %v795
        %v813 = vmul.f32 %v765, %v800
        %v814 = vmul.f32 %v766, %v805
        %815 = vadd.xlane.f32.xlu0 %v807
        %v816 = vpop.xlane.xlu0 %815
        %817 = vadd.xlane.f32.xlu0 %v808
        %v818 = vpop.xlane.xlu0 %817
        %819 = vadd.xlane.f32.xlu0 %v809
        %v820 = vpop.xlane.xlu0 %819
        %821 = vadd.xlane.f32.xlu0 %v810
        %v822 = vpop.xlane.xlu0 %821
        %823 = vadd.xlane.f32.xlu0 %v811
        %v824 = vpop.xlane.xlu0 %823
        %825 = vadd.xlane.f32.xlu0 %v812
        %v826 = vpop.xlane.xlu0 %825
        %827 = vadd.xlane.f32.xlu0 %v813
        %v828 = vpop.xlane.xlu0 %827
        %829 = vadd.xlane.f32.xlu0 %v814
        %v830 = vpop.xlane.xlu0 %829
        %v831 = vrcp.pop 128.0
        %v832 = vmul.f32 %v816, %v831
        %v833 = vmul.f32 %v818, %v831
        %v834 = vmul.f32 %v820, %v831
        %v835 = vmul.f32 %v822, %v831
        %v836 = vmul.f32 %v824, %v831
        %v837 = vmul.f32 %v826, %v831
        %v838 = vmul.f32 %v828, %v831
        %v839 = vmul.f32 %v830, %v831
        %v840 = vsub.f32 %v807, %v832
        %v841 = vsub.f32 %v808, %v833
        %v842 = vsub.f32 %v809, %v834
        %v843 = vsub.f32 %v810, %v835
        %v844 = vsub.f32 %v811, %v836
        %v845 = vsub.f32 %v812, %v837
        %v846 = vsub.f32 %v813, %v838
        %v847 = vsub.f32 %v814, %v839
        %v848 = vmul.f32 %v840, %v840
        %v849 = vmul.f32 %v841, %v841
        %v850 = vmul.f32 %v842, %v842
        %v851 = vmul.f32 %v843, %v843
        %v852 = vmul.f32 %v844, %v844
        %v853 = vmul.f32 %v845, %v845
        %v854 = vmul.f32 %v846, %v846
        %v855 = vmul.f32 %v847, %v847
        %856 = vadd.xlane.f32.xlu0 %v848
        %v857 = vpop.xlane.xlu0 %856
        %858 = vadd.xlane.f32.xlu0 %v849
        %v859 = vpop.xlane.xlu0 %858
        %860 = vadd.xlane.f32.xlu0 %v850
        %v861 = vpop.xlane.xlu0 %860
        %862 = vadd.xlane.f32.xlu0 %v851
        %v863 = vpop.xlane.xlu0 %862
        %864 = vadd.xlane.f32.xlu0 %v852
        %v865 = vpop.xlane.xlu0 %864
        %866 = vadd.xlane.f32.xlu0 %v853
        %v867 = vpop.xlane.xlu0 %866
        %868 = vadd.xlane.f32.xlu0 %v854
        %v869 = vpop.xlane.xlu0 %868
        %870 = vadd.xlane.f32.xlu0 %v855
        %v871 = vpop.xlane.xlu0 %870
        %v872 = vmul.f32 %v857, %v831
        %v873 = vmul.f32 %v859, %v831
        %v874 = vmul.f32 %v861, %v831
        %v875 = vmul.f32 %v863, %v831
        %v876 = vmul.f32 %v865, %v831
        %v877 = vmul.f32 %v867, %v831
        %v878 = vmul.f32 %v869, %v831
        %v879 = vmul.f32 %v871, %v831
        %v880 = vld [vmem:[%s5] sm:$0x3]
        %v881 = vadd.f32 %v872, 1e-05
        %v882 = vadd.f32 %v873, 1e-05
        %v883 = vadd.f32 %v874, 1e-05
        %v884 = vadd.f32 %v875, 1e-05
        %v885 = vadd.f32 %v876, 1e-05
        %v886 = vadd.f32 %v877, 1e-05
        %v887 = vadd.f32 %v878, 1e-05
        %v888 = vadd.f32 %v879, 1e-05
        %v889 = vrsqrt.pop %v881
        %v890 = vrsqrt.pop %v882
        %v891 = vrsqrt.pop %v883
        %v892 = vrsqrt.pop %v884
        %v893 = vrsqrt.pop %v885
        %v894 = vrsqrt.pop %v886
        %v895 = vrsqrt.pop %v887
        %v896 = vrsqrt.pop %v888
        %v897 = vmul.f32 %v840, %v889
        %v898 = vmul.f32 %v841, %v890
        %v899 = vmul.f32 %v842, %v891
        %v900 = vmul.f32 %v843, %v892
        %v901 = vmul.f32 %v844, %v893
        %v902 = vmul.f32 %v845, %v894
        %v903 = vmul.f32 %v846, %v895
        %v904 = vmul.f32 %v847, %v896
        %v905 = vlaneseq
        %v906 = vshrl.u32 %v905, 7
        %v907 = vsub.s32 0, %v906
        %v908 = vrot.slane %v880, %v907
        %v909 = vmul.f32 %v897, %v908
        %v910 = vmul.f32 %v898, %v908
        %v911 = vmul.f32 %v899, %v908
        %v912 = vmul.f32 %v900, %v908
        %v913 = vmul.f32 %v901, %v908
        %v914 = vmul.f32 %v902, %v908
        %v915 = vmul.f32 %v903, %v908
        %v916 = vmul.f32 %v904, %v908
        %v917 = vlaneseq
        %v918 = vshrl.u32 %v917, 7
        %v919 = vsub.s32 1, %v918
        %v920 = vrot.slane %v880, %v919
        %v921 = vadd.f32 %v909, %v920
        %v922 = vadd.f32 %v910, %v920
        %v923 = vadd.f32 %v911, %v920
        %v924 = vadd.f32 %v912, %v920
        %v925 = vadd.f32 %v913, %v920
        %v926 = vadd.f32 %v914, %v920
        %v927 = vadd.f32 %v915, %v920
        %v928 = vadd.f32 %v916, %v920
        %v929 = vpack.c.bf16 %v922, %v921
        %v930 = vpack.c.bf16 %v924, %v923
        %v931 = vpack.c.bf16 %v926, %v925
        %v932 = vpack.c.bf16 %v928, %v927
        %v933 = vld [vmem:[#allocation6] sm:$0xf]
        %v934 = vld [vmem:[#allocation6 + $0x4] sm:$0xf]
        %v935 = vld [vmem:[#allocation6 + $0x8] sm:$0xf]
        %v936 = vld [vmem:[#allocation6 + $0xc] sm:$0xf]
        %v937 = vld [vmem:[#allocation6 + $0x10] sm:$0xf]
        %v938 = vld [vmem:[#allocation6 + $0x14] sm:$0xf]
        %v939 = vld [vmem:[#allocation6 + $0x18] sm:$0xf]
        %v940 = vld [vmem:[#allocation6 + $0x1c] sm:$0xf]
        %v941 = vld [vmem:[#allocation6 + $0x20] sm:$0xf]
        %v942 = vld [vmem:[#allocation6 + $0x24] sm:$0xf]
        %v943 = vld [vmem:[#allocation6 + $0x28] sm:$0xf]
        %v944 = vld [vmem:[#allocation6 + $0x2c] sm:$0xf]
        %v945 = vld [vmem:[#allocation6 + $0x30] sm:$0xf]
        %v946 = vld [vmem:[#allocation6 + $0x34] sm:$0xf]
        %v947 = vld [vmem:[#allocation6 + $0x38] sm:$0xf]
        %v948 = vld [vmem:[#allocation6 + $0x3c] sm:$0xf]
        %v949 = vld [vmem:[%s7] sm:$0x1]
        %v951 = vlaneseq
        %v952 = vshrl.u32 %v951, 7
        %v953 = vsub.s32 0, %v952
        %v954 = vrot.slane %v949, %v953
        %v972 = vunpack.c.l.b16 %v933
        %v973 = vunpack.c.l.b16 %v934
        %v974 = vunpack.c.l.b16 %v935
        %v975 = vunpack.c.l.b16 %v936
        %v976 = vunpack.c.l.b16 %v937
        %v977 = vunpack.c.l.b16 %v938
        %v978 = vunpack.c.l.b16 %v939
        %v979 = vunpack.c.l.b16 %v940
        %v980 = vunpack.c.l.b16 %v941
        %v981 = vunpack.c.l.b16 %v942
        %v982 = vunpack.c.l.b16 %v943
        %v983 = vunpack.c.l.b16 %v944
        %v984 = vunpack.c.l.b16 %v945
        %v985 = vunpack.c.l.b16 %v946
        %v986 = vunpack.c.l.b16 %v947
        %v987 = vunpack.c.l.b16 %v948
        %v988 = vpack.c.b16 %v973, %v972
        %v989 = vpack.c.b16 %v975, %v974
        %v990 = vpack.c.b16 %v977, %v976
        %v991 = vpack.c.b16 %v979, %v978
        %v992 = vpack.c.b16 %v981, %v980
        %v993 = vpack.c.b16 %v983, %v982
        %v994 = vpack.c.b16 %v985, %v984
        %v995 = vpack.c.b16 %v987, %v986
        %1004 = vmatprep.subr.bf16.mxu0 0
        %1005 = vmatpush1.bf16.msra.mxu0 %v988
        %1006 = vmatprep.subr.bf16.mxu0 0
        %1007 = vmatpush1.bf16.msra.mxu0 %v989
        %1008 = vmatprep.subr.bf16.mxu0 0
        %1009 = vmatpush1.bf16.msra.mxu0 %v990
        %1010 = vmatprep.subr.bf16.mxu0 0
        %1011 = vmatpush1.bf16.msra.mxu0 %v991
        %1012 = vmatprep.subr.bf16.mxu0 0
        %1013 = vmatpush1.bf16.msra.mxu0 %v992
        %1014 = vmatprep.subr.bf16.mxu0 0
        %1015 = vmatpush1.bf16.msra.mxu0 %v993
        %1016 = vmatprep.subr.bf16.mxu0 0
        %1017 = vmatpush1.bf16.msra.mxu0 %v994
        %1018 = vmatprep.subr.bf16.mxu0 0
        %1019 = vmatpush1.bf16.msra.mxu0 %v995
        %1020 = vmatprep.subr.bf16.mxu0 0
        %1021 = vmatpush1.bf16.msra.mxu0 0
        %1022 = vmatprep.subr.bf16.mxu0 0
        %1023 = vmatpush1.bf16.msra.mxu0 0
        %1024 = vmatprep.subr.bf16.mxu0 0
        %1025 = vmatpush1.bf16.msra.mxu0 0
        %1026 = vmatprep.subr.bf16.mxu0 0
        %1027 = vmatpush1.bf16.msra.mxu0 0
        %1028 = vmatprep.subr.bf16.mxu0 0
        %1029 = vmatpush1.bf16.msra.mxu0 0
        %1030 = vmatprep.subr.bf16.mxu0 0
        %1031 = vmatpush1.bf16.msra.mxu0 0
        %1032 = vmatprep.subr.bf16.mxu0 0
        %1033 = vmatpush1.bf16.msra.mxu0 0
        %1034 = vmatprep.subr.bf16.mxu0 0
        %1035 = vmatpush1.bf16.msra.mxu0 0
        %1036 = vmatprep.mubr.bf16.mxu0 0
        %1037 = vmatmul.mubr.bf16.gmra.mrb[0].mxu0 %v929
        %v1038 = vpop.f32.mrb[0].mxu0
        %v1039 = vadd.f32 %v954, %v1038
        %v1040 = vpop.f32.mrb[0].mxu0
        %v1041 = vpop.f32.mrb[0].mxu0
        %v1042 = vadd.f32 %v954, %v1041
        %v1043 = vpop.f32.mrb[0].mxu0
        %1044 = vmatprep.mubr.bf16.mxu0 0
        %1045 = vmatmul.mubr.bf16.gmra.mrb[0].mxu0 %v930
        %v1046 = vpop.f32.mrb[0].mxu0
        %v1047 = vadd.f32 %v954, %v1046
        %v1048 = vpop.f32.mrb[0].mxu0
        %v1049 = vpop.f32.mrb[0].mxu0
        %v1050 = vadd.f32 %v954, %v1049
        %v1051 = vpop.f32.mrb[0].mxu0
        %1052 = vmatprep.mubr.bf16.mxu0 0
        %1053 = vmatmul.mubr.bf16.gmra.mrb[0].mxu0 %v931
        %v1054 = vpop.f32.mrb[0].mxu0
        %v1055 = vadd.f32 %v954, %v1054
        %v1056 = vpop.f32.mrb[0].mxu0
        %v1057 = vpop.f32.mrb[0].mxu0
        %v1058 = vadd.f32 %v954, %v1057
        %v1059 = vpop.f32.mrb[0].mxu0
        %1060 = vmatprep.mubr.bf16.mxu0 0
        %1061 = vmatmul.mubr.bf16.gmra.mrb[0].mxu0 %v932
        %v1062 = vpop.f32.mrb[0].mxu0
        %v1063 = vadd.f32 %v954, %v1062
        %v1064 = vpop.f32.mrb[0].mxu0
        %v1065 = vpop.f32.mrb[0].mxu0
        %v1066 = vadd.f32 %v954, %v1065
        %v1067 = vpop.f32.mrb[0].mxu0
        %1068 = vdwg.mxu0
        %v1069 = vpack.c.bf16 %v1042, %v1039
        %v1070 = vpack.c.bf16 %v1050, %v1047
        %v1071 = vpack.c.bf16 %v1058, %v1055
        %v1072 = vpack.c.bf16 %v1066, %v1063
        %v1077 = vunpack.c.l.b16 %v1069
        %v1078 = vunpack.c.h.b16 %v1069
        %v1079 = vunpack.c.l.b16 %v1070
        %v1080 = vunpack.c.h.b16 %v1070
        %v1081 = vunpack.c.l.b16 %v1071
        %v1082 = vunpack.c.h.b16 %v1071
        %v1083 = vunpack.c.l.b16 %v1072
        %v1084 = vunpack.c.h.b16 %v1072
        %v1085 = vpack.c.b16 %v1077, %v1077
        %v1086 = vpack.c.b16 %v1078, %v1078
        %v1087 = vpack.c.b16 %v1079, %v1079
        %v1088 = vpack.c.b16 %v1080, %v1080
        %v1089 = vpack.c.b16 %v1081, %v1081
        %v1090 = vpack.c.b16 %v1082, %v1082
        %v1091 = vpack.c.b16 %v1083, %v1083
        %v1092 = vpack.c.b16 %v1084, %v1084
        %vm1101 = vcmask 257024
        %1102 = vst.msk [vmem:[%s524] sm:$0xf] %vm1101, %v1085
        %1103 = vst.msk [vmem:[%s524 + $0x4] sm:$0xf] %vm1101, %v1086
        %1104 = vst.msk [vmem:[%s524 + $0x8] sm:$0xf] %vm1101, %v1087
        %1105 = vst.msk [vmem:[%s524 + $0xc] sm:$0xf] %vm1101, %v1088
        %1106 = vst.msk [vmem:[%s524 + $0x10] sm:$0xf] %vm1101, %v1089
        %1107 = vst.msk [vmem:[%s524 + $0x14] sm:$0xf] %vm1101, %v1090
        %1108 = vst.msk [vmem:[%s524 + $0x18] sm:$0xf] %vm1101, %v1091
        %1109 = vst.msk [vmem:[%s524 + $0x1c] sm:$0xf] %vm1101, %v1092
        %1110 = vrot.lane.b32.xlu0 %v1085, 96
        %v1111 = vpop.permute.xlu0 %1110
        %1112 = vrot.lane.b32.xlu0 %v1086, 96
        %v1113 = vpop.permute.xlu0 %1112
        %1114 = vrot.lane.b32.xlu0 %v1087, 96
        %v1115 = vpop.permute.xlu0 %1114
        %1116 = vrot.lane.b32.xlu0 %v1088, 96
        %v1117 = vpop.permute.xlu0 %1116
        %1118 = vrot.lane.b32.xlu0 %v1089, 96
        %v1119 = vpop.permute.xlu0 %1118
        %1120 = vrot.lane.b32.xlu0 %v1090, 96
        %v1121 = vpop.permute.xlu0 %1120
        %1122 = vrot.lane.b32.xlu0 %v1091, 96
        %v1123 = vpop.permute.xlu0 %1122
        %1124 = vrot.lane.b32.xlu0 %v1092, 96
        %v1125 = vpop.permute.xlu0 %1124
        %s1134 = scalar_lea.vmem %s524, 32 [#allocation7]
        %1135 = vst.msk [vmem:[%s1134] sm:$0xf] %vm1101, %v1111
        %1136 = vst.msk [vmem:[%s1134 + $0x4] sm:$0xf] %vm1101, %v1113
        %1137 = vst.msk [vmem:[%s1134 + $0x8] sm:$0xf] %vm1101, %v1115
        %1138 = vst.msk [vmem:[%s1134 + $0xc] sm:$0xf] %vm1101, %v1117
        %1139 = vst.msk [vmem:[%s1134 + $0x10] sm:$0xf] %vm1101, %v1119
        %1140 = vst.msk [vmem:[%s1134 + $0x14] sm:$0xf] %vm1101, %v1121
        %1141 = vst.msk [vmem:[%s1134 + $0x18] sm:$0xf] %vm1101, %v1123
        %1142 = vst.msk [vmem:[%s1134 + $0x1c] sm:$0xf] %vm1101, %v1125
        %1143 = vrot.lane.b32.xlu0 %v1085, 64
        %v1144 = vpop.permute.xlu0 %1143
        %1145 = vrot.lane.b32.xlu0 %v1086, 64
        %v1146 = vpop.permute.xlu0 %1145
        %1147 = vrot.lane.b32.xlu0 %v1087, 64
        %v1148 = vpop.permute.xlu0 %1147
        %1149 = vrot.lane.b32.xlu0 %v1088, 64
        %v1150 = vpop.permute.xlu0 %1149
        %1151 = vrot.lane.b32.xlu0 %v1089, 64
        %v1152 = vpop.permute.xlu0 %1151
        %1153 = vrot.lane.b32.xlu0 %v1090, 64
        %v1154 = vpop.permute.xlu0 %1153
        %1155 = vrot.lane.b32.xlu0 %v1091, 64
        %v1156 = vpop.permute.xlu0 %1155
        %1157 = vrot.lane.b32.xlu0 %v1092, 64
        %v1158 = vpop.permute.xlu0 %1157
        %s1167 = scalar_lea.vmem %s524, 64 [#allocation7]
        %1168 = vst.msk [vmem:[%s1167] sm:$0xf] %vm1101, %v1144
        %1169 = vst.msk [vmem:[%s1167 + $0x4] sm:$0xf] %vm1101, %v1146
        %1170 = vst.msk [vmem:[%s1167 + $0x8] sm:$0xf] %vm1101, %v1148
        %1171 = vst.msk [vmem:[%s1167 + $0xc] sm:$0xf] %vm1101, %v1150
        %1172 = vst.msk [vmem:[%s1167 + $0x10] sm:$0xf] %vm1101, %v1152
        %1173 = vst.msk [vmem:[%s1167 + $0x14] sm:$0xf] %vm1101, %v1154
        %1174 = vst.msk [vmem:[%s1167 + $0x18] sm:$0xf] %vm1101, %v1156
        %1175 = vst.msk [vmem:[%s1167 + $0x1c] sm:$0xf] %vm1101, %v1158
        %1176 = vrot.lane.b32.xlu0 %v1085, 32
        %v1177 = vpop.permute.xlu0 %1176
        %1178 = vrot.lane.b32.xlu0 %v1086, 32
        %v1179 = vpop.permute.xlu0 %1178
        %1180 = vrot.lane.b32.xlu0 %v1087, 32
        %v1181 = vpop.permute.xlu0 %1180
        %1182 = vrot.lane.b32.xlu0 %v1088, 32
        %v1183 = vpop.permute.xlu0 %1182
        %1184 = vrot.lane.b32.xlu0 %v1089, 32
        %v1185 = vpop.permute.xlu0 %1184
        %1186 = vrot.lane.b32.xlu0 %v1090, 32
        %v1187 = vpop.permute.xlu0 %1186
        %1188 = vrot.lane.b32.xlu0 %v1091, 32
        %v1189 = vpop.permute.xlu0 %1188
        %1190 = vrot.lane.b32.xlu0 %v1092, 32
        %v1191 = vpop.permute.xlu0 %1190
        %s1200 = scalar_lea.vmem %s524, 96 [#allocation7]
        %1201 = vst.msk [vmem:[%s1200] sm:$0xf] %vm1101, %v1177
        %1202 = vst.msk [vmem:[%s1200 + $0x4] sm:$0xf] %vm1101, %v1179
        %1203 = vst.msk [vmem:[%s1200 + $0x8] sm:$0xf] %vm1101, %v1181
        %1204 = vst.msk [vmem:[%s1200 + $0xc] sm:$0xf] %vm1101, %v1183
        %1205 = vst.msk [vmem:[%s1200 + $0x10] sm:$0xf] %vm1101, %v1185
        %1206 = vst.msk [vmem:[%s1200 + $0x14] sm:$0xf] %vm1101, %v1187
        %1207 = vst.msk [vmem:[%s1200 + $0x18] sm:$0xf] %vm1101, %v1189
        %1208 = vst.msk [vmem:[%s1200 + $0x1c] sm:$0xf] %vm1101, %v1191
        %s1209 = scalar_lea.vmem %s4, 4
        %v1210 = vld [vmem:[%s1209] sm:$0x7]
        %v1211 = vlaneseq
        %v1212 = vshrl.u32 %v1211, 7
        %v1213 = vsub.s32 0, %v1212
        %v1214 = vrot.slane %v1210, %v1213
        %v1215 = vmul.f32 %v653, %v1214
        %v1216 = vmul.f32 %v654, %v1214
        %v1217 = vmul.f32 %v655, %v1214
        %v1218 = vmul.f32 %v656, %v1214
        %v1219 = vmul.f32 %v657, %v1214
        %v1220 = vmul.f32 %v658, %v1214
        %v1221 = vmul.f32 %v659, %v1214
        %v1222 = vmul.f32 %v660, %v1214
        %v1223 = vlaneseq
        %v1224 = vshrl.u32 %v1223, 7
        %v1225 = vsub.s32 1, %v1224
        %v1226 = vrot.slane %v1210, %v1225
        %v1227 = vmul.f32 %v570, %v1226
        %v1228 = vmul.f32 %v571, %v1226
        %v1229 = vmul.f32 %v572, %v1226
        %v1230 = vmul.f32 %v573, %v1226
        %v1231 = vmul.f32 %v574, %v1226
        %v1232 = vmul.f32 %v575, %v1226
        %v1233 = vmul.f32 %v576, %v1226
        %v1234 = vmul.f32 %v577, %v1226
        %v1235 = vadd.f32 %v1215, %v1227
        %v1236 = vadd.f32 %v1216, %v1228
        %v1237 = vadd.f32 %v1217, %v1229
        %v1238 = vadd.f32 %v1218, %v1230
        %v1239 = vadd.f32 %v1219, %v1231
        %v1240 = vadd.f32 %v1220, %v1232
        %v1241 = vadd.f32 %v1221, %v1233
        %v1242 = vadd.f32 %v1222, %v1234
        %v1243 = vlaneseq
        %v1244 = vshrl.u32 %v1243, 7
        %v1245 = vsub.s32 2, %v1244
        %v1246 = vrot.slane %v1210, %v1245
        %v1247 = vmul.f32 %v706, %v1246
        %v1248 = vmul.f32 %v707, %v1246
        %v1249 = vmul.f32 %v708, %v1246
        %v1250 = vmul.f32 %v709, %v1246
        %v1251 = vmul.f32 %v710, %v1246
        %v1252 = vmul.f32 %v711, %v1246
        %v1253 = vmul.f32 %v712, %v1246
        %v1254 = vmul.f32 %v713, %v1246
        %v1255 = vadd.f32 %v1235, %v1247
        %v1256 = vadd.f32 %v1236, %v1248
        %v1257 = vadd.f32 %v1237, %v1249
        %v1258 = vadd.f32 %v1238, %v1250
        %v1259 = vadd.f32 %v1239, %v1251
        %v1260 = vadd.f32 %v1240, %v1252
        %v1261 = vadd.f32 %v1241, %v1253
        %v1262 = vadd.f32 %v1242, %v1254
        %v1263 = vmul.f32 %v1255, %v770
        %v1264 = vmul.f32 %v1256, %v775
        %v1265 = vmul.f32 %v1257, %v780
        %v1266 = vmul.f32 %v1258, %v785
        %v1267 = vmul.f32 %v1259, %v790
        %v1268 = vmul.f32 %v1260, %v795
        %v1269 = vmul.f32 %v1261, %v800
        %v1270 = vmul.f32 %v1262, %v805
        %1271 = vadd.xlane.f32.xlu0 %v1263
        %v1272 = vpop.xlane.xlu0 %1271
        %1273 = vadd.xlane.f32.xlu0 %v1264
        %v1274 = vpop.xlane.xlu0 %1273
        %1275 = vadd.xlane.f32.xlu0 %v1265
        %v1276 = vpop.xlane.xlu0 %1275
        %1277 = vadd.xlane.f32.xlu0 %v1266
        %v1278 = vpop.xlane.xlu0 %1277
        %1279 = vadd.xlane.f32.xlu0 %v1267
        %v1280 = vpop.xlane.xlu0 %1279
        %1281 = vadd.xlane.f32.xlu0 %v1268
        %v1282 = vpop.xlane.xlu0 %1281
        %1283 = vadd.xlane.f32.xlu0 %v1269
        %v1284 = vpop.xlane.xlu0 %1283
        %1285 = vadd.xlane.f32.xlu0 %v1270
        %v1286 = vpop.xlane.xlu0 %1285
        %v1287 = vmul.f32 %v1272, %v831
        %v1288 = vmul.f32 %v1274, %v831
        %v1289 = vmul.f32 %v1276, %v831
        %v1290 = vmul.f32 %v1278, %v831
        %v1291 = vmul.f32 %v1280, %v831
        %v1292 = vmul.f32 %v1282, %v831
        %v1293 = vmul.f32 %v1284, %v831
        %v1294 = vmul.f32 %v1286, %v831
        %v1295 = vsub.f32 %v1263, %v1287
        %v1296 = vsub.f32 %v1264, %v1288
        %v1297 = vsub.f32 %v1265, %v1289
        %v1298 = vsub.f32 %v1266, %v1290
        %v1299 = vsub.f32 %v1267, %v1291
        %v1300 = vsub.f32 %v1268, %v1292
        %v1301 = vsub.f32 %v1269, %v1293
        %v1302 = vsub.f32 %v1270, %v1294
        %v1303 = vmul.f32 %v1295, %v1295
        %v1304 = vmul.f32 %v1296, %v1296
        %v1305 = vmul.f32 %v1297, %v1297
        %v1306 = vmul.f32 %v1298, %v1298
        %v1307 = vmul.f32 %v1299, %v1299
        %v1308 = vmul.f32 %v1300, %v1300
        %v1309 = vmul.f32 %v1301, %v1301
        %v1310 = vmul.f32 %v1302, %v1302
        %1311 = vadd.xlane.f32.xlu0 %v1303
        %v1312 = vpop.xlane.xlu0 %1311
        %1313 = vadd.xlane.f32.xlu0 %v1304
        %v1314 = vpop.xlane.xlu0 %1313
        %1315 = vadd.xlane.f32.xlu0 %v1305
        %v1316 = vpop.xlane.xlu0 %1315
        %1317 = vadd.xlane.f32.xlu0 %v1306
        %v1318 = vpop.xlane.xlu0 %1317
        %1319 = vadd.xlane.f32.xlu0 %v1307
        %v1320 = vpop.xlane.xlu0 %1319
        %1321 = vadd.xlane.f32.xlu0 %v1308
        %v1322 = vpop.xlane.xlu0 %1321
        %1323 = vadd.xlane.f32.xlu0 %v1309
        %v1324 = vpop.xlane.xlu0 %1323
        %1325 = vadd.xlane.f32.xlu0 %v1310
        %v1326 = vpop.xlane.xlu0 %1325
        %v1327 = vmul.f32 %v1312, %v831
        %v1328 = vmul.f32 %v1314, %v831
        %v1329 = vmul.f32 %v1316, %v831
        %v1330 = vmul.f32 %v1318, %v831
        %v1331 = vmul.f32 %v1320, %v831
        %v1332 = vmul.f32 %v1322, %v831
        %v1333 = vmul.f32 %v1324, %v831
        %v1334 = vmul.f32 %v1326, %v831
        %s1335 = scalar_lea.vmem %s5, 2
        %v1336 = vld [vmem:[%s1335] sm:$0x3]
        %v1337 = vadd.f32 %v1327, 1e-05
        %v1338 = vadd.f32 %v1328, 1e-05
        %v1339 = vadd.f32 %v1329, 1e-05
        %v1340 = vadd.f32 %v1330, 1e-05
        %v1341 = vadd.f32 %v1331, 1e-05
        %v1342 = vadd.f32 %v1332, 1e-05
        %v1343 = vadd.f32 %v1333, 1e-05
        %v1344 = vadd.f32 %v1334, 1e-05
        %v1345 = vrsqrt.pop %v1337
        %v1346 = vrsqrt.pop %v1338
        %v1347 = vrsqrt.pop %v1339
        %v1348 = vrsqrt.pop %v1340
        %v1349 = vrsqrt.pop %v1341
        %v1350 = vrsqrt.pop %v1342
        %v1351 = vrsqrt.pop %v1343
        %v1352 = vrsqrt.pop %v1344
        %v1353 = vmul.f32 %v1295, %v1345
        %v1354 = vmul.f32 %v1296, %v1346
        %v1355 = vmul.f32 %v1297, %v1347
        %v1356 = vmul.f32 %v1298, %v1348
        %v1357 = vmul.f32 %v1299, %v1349
        %v1358 = vmul.f32 %v1300, %v1350
        %v1359 = vmul.f32 %v1301, %v1351
        %v1360 = vmul.f32 %v1302, %v1352
        %v1361 = vlaneseq
        %v1362 = vshrl.u32 %v1361, 7
        %v1363 = vsub.s32 0, %v1362
        %v1364 = vrot.slane %v1336, %v1363
        %v1365 = vmul.f32 %v1353, %v1364
        %v1366 = vmul.f32 %v1354, %v1364
        %v1367 = vmul.f32 %v1355, %v1364
        %v1368 = vmul.f32 %v1356, %v1364
        %v1369 = vmul.f32 %v1357, %v1364
        %v1370 = vmul.f32 %v1358, %v1364
        %v1371 = vmul.f32 %v1359, %v1364
        %v1372 = vmul.f32 %v1360, %v1364
        %v1373 = vlaneseq
        %v1374 = vshrl.u32 %v1373, 7
        %v1375 = vsub.s32 1, %v1374
        %v1376 = vrot.slane %v1336, %v1375
        %v1377 = vadd.f32 %v1365, %v1376
        %v1378 = vadd.f32 %v1366, %v1376
        %v1379 = vadd.f32 %v1367, %v1376
        %v1380 = vadd.f32 %v1368, %v1376
        %v1381 = vadd.f32 %v1369, %v1376
        %v1382 = vadd.f32 %v1370, %v1376
        %v1383 = vadd.f32 %v1371, %v1376
        %v1384 = vadd.f32 %v1372, %v1376
        %v1385 = vpack.c.bf16 %v1378, %v1377
        %v1386 = vpack.c.bf16 %v1380, %v1379
        %v1387 = vpack.c.bf16 %v1382, %v1381
        %v1388 = vpack.c.bf16 %v1384, %v1383
        %s1389 = scalar_lea.vmem [#allocation6], 64
        %v1390 = vld [vmem:[%s1389] sm:$0xf]
        %v1391 = vld [vmem:[%s1389 + $0x4] sm:$0xf]
        %v1392 = vld [vmem:[%s1389 + $0x8] sm:$0xf]
        %v1393 = vld [vmem:[%s1389 + $0xc] sm:$0xf]
        %v1394 = vld [vmem:[%s1389 + $0x10] sm:$0xf]
        %v1395 = vld [vmem:[%s1389 + $0x14] sm:$0xf]
        %v1396 = vld [vmem:[%s1389 + $0x18] sm:$0xf]
        %v1397 = vld [vmem:[%s1389 + $0x1c] sm:$0xf]
        %v1398 = vld [vmem:[%s1389 + $0x20] sm:$0xf]
        %v1399 = vld [vmem:[%s1389 + $0x24] sm:$0xf]
        %v1400 = vld [vmem:[%s1389 + $0x28] sm:$0xf]
        %v1401 = vld [vmem:[%s1389 + $0x2c] sm:$0xf]
        %v1402 = vld [vmem:[%s1389 + $0x30] sm:$0xf]
        %v1403 = vld [vmem:[%s1389 + $0x34] sm:$0xf]
        %v1404 = vld [vmem:[%s1389 + $0x38] sm:$0xf]
        %v1405 = vld [vmem:[%s1389 + $0x3c] sm:$0xf]
        %s1406 = scalar_lea.vmem %s7, 1
        %v1407 = vld [vmem:[%s1406] sm:$0x1]
        %v1409 = vlaneseq
        %v1410 = vshrl.u32 %v1409, 7
        %v1411 = vsub.s32 0, %v1410
        %v1412 = vrot.slane %v1407, %v1411
        %v1430 = vunpack.c.l.b16 %v1390
        %v1431 = vunpack.c.l.b16 %v1391
        %v1432 = vunpack.c.l.b16 %v1392
        %v1433 = vunpack.c.l.b16 %v1393
        %v1434 = vunpack.c.l.b16 %v1394
        %v1435 = vunpack.c.l.b16 %v1395
        %v1436 = vunpack.c.l.b16 %v1396
        %v1437 = vunpack.c.l.b16 %v1397
        %v1438 = vunpack.c.l.b16 %v1398
        %v1439 = vunpack.c.l.b16 %v1399
        %v1440 = vunpack.c.l.b16 %v1400
        %v1441 = vunpack.c.l.b16 %v1401
        %v1442 = vunpack.c.l.b16 %v1402
        %v1443 = vunpack.c.l.b16 %v1403
        %v1444 = vunpack.c.l.b16 %v1404
        %v1445 = vunpack.c.l.b16 %v1405
        %v1446 = vpack.c.b16 %v1431, %v1430
        %v1447 = vpack.c.b16 %v1433, %v1432
        %v1448 = vpack.c.b16 %v1435, %v1434
        %v1449 = vpack.c.b16 %v1437, %v1436
        %v1450 = vpack.c.b16 %v1439, %v1438
        %v1451 = vpack.c.b16 %v1441, %v1440
        %v1452 = vpack.c.b16 %v1443, %v1442
        %v1453 = vpack.c.b16 %v1445, %v1444
        %1462 = vmatprep.subr.bf16.mxu0 0
        %1463 = vmatpush1.bf16.msra.mxu0 %v1446
        %1464 = vmatprep.subr.bf16.mxu0 0
        %1465 = vmatpush1.bf16.msra.mxu0 %v1447
        %1466 = vmatprep.subr.bf16.mxu0 0
        %1467 = vmatpush1.bf16.msra.mxu0 %v1448
        %1468 = vmatprep.subr.bf16.mxu0 0
        %1469 = vmatpush1.bf16.msra.mxu0 %v1449
        %1470 = vmatprep.subr.bf16.mxu0 0
        %1471 = vmatpush1.bf16.msra.mxu0 %v1450
        %1472 = vmatprep.subr.bf16.mxu0 0
        %1473 = vmatpush1.bf16.msra.mxu0 %v1451
        %1474 = vmatprep.subr.bf16.mxu0 0
        %1475 = vmatpush1.bf16.msra.mxu0 %v1452
        %1476 = vmatprep.subr.bf16.mxu0 0
        %1477 = vmatpush1.bf16.msra.mxu0 %v1453
        %1478 = vmatprep.subr.bf16.mxu0 0
        %1479 = vmatpush1.bf16.msra.mxu0 0
        %1480 = vmatprep.subr.bf16.mxu0 0
        %1481 = vmatpush1.bf16.msra.mxu0 0
        %1482 = vmatprep.subr.bf16.mxu0 0
        %1483 = vmatpush1.bf16.msra.mxu0 0
        %1484 = vmatprep.subr.bf16.mxu0 0
        %1485 = vmatpush1.bf16.msra.mxu0 0
        %1486 = vmatprep.subr.bf16.mxu0 0
        %1487 = vmatpush1.bf16.msra.mxu0 0
        %1488 = vmatprep.subr.bf16.mxu0 0
        %1489 = vmatpush1.bf16.msra.mxu0 0
        %1490 = vmatprep.subr.bf16.mxu0 0
        %1491 = vmatpush1.bf16.msra.mxu0 0
        %1492 = vmatprep.subr.bf16.mxu0 0
        %1493 = vmatpush1.bf16.msra.mxu0 0
        %1494 = vmatprep.mubr.bf16.mxu0 0
        %1495 = vmatmul.mubr.bf16.gmra.mrb[0].mxu0 %v1385
        %v1496 = vpop.f32.mrb[0].mxu0
        %v1497 = vadd.f32 %v1412, %v1496
        %v1498 = vpop.f32.mrb[0].mxu0
        %v1499 = vpop.f32.mrb[0].mxu0
        %v1500 = vadd.f32 %v1412, %v1499
        %v1501 = vpop.f32.mrb[0].mxu0
        %1502 = vmatprep.mubr.bf16.mxu0 0
        %1503 = vmatmul.mubr.bf16.gmra.mrb[0].mxu0 %v1386
        %v1504 = vpop.f32.mrb[0].mxu0
        %v1505 = vadd.f32 %v1412, %v1504
        %v1506 = vpop.f32.mrb[0].mxu0
        %v1507 = vpop.f32.mrb[0].mxu0
        %v1508 = vadd.f32 %v1412, %v1507
        %v1509 = vpop.f32.mrb[0].mxu0
        %1510 = vmatprep.mubr.bf16.mxu0 0
        %1511 = vmatmul.mubr.bf16.gmra.mrb[0].mxu0 %v1387
        %v1512 = vpop.f32.mrb[0].mxu0
        %v1513 = vadd.f32 %v1412, %v1512
        %v1514 = vpop.f32.mrb[0].mxu0
        %v1515 = vpop.f32.mrb[0].mxu0
        %v1516 = vadd.f32 %v1412, %v1515
        %v1517 = vpop.f32.mrb[0].mxu0
        %1518 = vmatprep.mubr.bf16.mxu0 0
        %1519 = vmatmul.mubr.bf16.gmra.mrb[0].mxu0 %v1388
        %v1520 = vpop.f32.mrb[0].mxu0
        %v1521 = vadd.f32 %v1412, %v1520
        %v1522 = vpop.f32.mrb[0].mxu0
        %v1523 = vpop.f32.mrb[0].mxu0
        %v1524 = vadd.f32 %v1412, %v1523
        %v1525 = vpop.f32.mrb[0].mxu0
        %1526 = vdwg.mxu0
        %v1527 = vpack.c.bf16 %v1500, %v1497
        %v1528 = vpack.c.bf16 %v1508, %v1505
        %v1529 = vpack.c.bf16 %v1516, %v1513
        %v1530 = vpack.c.bf16 %v1524, %v1521
        %v1535 = vunpack.c.l.b16 %v1527
        %v1536 = vunpack.c.h.b16 %v1527
        %v1537 = vunpack.c.l.b16 %v1528
        %v1538 = vunpack.c.h.b16 %v1528
        %v1539 = vunpack.c.l.b16 %v1529
        %v1540 = vunpack.c.h.b16 %v1529
        %v1541 = vunpack.c.l.b16 %v1530
        %v1542 = vunpack.c.h.b16 %v1530
        %v1543 = vpack.c.b16 %v1535, %v1535
        %v1544 = vpack.c.b16 %v1536, %v1536
        %v1545 = vpack.c.b16 %v1537, %v1537
        %v1546 = vpack.c.b16 %v1538, %v1538
        %v1547 = vpack.c.b16 %v1539, %v1539
        %v1548 = vpack.c.b16 %v1540, %v1540
        %v1549 = vpack.c.b16 %v1541, %v1541
        %v1550 = vpack.c.b16 %v1542, %v1542
        %1559 = vst.msk [vmem:[%s530] sm:$0xf] %vm1101, %v1543
        %1560 = vst.msk [vmem:[%s530 + $0x4] sm:$0xf] %vm1101, %v1544
        %1561 = vst.msk [vmem:[%s530 + $0x8] sm:$0xf] %vm1101, %v1545
        %1562 = vst.msk [vmem:[%s530 + $0xc] sm:$0xf] %vm1101, %v1546
        %1563 = vst.msk [vmem:[%s530 + $0x10] sm:$0xf] %vm1101, %v1547
        %1564 = vst.msk [vmem:[%s530 + $0x14] sm:$0xf] %vm1101, %v1548
        %1565 = vst.msk [vmem:[%s530 + $0x18] sm:$0xf] %vm1101, %v1549
        %1566 = vst.msk [vmem:[%s530 + $0x1c] sm:$0xf] %vm1101, %v1550
        %1567 = vrot.lane.b32.xlu0 %v1543, 96
        %v1568 = vpop.permute.xlu0 %1567
        %1569 = vrot.lane.b32.xlu0 %v1544, 96
        %v1570 = vpop.permute.xlu0 %1569
        %1571 = vrot.lane.b32.xlu0 %v1545, 96
        %v1572 = vpop.permute.xlu0 %1571
        %1573 = vrot.lane.b32.xlu0 %v1546, 96
        %v1574 = vpop.permute.xlu0 %1573
        %1575 = vrot.lane.b32.xlu0 %v1547, 96
        %v1576 = vpop.permute.xlu0 %1575
        %1577 = vrot.lane.b32.xlu0 %v1548, 96
        %v1578 = vpop.permute.xlu0 %1577
        %1579 = vrot.lane.b32.xlu0 %v1549, 96
        %v1580 = vpop.permute.xlu0 %1579
        %1581 = vrot.lane.b32.xlu0 %v1550, 96
        %v1582 = vpop.permute.xlu0 %1581
        %s1591 = scalar_lea.vmem %s530, 32 [#allocation8]
        %1592 = vst.msk [vmem:[%s1591] sm:$0xf] %vm1101, %v1568
        %1593 = vst.msk [vmem:[%s1591 + $0x4] sm:$0xf] %vm1101, %v1570
        %1594 = vst.msk [vmem:[%s1591 + $0x8] sm:$0xf] %vm1101, %v1572
        %1595 = vst.msk [vmem:[%s1591 + $0xc] sm:$0xf] %vm1101, %v1574
        %1596 = vst.msk [vmem:[%s1591 + $0x10] sm:$0xf] %vm1101, %v1576
        %1597 = vst.msk [vmem:[%s1591 + $0x14] sm:$0xf] %vm1101, %v1578
        %1598 = vst.msk [vmem:[%s1591 + $0x18] sm:$0xf] %vm1101, %v1580
        %1599 = vst.msk [vmem:[%s1591 + $0x1c] sm:$0xf] %vm1101, %v1582
        %1600 = vrot.lane.b32.xlu0 %v1543, 64
        %v1601 = vpop.permute.xlu0 %1600
        %1602 = vrot.lane.b32.xlu0 %v1544, 64
        %v1603 = vpop.permute.xlu0 %1602
        %1604 = vrot.lane.b32.xlu0 %v1545, 64
        %v1605 = vpop.permute.xlu0 %1604
        %1606 = vrot.lane.b32.xlu0 %v1546, 64
        %v1607 = vpop.permute.xlu0 %1606
        %1608 = vrot.lane.b32.xlu0 %v1547, 64
        %v1609 = vpop.permute.xlu0 %1608
        %1610 = vrot.lane.b32.xlu0 %v1548, 64
        %v1611 = vpop.permute.xlu0 %1610
        %1612 = vrot.lane.b32.xlu0 %v1549, 64
        %v1613 = vpop.permute.xlu0 %1612
        %1614 = vrot.lane.b32.xlu0 %v1550, 64
        %v1615 = vpop.permute.xlu0 %1614
        %s1624 = scalar_lea.vmem %s530, 64 [#allocation8]
        %1625 = vst.msk [vmem:[%s1624] sm:$0xf] %vm1101, %v1601
        %1626 = vst.msk [vmem:[%s1624 + $0x4] sm:$0xf] %vm1101, %v1603
        %1627 = vst.msk [vmem:[%s1624 + $0x8] sm:$0xf] %vm1101, %v1605
        %1628 = vst.msk [vmem:[%s1624 + $0xc] sm:$0xf] %vm1101, %v1607
        %1629 = vst.msk [vmem:[%s1624 + $0x10] sm:$0xf] %vm1101, %v1609
        %1630 = vst.msk [vmem:[%s1624 + $0x14] sm:$0xf] %vm1101, %v1611
        %1631 = vst.msk [vmem:[%s1624 + $0x18] sm:$0xf] %vm1101, %v1613
        %1632 = vst.msk [vmem:[%s1624 + $0x1c] sm:$0xf] %vm1101, %v1615
        %1633 = vrot.lane.b32.xlu0 %v1543, 32
        %v1634 = vpop.permute.xlu0 %1633
        %1635 = vrot.lane.b32.xlu0 %v1544, 32
        %v1636 = vpop.permute.xlu0 %1635
        %1637 = vrot.lane.b32.xlu0 %v1545, 32
        %v1638 = vpop.permute.xlu0 %1637
        %1639 = vrot.lane.b32.xlu0 %v1546, 32
        %v1640 = vpop.permute.xlu0 %1639
        %1641 = vrot.lane.b32.xlu0 %v1547, 32
        %v1642 = vpop.permute.xlu0 %1641
        %1643 = vrot.lane.b32.xlu0 %v1548, 32
        %v1644 = vpop.permute.xlu0 %1643
        %1645 = vrot.lane.b32.xlu0 %v1549, 32
        %v1646 = vpop.permute.xlu0 %1645
        %1647 = vrot.lane.b32.xlu0 %v1550, 32
        %v1648 = vpop.permute.xlu0 %1647
        %s1657 = scalar_lea.vmem %s530, 96 [#allocation8]
        %1658 = vst.msk [vmem:[%s1657] sm:$0xf] %vm1101, %v1634
        %1659 = vst.msk [vmem:[%s1657 + $0x4] sm:$0xf] %vm1101, %v1636
        %1660 = vst.msk [vmem:[%s1657 + $0x8] sm:$0xf] %vm1101, %v1638
        %1661 = vst.msk [vmem:[%s1657 + $0xc] sm:$0xf] %vm1101, %v1640
        %1662 = vst.msk [vmem:[%s1657 + $0x10] sm:$0xf] %vm1101, %v1642
        %1663 = vst.msk [vmem:[%s1657 + $0x14] sm:$0xf] %vm1101, %v1644
        %1664 = vst.msk [vmem:[%s1657 + $0x18] sm:$0xf] %vm1101, %v1646
        %1665 = vst.msk [vmem:[%s1657 + $0x1c] sm:$0xf] %vm1101, %v1648
        %s1666 = scalar_lea.vmem %s4, 8
        %v1667 = vld [vmem:[%s1666] sm:$0x7]
        %v1668 = vlaneseq
        %v1669 = vshrl.u32 %v1668, 7
        %v1670 = vsub.s32 0, %v1669
        %v1671 = vrot.slane %v1667, %v1670
        %v1672 = vmul.f32 %v653, %v1671
        %v1673 = vmul.f32 %v654, %v1671
        %v1674 = vmul.f32 %v655, %v1671
        %v1675 = vmul.f32 %v656, %v1671
        %v1676 = vmul.f32 %v657, %v1671
        %v1677 = vmul.f32 %v658, %v1671
        %v1678 = vmul.f32 %v659, %v1671
        %v1679 = vmul.f32 %v660, %v1671
        %v1680 = vlaneseq
        %v1681 = vshrl.u32 %v1680, 7
        %v1682 = vsub.s32 1, %v1681
        %v1683 = vrot.slane %v1667, %v1682
        %v1684 = vmul.f32 %v570, %v1683
        %v1685 = vmul.f32 %v571, %v1683
        %v1686 = vmul.f32 %v572, %v1683
        %v1687 = vmul.f32 %v573, %v1683
        %v1688 = vmul.f32 %v574, %v1683
        %v1689 = vmul.f32 %v575, %v1683
        %v1690 = vmul.f32 %v576, %v1683
        %v1691 = vmul.f32 %v577, %v1683
        %v1692 = vadd.f32 %v1672, %v1684
        %v1693 = vadd.f32 %v1673, %v1685
        %v1694 = vadd.f32 %v1674, %v1686
        %v1695 = vadd.f32 %v1675, %v1687
        %v1696 = vadd.f32 %v1676, %v1688
        %v1697 = vadd.f32 %v1677, %v1689
        %v1698 = vadd.f32 %v1678, %v1690
        %v1699 = vadd.f32 %v1679, %v1691
        %v1700 = vlaneseq
        %v1701 = vshrl.u32 %v1700, 7
        %v1702 = vsub.s32 2, %v1701
        %v1703 = vrot.slane %v1667, %v1702
        %v1704 = vmul.f32 %v706, %v1703
        %v1705 = vmul.f32 %v707, %v1703
        %v1706 = vmul.f32 %v708, %v1703
        %v1707 = vmul.f32 %v709, %v1703
        %v1708 = vmul.f32 %v710, %v1703
        %v1709 = vmul.f32 %v711, %v1703
        %v1710 = vmul.f32 %v712, %v1703
        %v1711 = vmul.f32 %v713, %v1703
        %v1712 = vadd.f32 %v1692, %v1704
        %v1713 = vadd.f32 %v1693, %v1705
        %v1714 = vadd.f32 %v1694, %v1706
        %v1715 = vadd.f32 %v1695, %v1707
        %v1716 = vadd.f32 %v1696, %v1708
        %v1717 = vadd.f32 %v1697, %v1709
        %v1718 = vadd.f32 %v1698, %v1710
        %v1719 = vadd.f32 %v1699, %v1711
        %v1720 = vmul.f32 %v1712, %v770
        %v1721 = vmul.f32 %v1713, %v775
        %v1722 = vmul.f32 %v1714, %v780
        %v1723 = vmul.f32 %v1715, %v785
        %v1724 = vmul.f32 %v1716, %v790
        %v1725 = vmul.f32 %v1717, %v795
        %v1726 = vmul.f32 %v1718, %v800
        %v1727 = vmul.f32 %v1719, %v805
        %1728 = vadd.xlane.f32.xlu0 %v1720
        %v1729 = vpop.xlane.xlu0 %1728
        %1730 = vadd.xlane.f32.xlu0 %v1721
        %v1731 = vpop.xlane.xlu0 %1730
        %1732 = vadd.xlane.f32.xlu0 %v1722
        %v1733 = vpop.xlane.xlu0 %1732
        %1734 = vadd.xlane.f32.xlu0 %v1723
        %v1735 = vpop.xlane.xlu0 %1734
        %1736 = vadd.xlane.f32.xlu0 %v1724
        %v1737 = vpop.xlane.xlu0 %1736
        %1738 = vadd.xlane.f32.xlu0 %v1725
        %v1739 = vpop.xlane.xlu0 %1738
        %1740 = vadd.xlane.f32.xlu0 %v1726
        %v1741 = vpop.xlane.xlu0 %1740
        %1742 = vadd.xlane.f32.xlu0 %v1727
        %v1743 = vpop.xlane.xlu0 %1742
        %v1744 = vmul.f32 %v1729, %v831
        %v1745 = vmul.f32 %v1731, %v831
        %v1746 = vmul.f32 %v1733, %v831
        %v1747 = vmul.f32 %v1735, %v831
        %v1748 = vmul.f32 %v1737, %v831
        %v1749 = vmul.f32 %v1739, %v831
        %v1750 = vmul.f32 %v1741, %v831
        %v1751 = vmul.f32 %v1743, %v831
        %v1752 = vsub.f32 %v1720, %v1744
        %v1753 = vsub.f32 %v1721, %v1745
        %v1754 = vsub.f32 %v1722, %v1746
        %v1755 = vsub.f32 %v1723, %v1747
        %v1756 = vsub.f32 %v1724, %v1748
        %v1757 = vsub.f32 %v1725, %v1749
        %v1758 = vsub.f32 %v1726, %v1750
        %v1759 = vsub.f32 %v1727, %v1751
        %v1760 = vmul.f32 %v1752, %v1752
        %v1761 = vmul.f32 %v1753, %v1753
        %v1762 = vmul.f32 %v1754, %v1754
        %v1763 = vmul.f32 %v1755, %v1755
        %v1764 = vmul.f32 %v1756, %v1756
        %v1765 = vmul.f32 %v1757, %v1757
        %v1766 = vmul.f32 %v1758, %v1758
        %v1767 = vmul.f32 %v1759, %v1759
        %1768 = vadd.xlane.f32.xlu0 %v1760
        %v1769 = vpop.xlane.xlu0 %1768
        %1770 = vadd.xlane.f32.xlu0 %v1761
        %v1771 = vpop.xlane.xlu0 %1770
        %1772 = vadd.xlane.f32.xlu0 %v1762
        %v1773 = vpop.xlane.xlu0 %1772
        %1774 = vadd.xlane.f32.xlu0 %v1763
        %v1775 = vpop.xlane.xlu0 %1774
        %1776 = vadd.xlane.f32.xlu0 %v1764
        %v1777 = vpop.xlane.xlu0 %1776
        %1778 = vadd.xlane.f32.xlu0 %v1765
        %v1779 = vpop.xlane.xlu0 %1778
        %1780 = vadd.xlane.f32.xlu0 %v1766
        %v1781 = vpop.xlane.xlu0 %1780
        %1782 = vadd.xlane.f32.xlu0 %v1767
        %v1783 = vpop.xlane.xlu0 %1782
        %v1784 = vmul.f32 %v1769, %v831
        %v1785 = vmul.f32 %v1771, %v831
        %v1786 = vmul.f32 %v1773, %v831
        %v1787 = vmul.f32 %v1775, %v831
        %v1788 = vmul.f32 %v1777, %v831
        %v1789 = vmul.f32 %v1779, %v831
        %v1790 = vmul.f32 %v1781, %v831
        %v1791 = vmul.f32 %v1783, %v831
        %s1792 = scalar_lea.vmem %s5, 4
        %v1793 = vld [vmem:[%s1792] sm:$0x3]
        %v1794 = vadd.f32 %v1784, 1e-05
        %v1795 = vadd.f32 %v1785, 1e-05
        %v1796 = vadd.f32 %v1786, 1e-05
        %v1797 = vadd.f32 %v1787, 1e-05
        %v1798 = vadd.f32 %v1788, 1e-05
        %v1799 = vadd.f32 %v1789, 1e-05
        %v1800 = vadd.f32 %v1790, 1e-05
        %v1801 = vadd.f32 %v1791, 1e-05
        %v1802 = vrsqrt.pop %v1794
        %v1803 = vrsqrt.pop %v1795
        %v1804 = vrsqrt.pop %v1796
        %v1805 = vrsqrt.pop %v1797
        %v1806 = vrsqrt.pop %v1798
        %v1807 = vrsqrt.pop %v1799
        %v1808 = vrsqrt.pop %v1800
        %v1809 = vrsqrt.pop %v1801
        %v1810 = vmul.f32 %v1752, %v1802
        %v1811 = vmul.f32 %v1753, %v1803
        %v1812 = vmul.f32 %v1754, %v1804
        %v1813 = vmul.f32 %v1755, %v1805
        %v1814 = vmul.f32 %v1756, %v1806
        %v1815 = vmul.f32 %v1757, %v1807
        %v1816 = vmul.f32 %v1758, %v1808
        %v1817 = vmul.f32 %v1759, %v1809
        %v1818 = vlaneseq
        %v1819 = vshrl.u32 %v1818, 7
        %v1820 = vsub.s32 0, %v1819
        %v1821 = vrot.slane %v1793, %v1820
        %v1822 = vmul.f32 %v1810, %v1821
        %v1823 = vmul.f32 %v1811, %v1821
        %v1824 = vmul.f32 %v1812, %v1821
        %v1825 = vmul.f32 %v1813, %v1821
        %v1826 = vmul.f32 %v1814, %v1821
        %v1827 = vmul.f32 %v1815, %v1821
        %v1828 = vmul.f32 %v1816, %v1821
        %v1829 = vmul.f32 %v1817, %v1821
        %v1830 = vlaneseq
        %v1831 = vshrl.u32 %v1830, 7
        %v1832 = vsub.s32 1, %v1831
        %v1833 = vrot.slane %v1793, %v1832
        %v1834 = vadd.f32 %v1822, %v1833
        %v1835 = vadd.f32 %v1823, %v1833
        %v1836 = vadd.f32 %v1824, %v1833
        %v1837 = vadd.f32 %v1825, %v1833
        %v1838 = vadd.f32 %v1826, %v1833
        %v1839 = vadd.f32 %v1827, %v1833
        %v1840 = vadd.f32 %v1828, %v1833
        %v1841 = vadd.f32 %v1829, %v1833
        %v1842 = vpack.c.bf16 %v1835, %v1834
        %v1843 = vpack.c.bf16 %v1837, %v1836
        %v1844 = vpack.c.bf16 %v1839, %v1838
        %v1845 = vpack.c.bf16 %v1841, %v1840
        %s1846 = scalar_lea.vmem [#allocation6], 128
        %v1847 = vld [vmem:[%s1846] sm:$0xf]
        %v1848 = vld [vmem:[%s1846 + $0x4] sm:$0xf]
        %v1849 = vld [vmem:[%s1846 + $0x8] sm:$0xf]
        %v1850 = vld [vmem:[%s1846 + $0xc] sm:$0xf]
        %v1851 = vld [vmem:[%s1846 + $0x10] sm:$0xf]
        %v1852 = vld [vmem:[%s1846 + $0x14] sm:$0xf]
        %v1853 = vld [vmem:[%s1846 + $0x18] sm:$0xf]
        %v1854 = vld [vmem:[%s1846 + $0x1c] sm:$0xf]
        %v1855 = vld [vmem:[%s1846 + $0x20] sm:$0xf]
        %v1856 = vld [vmem:[%s1846 + $0x24] sm:$0xf]
        %v1857 = vld [vmem:[%s1846 + $0x28] sm:$0xf]
        %v1858 = vld [vmem:[%s1846 + $0x2c] sm:$0xf]
        %v1859 = vld [vmem:[%s1846 + $0x30] sm:$0xf]
        %v1860 = vld [vmem:[%s1846 + $0x34] sm:$0xf]
        %v1861 = vld [vmem:[%s1846 + $0x38] sm:$0xf]
        %v1862 = vld [vmem:[%s1846 + $0x3c] sm:$0xf]
        %s1863 = scalar_lea.vmem %s7, 2
        %v1864 = vld [vmem:[%s1863] sm:$0x1]
        %v1866 = vlaneseq
        %v1867 = vshrl.u32 %v1866, 7
        %v1868 = vsub.s32 0, %v1867
        %v1869 = vrot.slane %v1864, %v1868
        %v1887 = vunpack.c.l.b16 %v1847
        %v1888 = vunpack.c.l.b16 %v1848
        %v1889 = vunpack.c.l.b16 %v1849
        %v1890 = vunpack.c.l.b16 %v1850
        %v1891 = vunpack.c.l.b16 %v1851
        %v1892 = vunpack.c.l.b16 %v1852
        %v1893 = vunpack.c.l.b16 %v1853
        %v1894 = vunpack.c.l.b16 %v1854
        %v1895 = vunpack.c.l.b16 %v1855
        %v1896 = vunpack.c.l.b16 %v1856
        %v1897 = vunpack.c.l.b16 %v1857
        %v1898 = vunpack.c.l.b16 %v1858
        %v1899 = vunpack.c.l.b16 %v1859
        %v1900 = vunpack.c.l.b16 %v1860
        %v1901 = vunpack.c.l.b16 %v1861
        %v1902 = vunpack.c.l.b16 %v1862
        %v1903 = vpack.c.b16 %v1888, %v1887
        %v1904 = vpack.c.b16 %v1890, %v1889
        %v1905 = vpack.c.b16 %v1892, %v1891
        %v1906 = vpack.c.b16 %v1894, %v1893
        %v1907 = vpack.c.b16 %v1896, %v1895
        %v1908 = vpack.c.b16 %v1898, %v1897
        %v1909 = vpack.c.b16 %v1900, %v1899
        %v1910 = vpack.c.b16 %v1902, %v1901
        %1919 = vmatprep.subr.bf16.mxu0 0
        %1920 = vmatpush1.bf16.msra.mxu0 %v1903
        %1921 = vmatprep.subr.bf16.mxu0 0
        %1922 = vmatpush1.bf16.msra.mxu0 %v1904
        %1923 = vmatprep.subr.bf16.mxu0 0
        %1924 = vmatpush1.bf16.msra.mxu0 %v1905
        %1925 = vmatprep.subr.bf16.mxu0 0
        %1926 = vmatpush1.bf16.msra.mxu0 %v1906
        %1927 = vmatprep.subr.bf16.mxu0 0
        %1928 = vmatpush1.bf16.msra.mxu0 %v1907
        %1929 = vmatprep.subr.bf16.mxu0 0
        %1930 = vmatpush1.bf16.msra.mxu0 %v1908
        %1931 = vmatprep.subr.bf16.mxu0 0
        %1932 = vmatpush1.bf16.msra.mxu0 %v1909
        %1933 = vmatprep.subr.bf16.mxu0 0
        %1934 = vmatpush1.bf16.msra.mxu0 %v1910
        %1935 = vmatprep.subr.bf16.mxu0 0
        %1936 = vmatpush1.bf16.msra.mxu0 0
        %1937 = vmatprep.subr.bf16.mxu0 0
        %1938 = vmatpush1.bf16.msra.mxu0 0
        %1939 = vmatprep.subr.bf16.mxu0 0
        %1940 = vmatpush1.bf16.msra.mxu0 0
        %1941 = vmatprep.subr.bf16.mxu0 0
        %1942 = vmatpush1.bf16.msra.mxu0 0
        %1943 = vmatprep.subr.bf16.mxu0 0
        %1944 = vmatpush1.bf16.msra.mxu0 0
        %1945 = vmatprep.subr.bf16.mxu0 0
        %1946 = vmatpush1.bf16.msra.mxu0 0
        %1947 = vmatprep.subr.bf16.mxu0 0
        %1948 = vmatpush1.bf16.msra.mxu0 0
        %1949 = vmatprep.subr.bf16.mxu0 0
        %1950 = vmatpush1.bf16.msra.mxu0 0
        %1951 = vmatprep.mubr.bf16.mxu0 0
        %1952 = vmatmul.mubr.bf16.gmra.mrb[0].mxu0 %v1842
        %v1953 = vpop.f32.mrb[0].mxu0
        %v1954 = vadd.f32 %v1869, %v1953
        %v1955 = vpop.f32.mrb[0].mxu0
        %v1956 = vpop.f32.mrb[0].mxu0
        %v1957 = vadd.f32 %v1869, %v1956
        %v1958 = vpop.f32.mrb[0].mxu0
        %1959 = vmatprep.mubr.bf16.mxu0 0
        %1960 = vmatmul.mubr.bf16.gmra.mrb[0].mxu0 %v1843
        %v1961 = vpop.f32.mrb[0].mxu0
        %v1962 = vadd.f32 %v1869, %v1961
        %v1963 = vpop.f32.mrb[0].mxu0
        %v1964 = vpop.f32.mrb[0].mxu0
        %v1965 = vadd.f32 %v1869, %v1964
        %v1966 = vpop.f32.mrb[0].mxu0
        %1967 = vmatprep.mubr.bf16.mxu0 0
        %1968 = vmatmul.mubr.bf16.gmra.mrb[0].mxu0 %v1844
        %v1969 = vpop.f32.mrb[0].mxu0
        %v1970 = vadd.f32 %v1869, %v1969
        %v1971 = vpop.f32.mrb[0].mxu0
        %v1972 = vpop.f32.mrb[0].mxu0
        %v1973 = vadd.f32 %v1869, %v1972
        %v1974 = vpop.f32.mrb[0].mxu0
        %1975 = vmatprep.mubr.bf16.mxu0 0
        %1976 = vmatmul.mubr.bf16.gmra.mrb[0].mxu0 %v1845
        %v1977 = vpop.f32.mrb[0].mxu0
        %v1978 = vadd.f32 %v1869, %v1977
        %v1979 = vpop.f32.mrb[0].mxu0
        %v1980 = vpop.f32.mrb[0].mxu0
        %v1981 = vadd.f32 %v1869, %v1980
        %v1982 = vpop.f32.mrb[0].mxu0
        %1983 = vdwg.mxu0
        %v1984 = vpack.c.bf16 %v1957, %v1954
        %v1985 = vpack.c.bf16 %v1965, %v1962
        %v1986 = vpack.c.bf16 %v1973, %v1970
        %v1987 = vpack.c.bf16 %v1981, %v1978
        %v1992 = vunpack.c.l.b16 %v1984
        %v1993 = vunpack.c.h.b16 %v1984
        %v1994 = vunpack.c.l.b16 %v1985
        %v1995 = vunpack.c.h.b16 %v1985
        %v1996 = vunpack.c.l.b16 %v1986
        %v1997 = vunpack.c.h.b16 %v1986
        %v1998 = vunpack.c.l.b16 %v1987
        %v1999 = vunpack.c.h.b16 %v1987
        %v2000 = vpack.c.b16 %v1992, %v1992
        %v2001 = vpack.c.b16 %v1993, %v1993
        %v2002 = vpack.c.b16 %v1994, %v1994
        %v2003 = vpack.c.b16 %v1995, %v1995
        %v2004 = vpack.c.b16 %v1996, %v1996
        %v2005 = vpack.c.b16 %v1997, %v1997
        %v2006 = vpack.c.b16 %v1998, %v1998
        %v2007 = vpack.c.b16 %v1999, %v1999
        %2016 = vst.msk [vmem:[%s536] sm:$0xf] %vm1101, %v2000
        %2017 = vst.msk [vmem:[%s536 + $0x4] sm:$0xf] %vm1101, %v2001
        %2018 = vst.msk [vmem:[%s536 + $0x8] sm:$0xf] %vm1101, %v2002
        %2019 = vst.msk [vmem:[%s536 + $0xc] sm:$0xf] %vm1101, %v2003
        %2020 = vst.msk [vmem:[%s536 + $0x10] sm:$0xf] %vm1101, %v2004
        %2021 = vst.msk [vmem:[%s536 + $0x14] sm:$0xf] %vm1101, %v2005
        %2022 = vst.msk [vmem:[%s536 + $0x18] sm:$0xf] %vm1101, %v2006
        %2023 = vst.msk [vmem:[%s536 + $0x1c] sm:$0xf] %vm1101, %v2007
        %2024 = vrot.lane.b32.xlu0 %v2000, 96
        %v2025 = vpop.permute.xlu0 %2024
        %2026 = vrot.lane.b32.xlu0 %v2001, 96
        %v2027 = vpop.permute.xlu0 %2026
        %2028 = vrot.lane.b32.xlu0 %v2002, 96
        %v2029 = vpop.permute.xlu0 %2028
        %2030 = vrot.lane.b32.xlu0 %v2003, 96
        %v2031 = vpop.permute.xlu0 %2030
        %2032 = vrot.lane.b32.xlu0 %v2004, 96
        %v2033 = vpop.permute.xlu0 %2032
        %2034 = vrot.lane.b32.xlu0 %v2005, 96
        %v2035 = vpop.permute.xlu0 %2034
        %2036 = vrot.lane.b32.xlu0 %v2006, 96
        %v2037 = vpop.permute.xlu0 %2036
        %2038 = vrot.lane.b32.xlu0 %v2007, 96
        %v2039 = vpop.permute.xlu0 %2038
        %s2048 = scalar_lea.vmem %s536, 32 [#allocation9]
        %2049 = vst.msk [vmem:[%s2048] sm:$0xf] %vm1101, %v2025
        %2050 = vst.msk [vmem:[%s2048 + $0x4] sm:$0xf] %vm1101, %v2027
        %2051 = vst.msk [vmem:[%s2048 + $0x8] sm:$0xf] %vm1101, %v2029
        %2052 = vst.msk [vmem:[%s2048 + $0xc] sm:$0xf] %vm1101, %v2031
        %2053 = vst.msk [vmem:[%s2048 + $0x10] sm:$0xf] %vm1101, %v2033
        %2054 = vst.msk [vmem:[%s2048 + $0x14] sm:$0xf] %vm1101, %v2035
        %2055 = vst.msk [vmem:[%s2048 + $0x18] sm:$0xf] %vm1101, %v2037
        %2056 = vst.msk [vmem:[%s2048 + $0x1c] sm:$0xf] %vm1101, %v2039
        %2057 = vrot.lane.b32.xlu0 %v2000, 64
        %v2058 = vpop.permute.xlu0 %2057
        %2059 = vrot.lane.b32.xlu0 %v2001, 64
        %v2060 = vpop.permute.xlu0 %2059
        %2061 = vrot.lane.b32.xlu0 %v2002, 64
        %v2062 = vpop.permute.xlu0 %2061
        %2063 = vrot.lane.b32.xlu0 %v2003, 64
        %v2064 = vpop.permute.xlu0 %2063
        %2065 = vrot.lane.b32.xlu0 %v2004, 64
        %v2066 = vpop.permute.xlu0 %2065
        %2067 = vrot.lane.b32.xlu0 %v2005, 64
        %v2068 = vpop.permute.xlu0 %2067
        %2069 = vrot.lane.b32.xlu0 %v2006, 64
        %v2070 = vpop.permute.xlu0 %2069
        %2071 = vrot.lane.b32.xlu0 %v2007, 64
        %v2072 = vpop.permute.xlu0 %2071
        %s2081 = scalar_lea.vmem %s536, 64 [#allocation9]
        %2082 = vst.msk [vmem:[%s2081] sm:$0xf] %vm1101, %v2058
        %2083 = vst.msk [vmem:[%s2081 + $0x4] sm:$0xf] %vm1101, %v2060
        %2084 = vst.msk [vmem:[%s2081 + $0x8] sm:$0xf] %vm1101, %v2062
        %2085 = vst.msk [vmem:[%s2081 + $0xc] sm:$0xf] %vm1101, %v2064
        %2086 = vst.msk [vmem:[%s2081 + $0x10] sm:$0xf] %vm1101, %v2066
        %2087 = vst.msk [vmem:[%s2081 + $0x14] sm:$0xf] %vm1101, %v2068
        %2088 = vst.msk [vmem:[%s2081 + $0x18] sm:$0xf] %vm1101, %v2070
        %2089 = vst.msk [vmem:[%s2081 + $0x1c] sm:$0xf] %vm1101, %v2072
        %2090 = vrot.lane.b32.xlu0 %v2000, 32
        %v2091 = vpop.permute.xlu0 %2090
        %2092 = vrot.lane.b32.xlu0 %v2001, 32
        %v2093 = vpop.permute.xlu0 %2092
        %2094 = vrot.lane.b32.xlu0 %v2002, 32
        %v2095 = vpop.permute.xlu0 %2094
        %2096 = vrot.lane.b32.xlu0 %v2003, 32
        %v2097 = vpop.permute.xlu0 %2096
        %2098 = vrot.lane.b32.xlu0 %v2004, 32
        %v2099 = vpop.permute.xlu0 %2098
        %2100 = vrot.lane.b32.xlu0 %v2005, 32
        %v2101 = vpop.permute.xlu0 %2100
        %2102 = vrot.lane.b32.xlu0 %v2006, 32
        %v2103 = vpop.permute.xlu0 %2102
        %2104 = vrot.lane.b32.xlu0 %v2007, 32
        %v2105 = vpop.permute.xlu0 %2104
        %s2114 = scalar_lea.vmem %s536, 96 [#allocation9]
        %2115 = vst.msk [vmem:[%s2114] sm:$0xf] %vm1101, %v2091
        %2116 = vst.msk [vmem:[%s2114 + $0x4] sm:$0xf] %vm1101, %v2093
        %2117 = vst.msk [vmem:[%s2114 + $0x8] sm:$0xf] %vm1101, %v2095
        %2118 = vst.msk [vmem:[%s2114 + $0xc] sm:$0xf] %vm1101, %v2097
        %2119 = vst.msk [vmem:[%s2114 + $0x10] sm:$0xf] %vm1101, %v2099
        %2120 = vst.msk [vmem:[%s2114 + $0x14] sm:$0xf] %vm1101, %v2101
        %2121 = vst.msk [vmem:[%s2114 + $0x18] sm:$0xf] %vm1101, %v2103
        %2122 = vst.msk [vmem:[%s2114 + $0x1c] sm:$0xf] %vm1101, %v2105
        %s2123 = sand.u32 %s262, 1
        %s2124 = sand.u32 %s262, 1
        %s2125 = smul.addr %s2124, 128
        %s2126 = scalar_lea.vmem [#allocation7], %s2125
        %s2127 = sand.u32 %s290, 1
        %s2128 = sand.u32 %s290, 1
        %s2129 = smul.addr %s2128, 128
        %s2130 = scalar_lea.vmem [#allocation8], %s2129
        %s2131 = sand.u32 %s318, 1
        %s2132 = sand.u32 %s318, 1
        %s2133 = smul.addr %s2132, 128
        %s2134 = scalar_lea.vmem [#allocation9], %s2133
        // Predicated region
        $region65: #{tpu_custom_call.1} parent=51 // pred_check
          %p2135 = pneg %p272
        $region66: #{tpu_custom_call.1} parent=51 // pred_check_branch
          %2137 = sbr.rel (%p2135) target = $region68
        $region67: #{tpu_custom_call.1} parent=51 // pred_region
          %s2138 = smul.u32 8, %s33
          %s2139 = smul.addr %s32, 128
          %s2140 = sadd.s32 %s2138, %s2139
          %s2141 = smul.addr %s2140, 4
          %s2142 = scalar_lea.vmem %s8, %s2141
          // Predicated region
          $region69: #{tpu_custom_call.1} parent=67 // pred_check
            _
          $region70: #{tpu_custom_call.1} parent=67 // pred_check_branch
            %2144 = sbr.rel (0) target = $region72
          $region71: #{tpu_custom_call.1} parent=67 // pred_region
            // Predicated region
            $region73: #{tpu_custom_call.1} parent=71 // pred_check
              _
            $region74: #{tpu_custom_call.1} parent=71 // pred_check_branch
              %2146 = sbr.rel target = $region76
            $region75: #{tpu_custom_call.1} parent=71 // pred_region
              // Predicated region
              $region88: #{tpu_custom_call.1} parent=75 // pred_check
                _
              $region89: #{tpu_custom_call.1} parent=75 // pred_check_branch
                %2223 = sbr.rel (0) target = $region91
              $region90: #{tpu_custom_call.1} parent=75 // pred_region
                loop: start=0, step=1, limit=1
                $region92: #{tpu_custom_call.1} parent=90 // loop_pre_header
                  _
                $region93: #{tpu_custom_call.1} parent=90 // loop_header
                  %s2225 = sphi 0, %s2229
                  %p2226 = scmp.ge.s32.totalorder %s2225, 1
                  %s2230 = sphi %s2126, %s2126
                  %s2231 = sphi %s2142, %s2142
                $region94: #{tpu_custom_call.1} parent=90 // loop_header_branch
                  %2228 = sbr.rel (%p2226) target = $region98
                $region95: #{tpu_custom_call.1} parent=90 // loop_body
                  _
                $region96: #{tpu_custom_call.1} parent=90 // loop_footer
                  %s2229 = sadd.s32 1, %s2225
                $region97: #{tpu_custom_call.1} parent=90 // loop_footer_branch
                  %2224 = sbr.rel target = $region93
                $region98: #{tpu_custom_call.1} parent=90 // loop_exit
                  _
                loop: start=0, step=1, limit=1
                $region99: #{tpu_custom_call.1} parent=90 // loop_pre_header
                  _
                $region100: #{tpu_custom_call.1} parent=90 // loop_header
                  %s2234 = sphi 0, %s2238
                  %p2235 = scmp.ge.s32.totalorder %s2234, 1
                  %s2239 = sphi %s2126, %s2126
                  %s2240 = sphi %s2142, %s2142
                $region101: #{tpu_custom_call.1} parent=90 // loop_header_branch
                  %2237 = sbr.rel (%p2235) target = $region105
                $region102: #{tpu_custom_call.1} parent=90 // loop_body
                  %v2241 = vld [vmem:[%s2239] sm:$0xf]
                  %2242 = vst [vmem:[%s2240] sm:$0xf] %v2241
                  %v2243 = vld [vmem:[%s2239 + $0x4] sm:$0xf]
                  %2244 = vst [vmem:[%s2240 + $0x4] sm:$0xf] %v2243
                  %v2245 = vld [vmem:[%s2239 + $0x8] sm:$0xf]
                  %2246 = vst [vmem:[%s2240 + $0x8] sm:$0xf] %v2245
                  %v2247 = vld [vmem:[%s2239 + $0xc] sm:$0xf]
                  %2248 = vst [vmem:[%s2240 + $0xc] sm:$0xf] %v2247
                  %v2249 = vld [vmem:[%s2239 + $0x10] sm:$0xf]
                  %2250 = vst [vmem:[%s2240 + $0x10] sm:$0xf] %v2249
                  %v2251 = vld [vmem:[%s2239 + $0x14] sm:$0xf]
                  %2252 = vst [vmem:[%s2240 + $0x14] sm:$0xf] %v2251
                  %v2253 = vld [vmem:[%s2239 + $0x18] sm:$0xf]
                  %2254 = vst [vmem:[%s2240 + $0x18] sm:$0xf] %v2253
                  %v2255 = vld [vmem:[%s2239 + $0x1c] sm:$0xf]
                  %2256 = vst [vmem:[%s2240 + $0x1c] sm:$0xf] %v2255
                  %v2257 = vld [vmem:[%s2239 + $0x20] sm:$0xf]
                  %2258 = vst [vmem:[%s2240 + $0x80] sm:$0xf] %v2257
                  %v2259 = vld [vmem:[%s2239 + $0x24] sm:$0xf]
                  %2260 = vst [vmem:[%s2240 + $0x84] sm:$0xf] %v2259
                  %v2261 = vld [vmem:[%s2239 + $0x28] sm:$0xf]
                  %2262 = vst [vmem:[%s2240 + $0x88] sm:$0xf] %v2261
                  %v2263 = vld [vmem:[%s2239 + $0x2c] sm:$0xf]
                  %2264 = vst [vmem:[%s2240 + $0x8c] sm:$0xf] %v2263
                  %v2265 = vld [vmem:[%s2239 + $0x30] sm:$0xf]
                  %2266 = vst [vmem:[%s2240 + $0x90] sm:$0xf] %v2265
                  %v2267 = vld [vmem:[%s2239 + $0x34] sm:$0xf]
                  %2268 = vst [vmem:[%s2240 + $0x94] sm:$0xf] %v2267
                  %v2269 = vld [vmem:[%s2239 + $0x38] sm:$0xf]
                  %2270 = vst [vmem:[%s2240 + $0x98] sm:$0xf] %v2269
                  %v2271 = vld [vmem:[%s2239 + $0x3c] sm:$0xf]
                  %2272 = vst [vmem:[%s2240 + $0x9c] sm:$0xf] %v2271
                  %v2273 = vld [vmem:[%s2239 + $0x40] sm:$0xf]
                  %2274 = vst [vmem:[%s2240 + $0x100] sm:$0xf] %v2273
                  %v2275 = vld [vmem:[%s2239 + $0x44] sm:$0xf]
                  %2276 = vst [vmem:[%s2240 + $0x104] sm:$0xf] %v2275
                  %v2277 = vld [vmem:[%s2239 + $0x48] sm:$0xf]
                  %2278 = vst [vmem:[%s2240 + $0x108] sm:$0xf] %v2277
                  %v2279 = vld [vmem:[%s2239 + $0x4c] sm:$0xf]
                  %2280 = vst [vmem:[%s2240 + $0x10c] sm:$0xf] %v2279
                  %v2281 = vld [vmem:[%s2239 + $0x50] sm:$0xf]
                  %2282 = vst [vmem:[%s2240 + $0x110] sm:$0xf] %v2281
                  %v2283 = vld [vmem:[%s2239 + $0x54] sm:$0xf]
                  %2284 = vst [vmem:[%s2240 + $0x114] sm:$0xf] %v2283
                  %v2285 = vld [vmem:[%s2239 + $0x58] sm:$0xf]
                  %2286 = vst [vmem:[%s2240 + $0x118] sm:$0xf] %v2285
                  %v2287 = vld [vmem:[%s2239 + $0x5c] sm:$0xf]
                  %2288 = vst [vmem:[%s2240 + $0x11c] sm:$0xf] %v2287
                  %v2289 = vld [vmem:[%s2239 + $0x60] sm:$0xf]
                  %2290 = vst [vmem:[%s2240 + $0x180] sm:$0xf] %v2289
                  %v2291 = vld [vmem:[%s2239 + $0x64] sm:$0xf]
                  %2292 = vst [vmem:[%s2240 + $0x184] sm:$0xf] %v2291
                  %v2293 = vld [vmem:[%s2239 + $0x68] sm:$0xf]
                  %2294 = vst [vmem:[%s2240 + $0x188] sm:$0xf] %v2293
                  %v2295 = vld [vmem:[%s2239 + $0x6c] sm:$0xf]
                  %2296 = vst [vmem:[%s2240 + $0x18c] sm:$0xf] %v2295
                  %v2297 = vld [vmem:[%s2239 + $0x70] sm:$0xf]
                  %2298 = vst [vmem:[%s2240 + $0x190] sm:$0xf] %v2297
                  %v2299 = vld [vmem:[%s2239 + $0x74] sm:$0xf]
                  %2300 = vst [vmem:[%s2240 + $0x194] sm:$0xf] %v2299
                  %v2301 = vld [vmem:[%s2239 + $0x78] sm:$0xf]
                  %2302 = vst [vmem:[%s2240 + $0x198] sm:$0xf] %v2301
                  %v2303 = vld [vmem:[%s2239 + $0x7c] sm:$0xf]
                  %2304 = vst [vmem:[%s2240 + $0x19c] sm:$0xf] %v2303
                $region103: #{tpu_custom_call.1} parent=90 // loop_footer
                  %s2238 = sadd.s32 1, %s2234
                $region104: #{tpu_custom_call.1} parent=90 // loop_footer_branch
                  %2233 = sbr.rel target = $region100
                $region105: #{tpu_custom_call.1} parent=90 // loop_exit
                  _
              $region91: #{tpu_custom_call.1} parent=75 // pred_fallthru
                _
            $region76: #{tpu_custom_call.1} parent=71 // pred_fallthru
              _
            // Predicated region
            $region77: #{tpu_custom_call.1} parent=71 // pred_check
              _
            $region78: #{tpu_custom_call.1} parent=71 // pred_check_branch
              %2148 = sbr.rel (0) target = $region80
            $region79: #{tpu_custom_call.1} parent=71 // pred_region
              loop: start=0, step=1, limit=1
              $region81: #{tpu_custom_call.1} parent=79 // loop_pre_header
                _
              $region82: #{tpu_custom_call.1} parent=79 // loop_header
                %s2151 = sphi 0, %s2155
                %p2152 = scmp.ge.s32.totalorder %s2151, 1
                %s2156 = sphi %s2126, %s2126
                %s2157 = sphi %s2142, %s2142
              $region83: #{tpu_custom_call.1} parent=79 // loop_header_branch
                %2154 = sbr.rel (%p2152) target = $region87
              $region84: #{tpu_custom_call.1} parent=79 // loop_body
                %v2158 = vld [vmem:[%s2156] sm:$0xf]
                %2159 = vst [vmem:[%s2157] sm:$0xf] %v2158
                %v2160 = vld [vmem:[%s2156 + $0x4] sm:$0xf]
                %2161 = vst [vmem:[%s2157 + $0x4] sm:$0xf] %v2160
                %v2162 = vld [vmem:[%s2156 + $0x8] sm:$0xf]
                %2163 = vst [vmem:[%s2157 + $0x8] sm:$0xf] %v2162
                %v2164 = vld [vmem:[%s2156 + $0xc] sm:$0xf]
                %2165 = vst [vmem:[%s2157 + $0xc] sm:$0xf] %v2164
                %v2166 = vld [vmem:[%s2156 + $0x10] sm:$0xf]
                %2167 = vst [vmem:[%s2157 + $0x10] sm:$0xf] %v2166
                %v2168 = vld [vmem:[%s2156 + $0x14] sm:$0xf]
                %2169 = vst [vmem:[%s2157 + $0x14] sm:$0xf] %v2168
                %v2170 = vld [vmem:[%s2156 + $0x18] sm:$0xf]
                %2171 = vst [vmem:[%s2157 + $0x18] sm:$0xf] %v2170
                %v2172 = vld [vmem:[%s2156 + $0x1c] sm:$0xf]
                %2173 = vst [vmem:[%s2157 + $0x1c] sm:$0xf] %v2172
                %v2174 = vld [vmem:[%s2156 + $0x20] sm:$0xf]
                %2175 = vst [vmem:[%s2157 + $0x80] sm:$0xf] %v2174
                %v2176 = vld [vmem:[%s2156 + $0x24] sm:$0xf]
                %2177 = vst [vmem:[%s2157 + $0x84] sm:$0xf] %v2176
                %v2178 = vld [vmem:[%s2156 + $0x28] sm:$0xf]
                %2179 = vst [vmem:[%s2157 + $0x88] sm:$0xf] %v2178
                %v2180 = vld [vmem:[%s2156 + $0x2c] sm:$0xf]
                %2181 = vst [vmem:[%s2157 + $0x8c] sm:$0xf] %v2180
                %v2182 = vld [vmem:[%s2156 + $0x30] sm:$0xf]
                %2183 = vst [vmem:[%s2157 + $0x90] sm:$0xf] %v2182
                %v2184 = vld [vmem:[%s2156 + $0x34] sm:$0xf]
                %2185 = vst [vmem:[%s2157 + $0x94] sm:$0xf] %v2184
                %v2186 = vld [vmem:[%s2156 + $0x38] sm:$0xf]
                %2187 = vst [vmem:[%s2157 + $0x98] sm:$0xf] %v2186
                %v2188 = vld [vmem:[%s2156 + $0x3c] sm:$0xf]
                %2189 = vst [vmem:[%s2157 + $0x9c] sm:$0xf] %v2188
                %v2190 = vld [vmem:[%s2156 + $0x40] sm:$0xf]
                %2191 = vst [vmem:[%s2157 + $0x100] sm:$0xf] %v2190
                %v2192 = vld [vmem:[%s2156 + $0x44] sm:$0xf]
                %2193 = vst [vmem:[%s2157 + $0x104] sm:$0xf] %v2192
                %v2194 = vld [vmem:[%s2156 + $0x48] sm:$0xf]
                %2195 = vst [vmem:[%s2157 + $0x108] sm:$0xf] %v2194
                %v2196 = vld [vmem:[%s2156 + $0x4c] sm:$0xf]
                %2197 = vst [vmem:[%s2157 + $0x10c] sm:$0xf] %v2196
                %v2198 = vld [vmem:[%s2156 + $0x50] sm:$0xf]
                %2199 = vst [vmem:[%s2157 + $0x110] sm:$0xf] %v2198
                %v2200 = vld [vmem:[%s2156 + $0x54] sm:$0xf]
                %2201 = vst [vmem:[%s2157 + $0x114] sm:$0xf] %v2200
                %v2202 = vld [vmem:[%s2156 + $0x58] sm:$0xf]
                %2203 = vst [vmem:[%s2157 + $0x118] sm:$0xf] %v2202
                %v2204 = vld [vmem:[%s2156 + $0x5c] sm:$0xf]
                %2205 = vst [vmem:[%s2157 + $0x11c] sm:$0xf] %v2204
                %v2206 = vld [vmem:[%s2156 + $0x60] sm:$0xf]
                %2207 = vst [vmem:[%s2157 + $0x180] sm:$0xf] %v2206
                %v2208 = vld [vmem:[%s2156 + $0x64] sm:$0xf]
                %2209 = vst [vmem:[%s2157 + $0x184] sm:$0xf] %v2208
                %v2210 = vld [vmem:[%s2156 + $0x68] sm:$0xf]
                %2211 = vst [vmem:[%s2157 + $0x188] sm:$0xf] %v2210
                %v2212 = vld [vmem:[%s2156 + $0x6c] sm:$0xf]
                %2213 = vst [vmem:[%s2157 + $0x18c] sm:$0xf] %v2212
                %v2214 = vld [vmem:[%s2156 + $0x70] sm:$0xf]
                %2215 = vst [vmem:[%s2157 + $0x190] sm:$0xf] %v2214
                %v2216 = vld [vmem:[%s2156 + $0x74] sm:$0xf]
                %2217 = vst [vmem:[%s2157 + $0x194] sm:$0xf] %v2216
                %v2218 = vld [vmem:[%s2156 + $0x78] sm:$0xf]
                %2219 = vst [vmem:[%s2157 + $0x198] sm:$0xf] %v2218
                %v2220 = vld [vmem:[%s2156 + $0x7c] sm:$0xf]
                %2221 = vst [vmem:[%s2157 + $0x19c] sm:$0xf] %v2220
              $region85: #{tpu_custom_call.1} parent=79 // loop_footer
                %s2155 = sadd.s32 1, %s2151
              $region86: #{tpu_custom_call.1} parent=79 // loop_footer_branch
                %2150 = sbr.rel target = $region82
              $region87: #{tpu_custom_call.1} parent=79 // loop_exit
                _
            $region80: #{tpu_custom_call.1} parent=71 // pred_fallthru
              _
          $region72: #{tpu_custom_call.1} parent=67 // pred_fallthru
            _
          %2305 = vnop
        $region68: #{tpu_custom_call.1} parent=51 // pred_fallthru
          _
        // Predicated region
        $region106: #{tpu_custom_call.1} parent=51 // pred_check
          %p2306 = pneg %p300
        $region107: #{tpu_custom_call.1} parent=51 // pred_check_branch
          %2308 = sbr.rel (%p2306) target = $region109
        $region108: #{tpu_custom_call.1} parent=51 // pred_region
          %s2309 = smul.u32 8, %s33
          %s2310 = smul.addr %s32, 128
          %s2311 = sadd.s32 %s2309, %s2310
          %s2312 = smul.addr %s2311, 4
          %s2313 = scalar_lea.vmem %s9, %s2312
          // Predicated region
          $region110: #{tpu_custom_call.1} parent=108 // pred_check
            _
          $region111: #{tpu_custom_call.1} parent=108 // pred_check_branch
            %2315 = sbr.rel (0) target = $region113
          $region112: #{tpu_custom_call.1} parent=108 // pred_region
            // Predicated region
            $region114: #{tpu_custom_call.1} parent=112 // pred_check
              _
            $region115: #{tpu_custom_call.1} parent=112 // pred_check_branch
              %2317 = sbr.rel target = $region117
            $region116: #{tpu_custom_call.1} parent=112 // pred_region
              // Predicated region
              $region129: #{tpu_custom_call.1} parent=116 // pred_check
                _
              $region130: #{tpu_custom_call.1} parent=116 // pred_check_branch
                %2394 = sbr.rel (0) target = $region132
              $region131: #{tpu_custom_call.1} parent=116 // pred_region
                loop: start=0, step=1, limit=1
                $region133: #{tpu_custom_call.1} parent=131 // loop_pre_header
                  _
                $region134: #{tpu_custom_call.1} parent=131 // loop_header
                  %s2396 = sphi 0, %s2400
                  %p2397 = scmp.ge.s32.totalorder %s2396, 1
                  %s2401 = sphi %s2130, %s2130
                  %s2402 = sphi %s2313, %s2313
                $region135: #{tpu_custom_call.1} parent=131 // loop_header_branch
                  %2399 = sbr.rel (%p2397) target = $region139
                $region136: #{tpu_custom_call.1} parent=131 // loop_body
                  _
                $region137: #{tpu_custom_call.1} parent=131 // loop_footer
                  %s2400 = sadd.s32 1, %s2396
                $region138: #{tpu_custom_call.1} parent=131 // loop_footer_branch
                  %2395 = sbr.rel target = $region134
                $region139: #{tpu_custom_call.1} parent=131 // loop_exit
                  _
                loop: start=0, step=1, limit=1
                $region140: #{tpu_custom_call.1} parent=131 // loop_pre_header
                  _
                $region141: #{tpu_custom_call.1} parent=131 // loop_header
                  %s2405 = sphi 0, %s2409
                  %p2406 = scmp.ge.s32.totalorder %s2405, 1
                  %s2410 = sphi %s2130, %s2130
                  %s2411 = sphi %s2313, %s2313
                $region142: #{tpu_custom_call.1} parent=131 // loop_header_branch
                  %2408 = sbr.rel (%p2406) target = $region146
                $region143: #{tpu_custom_call.1} parent=131 // loop_body
                  %v2412 = vld [vmem:[%s2410] sm:$0xf]
                  %2413 = vst [vmem:[%s2411] sm:$0xf] %v2412
                  %v2414 = vld [vmem:[%s2410 + $0x4] sm:$0xf]
                  %2415 = vst [vmem:[%s2411 + $0x4] sm:$0xf] %v2414
                  %v2416 = vld [vmem:[%s2410 + $0x8] sm:$0xf]
                  %2417 = vst [vmem:[%s2411 + $0x8] sm:$0xf] %v2416
                  %v2418 = vld [vmem:[%s2410 + $0xc] sm:$0xf]
                  %2419 = vst [vmem:[%s2411 + $0xc] sm:$0xf] %v2418
                  %v2420 = vld [vmem:[%s2410 + $0x10] sm:$0xf]
                  %2421 = vst [vmem:[%s2411 + $0x10] sm:$0xf] %v2420
                  %v2422 = vld [vmem:[%s2410 + $0x14] sm:$0xf]
                  %2423 = vst [vmem:[%s2411 + $0x14] sm:$0xf] %v2422
                  %v2424 = vld [vmem:[%s2410 + $0x18] sm:$0xf]
                  %2425 = vst [vmem:[%s2411 + $0x18] sm:$0xf] %v2424
                  %v2426 = vld [vmem:[%s2410 + $0x1c] sm:$0xf]
                  %2427 = vst [vmem:[%s2411 + $0x1c] sm:$0xf] %v2426
                  %v2428 = vld [vmem:[%s2410 + $0x20] sm:$0xf]
                  %2429 = vst [vmem:[%s2411 + $0x80] sm:$0xf] %v2428
                  %v2430 = vld [vmem:[%s2410 + $0x24] sm:$0xf]
                  %2431 = vst [vmem:[%s2411 + $0x84] sm:$0xf] %v2430
                  %v2432 = vld [vmem:[%s2410 + $0x28] sm:$0xf]
                  %2433 = vst [vmem:[%s2411 + $0x88] sm:$0xf] %v2432
                  %v2434 = vld [vmem:[%s2410 + $0x2c] sm:$0xf]
                  %2435 = vst [vmem:[%s2411 + $0x8c] sm:$0xf] %v2434
                  %v2436 = vld [vmem:[%s2410 + $0x30] sm:$0xf]
                  %2437 = vst [vmem:[%s2411 + $0x90] sm:$0xf] %v2436
                  %v2438 = vld [vmem:[%s2410 + $0x34] sm:$0xf]
                  %2439 = vst [vmem:[%s2411 + $0x94] sm:$0xf] %v2438
                  %v2440 = vld [vmem:[%s2410 + $0x38] sm:$0xf]
                  %2441 = vst [vmem:[%s2411 + $0x98] sm:$0xf] %v2440
                  %v2442 = vld [vmem:[%s2410 + $0x3c] sm:$0xf]
                  %2443 = vst [vmem:[%s2411 + $0x9c] sm:$0xf] %v2442
                  %v2444 = vld [vmem:[%s2410 + $0x40] sm:$0xf]
                  %2445 = vst [vmem:[%s2411 + $0x100] sm:$0xf] %v2444
                  %v2446 = vld [vmem:[%s2410 + $0x44] sm:$0xf]
                  %2447 = vst [vmem:[%s2411 + $0x104] sm:$0xf] %v2446
                  %v2448 = vld [vmem:[%s2410 + $0x48] sm:$0xf]
                  %2449 = vst [vmem:[%s2411 + $0x108] sm:$0xf] %v2448
                  %v2450 = vld [vmem:[%s2410 + $0x4c] sm:$0xf]
                  %2451 = vst [vmem:[%s2411 + $0x10c] sm:$0xf] %v2450
                  %v2452 = vld [vmem:[%s2410 + $0x50] sm:$0xf]
                  %2453 = vst [vmem:[%s2411 + $0x110] sm:$0xf] %v2452
                  %v2454 = vld [vmem:[%s2410 + $0x54] sm:$0xf]
                  %2455 = vst [vmem:[%s2411 + $0x114] sm:$0xf] %v2454
                  %v2456 = vld [vmem:[%s2410 + $0x58] sm:$0xf]
                  %2457 = vst [vmem:[%s2411 + $0x118] sm:$0xf] %v2456
                  %v2458 = vld [vmem:[%s2410 + $0x5c] sm:$0xf]
                  %2459 = vst [vmem:[%s2411 + $0x11c] sm:$0xf] %v2458
                  %v2460 = vld [vmem:[%s2410 + $0x60] sm:$0xf]
                  %2461 = vst [vmem:[%s2411 + $0x180] sm:$0xf] %v2460
                  %v2462 = vld [vmem:[%s2410 + $0x64] sm:$0xf]
                  %2463 = vst [vmem:[%s2411 + $0x184] sm:$0xf] %v2462
                  %v2464 = vld [vmem:[%s2410 + $0x68] sm:$0xf]
                  %2465 = vst [vmem:[%s2411 + $0x188] sm:$0xf] %v2464
                  %v2466 = vld [vmem:[%s2410 + $0x6c] sm:$0xf]
                  %2467 = vst [vmem:[%s2411 + $0x18c] sm:$0xf] %v2466
                  %v2468 = vld [vmem:[%s2410 + $0x70] sm:$0xf]
                  %2469 = vst [vmem:[%s2411 + $0x190] sm:$0xf] %v2468
                  %v2470 = vld [vmem:[%s2410 + $0x74] sm:$0xf]
                  %2471 = vst [vmem:[%s2411 + $0x194] sm:$0xf] %v2470
                  %v2472 = vld [vmem:[%s2410 + $0x78] sm:$0xf]
                  %2473 = vst [vmem:[%s2411 + $0x198] sm:$0xf] %v2472
                  %v2474 = vld [vmem:[%s2410 + $0x7c] sm:$0xf]
                  %2475 = vst [vmem:[%s2411 + $0x19c] sm:$0xf] %v2474
                $region144: #{tpu_custom_call.1} parent=131 // loop_footer
                  %s2409 = sadd.s32 1, %s2405
                $region145: #{tpu_custom_call.1} parent=131 // loop_footer_branch
                  %2404 = sbr.rel target = $region141
                $region146: #{tpu_custom_call.1} parent=131 // loop_exit
                  _
              $region132: #{tpu_custom_call.1} parent=116 // pred_fallthru
                _
            $region117: #{tpu_custom_call.1} parent=112 // pred_fallthru
              _
            // Predicated region
            $region118: #{tpu_custom_call.1} parent=112 // pred_check
              _
            $region119: #{tpu_custom_call.1} parent=112 // pred_check_branch
              %2319 = sbr.rel (0) target = $region121
            $region120: #{tpu_custom_call.1} parent=112 // pred_region
              loop: start=0, step=1, limit=1
              $region122: #{tpu_custom_call.1} parent=120 // loop_pre_header
                _
              $region123: #{tpu_custom_call.1} parent=120 // loop_header
                %s2322 = sphi 0, %s2326
                %p2323 = scmp.ge.s32.totalorder %s2322, 1
                %s2327 = sphi %s2130, %s2130
                %s2328 = sphi %s2313, %s2313
              $region124: #{tpu_custom_call.1} parent=120 // loop_header_branch
                %2325 = sbr.rel (%p2323) target = $region128
              $region125: #{tpu_custom_call.1} parent=120 // loop_body
                %v2329 = vld [vmem:[%s2327] sm:$0xf]
                %2330 = vst [vmem:[%s2328] sm:$0xf] %v2329
                %v2331 = vld [vmem:[%s2327 + $0x4] sm:$0xf]
                %2332 = vst [vmem:[%s2328 + $0x4] sm:$0xf] %v2331
                %v2333 = vld [vmem:[%s2327 + $0x8] sm:$0xf]
                %2334 = vst [vmem:[%s2328 + $0x8] sm:$0xf] %v2333
                %v2335 = vld [vmem:[%s2327 + $0xc] sm:$0xf]
                %2336 = vst [vmem:[%s2328 + $0xc] sm:$0xf] %v2335
                %v2337 = vld [vmem:[%s2327 + $0x10] sm:$0xf]
                %2338 = vst [vmem:[%s2328 + $0x10] sm:$0xf] %v2337
                %v2339 = vld [vmem:[%s2327 + $0x14] sm:$0xf]
                %2340 = vst [vmem:[%s2328 + $0x14] sm:$0xf] %v2339
                %v2341 = vld [vmem:[%s2327 + $0x18] sm:$0xf]
                %2342 = vst [vmem:[%s2328 + $0x18] sm:$0xf] %v2341
                %v2343 = vld [vmem:[%s2327 + $0x1c] sm:$0xf]
                %2344 = vst [vmem:[%s2328 + $0x1c] sm:$0xf] %v2343
                %v2345 = vld [vmem:[%s2327 + $0x20] sm:$0xf]
                %2346 = vst [vmem:[%s2328 + $0x80] sm:$0xf] %v2345
                %v2347 = vld [vmem:[%s2327 + $0x24] sm:$0xf]
                %2348 = vst [vmem:[%s2328 + $0x84] sm:$0xf] %v2347
                %v2349 = vld [vmem:[%s2327 + $0x28] sm:$0xf]
                %2350 = vst [vmem:[%s2328 + $0x88] sm:$0xf] %v2349
                %v2351 = vld [vmem:[%s2327 + $0x2c] sm:$0xf]
                %2352 = vst [vmem:[%s2328 + $0x8c] sm:$0xf] %v2351
                %v2353 = vld [vmem:[%s2327 + $0x30] sm:$0xf]
                %2354 = vst [vmem:[%s2328 + $0x90] sm:$0xf] %v2353
                %v2355 = vld [vmem:[%s2327 + $0x34] sm:$0xf]
                %2356 = vst [vmem:[%s2328 + $0x94] sm:$0xf] %v2355
                %v2357 = vld [vmem:[%s2327 + $0x38] sm:$0xf]
                %2358 = vst [vmem:[%s2328 + $0x98] sm:$0xf] %v2357
                %v2359 = vld [vmem:[%s2327 + $0x3c] sm:$0xf]
                %2360 = vst [vmem:[%s2328 + $0x9c] sm:$0xf] %v2359
                %v2361 = vld [vmem:[%s2327 + $0x40] sm:$0xf]
                %2362 = vst [vmem:[%s2328 + $0x100] sm:$0xf] %v2361
                %v2363 = vld [vmem:[%s2327 + $0x44] sm:$0xf]
                %2364 = vst [vmem:[%s2328 + $0x104] sm:$0xf] %v2363
                %v2365 = vld [vmem:[%s2327 + $0x48] sm:$0xf]
                %2366 = vst [vmem:[%s2328 + $0x108] sm:$0xf] %v2365
                %v2367 = vld [vmem:[%s2327 + $0x4c] sm:$0xf]
                %2368 = vst [vmem:[%s2328 + $0x10c] sm:$0xf] %v2367
                %v2369 = vld [vmem:[%s2327 + $0x50] sm:$0xf]
                %2370 = vst [vmem:[%s2328 + $0x110] sm:$0xf] %v2369
                %v2371 = vld [vmem:[%s2327 + $0x54] sm:$0xf]
                %2372 = vst [vmem:[%s2328 + $0x114] sm:$0xf] %v2371
                %v2373 = vld [vmem:[%s2327 + $0x58] sm:$0xf]
                %2374 = vst [vmem:[%s2328 + $0x118] sm:$0xf] %v2373
                %v2375 = vld [vmem:[%s2327 + $0x5c] sm:$0xf]
                %2376 = vst [vmem:[%s2328 + $0x11c] sm:$0xf] %v2375
                %v2377 = vld [vmem:[%s2327 + $0x60] sm:$0xf]
                %2378 = vst [vmem:[%s2328 + $0x180] sm:$0xf] %v2377
                %v2379 = vld [vmem:[%s2327 + $0x64] sm:$0xf]
                %2380 = vst [vmem:[%s2328 + $0x184] sm:$0xf] %v2379
                %v2381 = vld [vmem:[%s2327 + $0x68] sm:$0xf]
                %2382 = vst [vmem:[%s2328 + $0x188] sm:$0xf] %v2381
                %v2383 = vld [vmem:[%s2327 + $0x6c] sm:$0xf]
                %2384 = vst [vmem:[%s2328 + $0x18c] sm:$0xf] %v2383
                %v2385 = vld [vmem:[%s2327 + $0x70] sm:$0xf]
                %2386 = vst [vmem:[%s2328 + $0x190] sm:$0xf] %v2385
                %v2387 = vld [vmem:[%s2327 + $0x74] sm:$0xf]
                %2388 = vst [vmem:[%s2328 + $0x194] sm:$0xf] %v2387
                %v2389 = vld [vmem:[%s2327 + $0x78] sm:$0xf]
                %2390 = vst [vmem:[%s2328 + $0x198] sm:$0xf] %v2389
                %v2391 = vld [vmem:[%s2327 + $0x7c] sm:$0xf]
                %2392 = vst [vmem:[%s2328 + $0x19c] sm:$0xf] %v2391
              $region126: #{tpu_custom_call.1} parent=120 // loop_footer
                %s2326 = sadd.s32 1, %s2322
              $region127: #{tpu_custom_call.1} parent=120 // loop_footer_branch
                %2321 = sbr.rel target = $region123
              $region128: #{tpu_custom_call.1} parent=120 // loop_exit
                _
            $region121: #{tpu_custom_call.1} parent=112 // pred_fallthru
              _
          $region113: #{tpu_custom_call.1} parent=108 // pred_fallthru
            _
          %2476 = vnop
        $region109: #{tpu_custom_call.1} parent=51 // pred_fallthru
          _
        // Predicated region
        $region147: #{tpu_custom_call.1} parent=51 // pred_check
          %p2477 = pneg %p328
        $region148: #{tpu_custom_call.1} parent=51 // pred_check_branch
          %2479 = sbr.rel (%p2477) target = $region150
        $region149: #{tpu_custom_call.1} parent=51 // pred_region
          %s2480 = smul.u32 8, %s33
          %s2481 = smul.addr %s32, 128
          %s2482 = sadd.s32 %s2480, %s2481
          %s2483 = smul.addr %s2482, 4
          %s2484 = scalar_lea.vmem %s10, %s2483
          // Predicated region
          $region151: #{tpu_custom_call.1} parent=149 // pred_check
            _
          $region152: #{tpu_custom_call.1} parent=149 // pred_check_branch
            %2486 = sbr.rel (0) target = $region154
          $region153: #{tpu_custom_call.1} parent=149 // pred_region
            // Predicated region
            $region155: #{tpu_custom_call.1} parent=153 // pred_check
              _
            $region156: #{tpu_custom_call.1} parent=153 // pred_check_branch
              %2488 = sbr.rel target = $region158
            $region157: #{tpu_custom_call.1} parent=153 // pred_region
              // Predicated region
              $region170: #{tpu_custom_call.1} parent=157 // pred_check
                _
              $region171: #{tpu_custom_call.1} parent=157 // pred_check_branch
                %2565 = sbr.rel (0) target = $region173
              $region172: #{tpu_custom_call.1} parent=157 // pred_region
                loop: start=0, step=1, limit=1
                $region174: #{tpu_custom_call.1} parent=172 // loop_pre_header
                  _
                $region175: #{tpu_custom_call.1} parent=172 // loop_header
                  %s2567 = sphi 0, %s2571
                  %p2568 = scmp.ge.s32.totalorder %s2567, 1
                  %s2572 = sphi %s2134, %s2134
                  %s2573 = sphi %s2484, %s2484
                $region176: #{tpu_custom_call.1} parent=172 // loop_header_branch
                  %2570 = sbr.rel (%p2568) target = $region180
                $region177: #{tpu_custom_call.1} parent=172 // loop_body
                  _
                $region178: #{tpu_custom_call.1} parent=172 // loop_footer
                  %s2571 = sadd.s32 1, %s2567
                $region179: #{tpu_custom_call.1} parent=172 // loop_footer_branch
                  %2566 = sbr.rel target = $region175
                $region180: #{tpu_custom_call.1} parent=172 // loop_exit
                  _
                loop: start=0, step=1, limit=1
                $region181: #{tpu_custom_call.1} parent=172 // loop_pre_header
                  _
                $region182: #{tpu_custom_call.1} parent=172 // loop_header
                  %s2576 = sphi 0, %s2580
                  %p2577 = scmp.ge.s32.totalorder %s2576, 1
                  %s2581 = sphi %s2134, %s2134
                  %s2582 = sphi %s2484, %s2484
                $region183: #{tpu_custom_call.1} parent=172 // loop_header_branch
                  %2579 = sbr.rel (%p2577) target = $region187
                $region184: #{tpu_custom_call.1} parent=172 // loop_body
                  %v2583 = vld [vmem:[%s2581] sm:$0xf]
                  %2584 = vst [vmem:[%s2582] sm:$0xf] %v2583
                  %v2585 = vld [vmem:[%s2581 + $0x4] sm:$0xf]
                  %2586 = vst [vmem:[%s2582 + $0x4] sm:$0xf] %v2585
                  %v2587 = vld [vmem:[%s2581 + $0x8] sm:$0xf]
                  %2588 = vst [vmem:[%s2582 + $0x8] sm:$0xf] %v2587
                  %v2589 = vld [vmem:[%s2581 + $0xc] sm:$0xf]
                  %2590 = vst [vmem:[%s2582 + $0xc] sm:$0xf] %v2589
                  %v2591 = vld [vmem:[%s2581 + $0x10] sm:$0xf]
                  %2592 = vst [vmem:[%s2582 + $0x10] sm:$0xf] %v2591
                  %v2593 = vld [vmem:[%s2581 + $0x14] sm:$0xf]
                  %2594 = vst [vmem:[%s2582 + $0x14] sm:$0xf] %v2593
                  %v2595 = vld [vmem:[%s2581 + $0x18] sm:$0xf]
                  %2596 = vst [vmem:[%s2582 + $0x18] sm:$0xf] %v2595
                  %v2597 = vld [vmem:[%s2581 + $0x1c] sm:$0xf]
                  %2598 = vst [vmem:[%s2582 + $0x1c] sm:$0xf] %v2597
                  %v2599 = vld [vmem:[%s2581 + $0x20] sm:$0xf]
                  %2600 = vst [vmem:[%s2582 + $0x80] sm:$0xf] %v2599
                  %v2601 = vld [vmem:[%s2581 + $0x24] sm:$0xf]
                  %2602 = vst [vmem:[%s2582 + $0x84] sm:$0xf] %v2601
                  %v2603 = vld [vmem:[%s2581 + $0x28] sm:$0xf]
                  %2604 = vst [vmem:[%s2582 + $0x88] sm:$0xf] %v2603
                  %v2605 = vld [vmem:[%s2581 + $0x2c] sm:$0xf]
                  %2606 = vst [vmem:[%s2582 + $0x8c] sm:$0xf] %v2605
                  %v2607 = vld [vmem:[%s2581 + $0x30] sm:$0xf]
                  %2608 = vst [vmem:[%s2582 + $0x90] sm:$0xf] %v2607
                  %v2609 = vld [vmem:[%s2581 + $0x34] sm:$0xf]
                  %2610 = vst [vmem:[%s2582 + $0x94] sm:$0xf] %v2609
                  %v2611 = vld [vmem:[%s2581 + $0x38] sm:$0xf]
                  %2612 = vst [vmem:[%s2582 + $0x98] sm:$0xf] %v2611
                  %v2613 = vld [vmem:[%s2581 + $0x3c] sm:$0xf]
                  %2614 = vst [vmem:[%s2582 + $0x9c] sm:$0xf] %v2613
                  %v2615 = vld [vmem:[%s2581 + $0x40] sm:$0xf]
                  %2616 = vst [vmem:[%s2582 + $0x100] sm:$0xf] %v2615
                  %v2617 = vld [vmem:[%s2581 + $0x44] sm:$0xf]
                  %2618 = vst [vmem:[%s2582 + $0x104] sm:$0xf] %v2617
                  %v2619 = vld [vmem:[%s2581 + $0x48] sm:$0xf]
                  %2620 = vst [vmem:[%s2582 + $0x108] sm:$0xf] %v2619
                  %v2621 = vld [vmem:[%s2581 + $0x4c] sm:$0xf]
                  %2622 = vst [vmem:[%s2582 + $0x10c] sm:$0xf] %v2621
                  %v2623 = vld [vmem:[%s2581 + $0x50] sm:$0xf]
                  %2624 = vst [vmem:[%s2582 + $0x110] sm:$0xf] %v2623
                  %v2625 = vld [vmem:[%s2581 + $0x54] sm:$0xf]
                  %2626 = vst [vmem:[%s2582 + $0x114] sm:$0xf] %v2625
                  %v2627 = vld [vmem:[%s2581 + $0x58] sm:$0xf]
                  %2628 = vst [vmem:[%s2582 + $0x118] sm:$0xf] %v2627
                  %v2629 = vld [vmem:[%s2581 + $0x5c] sm:$0xf]
                  %2630 = vst [vmem:[%s2582 + $0x11c] sm:$0xf] %v2629
                  %v2631 = vld [vmem:[%s2581 + $0x60] sm:$0xf]
                  %2632 = vst [vmem:[%s2582 + $0x180] sm:$0xf] %v2631
                  %v2633 = vld [vmem:[%s2581 + $0x64] sm:$0xf]
                  %2634 = vst [vmem:[%s2582 + $0x184] sm:$0xf] %v2633
                  %v2635 = vld [vmem:[%s2581 + $0x68] sm:$0xf]
                  %2636 = vst [vmem:[%s2582 + $0x188] sm:$0xf] %v2635
                  %v2637 = vld [vmem:[%s2581 + $0x6c] sm:$0xf]
                  %2638 = vst [vmem:[%s2582 + $0x18c] sm:$0xf] %v2637
                  %v2639 = vld [vmem:[%s2581 + $0x70] sm:$0xf]
                  %2640 = vst [vmem:[%s2582 + $0x190] sm:$0xf] %v2639
                  %v2641 = vld [vmem:[%s2581 + $0x74] sm:$0xf]
                  %2642 = vst [vmem:[%s2582 + $0x194] sm:$0xf] %v2641
                  %v2643 = vld [vmem:[%s2581 + $0x78] sm:$0xf]
                  %2644 = vst [vmem:[%s2582 + $0x198] sm:$0xf] %v2643
                  %v2645 = vld [vmem:[%s2581 + $0x7c] sm:$0xf]
                  %2646 = vst [vmem:[%s2582 + $0x19c] sm:$0xf] %v2645
                $region185: #{tpu_custom_call.1} parent=172 // loop_footer
                  %s2580 = sadd.s32 1, %s2576
                $region186: #{tpu_custom_call.1} parent=172 // loop_footer_branch
                  %2575 = sbr.rel target = $region182
                $region187: #{tpu_custom_call.1} parent=172 // loop_exit
                  _
              $region173: #{tpu_custom_call.1} parent=157 // pred_fallthru
                _
            $region158: #{tpu_custom_call.1} parent=153 // pred_fallthru
              _
            // Predicated region
            $region159: #{tpu_custom_call.1} parent=153 // pred_check
              _
            $region160: #{tpu_custom_call.1} parent=153 // pred_check_branch
              %2490 = sbr.rel (0) target = $region162
            $region161: #{tpu_custom_call.1} parent=153 // pred_region
              loop: start=0, step=1, limit=1
              $region163: #{tpu_custom_call.1} parent=161 // loop_pre_header
                _
              $region164: #{tpu_custom_call.1} parent=161 // loop_header
                %s2493 = sphi 0, %s2497
                %p2494 = scmp.ge.s32.totalorder %s2493, 1
                %s2498 = sphi %s2134, %s2134
                %s2499 = sphi %s2484, %s2484
              $region165: #{tpu_custom_call.1} parent=161 // loop_header_branch
                %2496 = sbr.rel (%p2494) target = $region169
              $region166: #{tpu_custom_call.1} parent=161 // loop_body
                %v2500 = vld [vmem:[%s2498] sm:$0xf]
                %2501 = vst [vmem:[%s2499] sm:$0xf] %v2500
                %v2502 = vld [vmem:[%s2498 + $0x4] sm:$0xf]
                %2503 = vst [vmem:[%s2499 + $0x4] sm:$0xf] %v2502
                %v2504 = vld [vmem:[%s2498 + $0x8] sm:$0xf]
                %2505 = vst [vmem:[%s2499 + $0x8] sm:$0xf] %v2504
                %v2506 = vld [vmem:[%s2498 + $0xc] sm:$0xf]
                %2507 = vst [vmem:[%s2499 + $0xc] sm:$0xf] %v2506
                %v2508 = vld [vmem:[%s2498 + $0x10] sm:$0xf]
                %2509 = vst [vmem:[%s2499 + $0x10] sm:$0xf] %v2508
                %v2510 = vld [vmem:[%s2498 + $0x14] sm:$0xf]
                %2511 = vst [vmem:[%s2499 + $0x14] sm:$0xf] %v2510
                %v2512 = vld [vmem:[%s2498 + $0x18] sm:$0xf]
                %2513 = vst [vmem:[%s2499 + $0x18] sm:$0xf] %v2512
                %v2514 = vld [vmem:[%s2498 + $0x1c] sm:$0xf]
                %2515 = vst [vmem:[%s2499 + $0x1c] sm:$0xf] %v2514
                %v2516 = vld [vmem:[%s2498 + $0x20] sm:$0xf]
                %2517 = vst [vmem:[%s2499 + $0x80] sm:$0xf] %v2516
                %v2518 = vld [vmem:[%s2498 + $0x24] sm:$0xf]
                %2519 = vst [vmem:[%s2499 + $0x84] sm:$0xf] %v2518
                %v2520 = vld [vmem:[%s2498 + $0x28] sm:$0xf]
                %2521 = vst [vmem:[%s2499 + $0x88] sm:$0xf] %v2520
                %v2522 = vld [vmem:[%s2498 + $0x2c] sm:$0xf]
                %2523 = vst [vmem:[%s2499 + $0x8c] sm:$0xf] %v2522
                %v2524 = vld [vmem:[%s2498 + $0x30] sm:$0xf]
                %2525 = vst [vmem:[%s2499 + $0x90] sm:$0xf] %v2524
                %v2526 = vld [vmem:[%s2498 + $0x34] sm:$0xf]
                %2527 = vst [vmem:[%s2499 + $0x94] sm:$0xf] %v2526
                %v2528 = vld [vmem:[%s2498 + $0x38] sm:$0xf]
                %2529 = vst [vmem:[%s2499 + $0x98] sm:$0xf] %v2528
                %v2530 = vld [vmem:[%s2498 + $0x3c] sm:$0xf]
                %2531 = vst [vmem:[%s2499 + $0x9c] sm:$0xf] %v2530
                %v2532 = vld [vmem:[%s2498 + $0x40] sm:$0xf]
                %2533 = vst [vmem:[%s2499 + $0x100] sm:$0xf] %v2532
                %v2534 = vld [vmem:[%s2498 + $0x44] sm:$0xf]
                %2535 = vst [vmem:[%s2499 + $0x104] sm:$0xf] %v2534
                %v2536 = vld [vmem:[%s2498 + $0x48] sm:$0xf]
                %2537 = vst [vmem:[%s2499 + $0x108] sm:$0xf] %v2536
                %v2538 = vld [vmem:[%s2498 + $0x4c] sm:$0xf]
                %2539 = vst [vmem:[%s2499 + $0x10c] sm:$0xf] %v2538
                %v2540 = vld [vmem:[%s2498 + $0x50] sm:$0xf]
                %2541 = vst [vmem:[%s2499 + $0x110] sm:$0xf] %v2540
                %v2542 = vld [vmem:[%s2498 + $0x54] sm:$0xf]
                %2543 = vst [vmem:[%s2499 + $0x114] sm:$0xf] %v2542
                %v2544 = vld [vmem:[%s2498 + $0x58] sm:$0xf]
                %2545 = vst [vmem:[%s2499 + $0x118] sm:$0xf] %v2544
                %v2546 = vld [vmem:[%s2498 + $0x5c] sm:$0xf]
                %2547 = vst [vmem:[%s2499 + $0x11c] sm:$0xf] %v2546
                %v2548 = vld [vmem:[%s2498 + $0x60] sm:$0xf]
                %2549 = vst [vmem:[%s2499 + $0x180] sm:$0xf] %v2548
                %v2550 = vld [vmem:[%s2498 + $0x64] sm:$0xf]
                %2551 = vst [vmem:[%s2499 + $0x184] sm:$0xf] %v2550
                %v2552 = vld [vmem:[%s2498 + $0x68] sm:$0xf]
                %2553 = vst [vmem:[%s2499 + $0x188] sm:$0xf] %v2552
                %v2554 = vld [vmem:[%s2498 + $0x6c] sm:$0xf]
                %2555 = vst [vmem:[%s2499 + $0x18c] sm:$0xf] %v2554
                %v2556 = vld [vmem:[%s2498 + $0x70] sm:$0xf]
                %2557 = vst [vmem:[%s2499 + $0x190] sm:$0xf] %v2556
                %v2558 = vld [vmem:[%s2498 + $0x74] sm:$0xf]
                %2559 = vst [vmem:[%s2499 + $0x194] sm:$0xf] %v2558
                %v2560 = vld [vmem:[%s2498 + $0x78] sm:$0xf]
                %2561 = vst [vmem:[%s2499 + $0x198] sm:$0xf] %v2560
                %v2562 = vld [vmem:[%s2498 + $0x7c] sm:$0xf]
                %2563 = vst [vmem:[%s2499 + $0x19c] sm:$0xf] %v2562
              $region167: #{tpu_custom_call.1} parent=161 // loop_footer
                %s2497 = sadd.s32 1, %s2493
              $region168: #{tpu_custom_call.1} parent=161 // loop_footer_branch
                %2492 = sbr.rel target = $region164
              $region169: #{tpu_custom_call.1} parent=161 // loop_exit
                _
            $region162: #{tpu_custom_call.1} parent=153 // pred_fallthru
              _
          $region154: #{tpu_custom_call.1} parent=149 // pred_fallthru
            _
          %2647 = vnop
        $region150: #{tpu_custom_call.1} parent=51 // pred_fallthru
          _
      $region52: #{tpu_custom_call.1} parent=5 // pred_fallthru
        _
      %p2648 = scmp.le.s32.totalorder 2, %s23
      // Predicated region
      $region188: #{tpu_custom_call.1} parent=5 // pred_check
        %p2649 = pneg %p2648
      $region189: #{tpu_custom_call.1} parent=5 // pred_check_branch
        %2651 = sbr.rel (%p2649) target = $region191
      $region190: #{tpu_custom_call.1} parent=5 // pred_region
        %s2652 = ssub.s32 %s23, 2
        // Predicated region
        $region192: #{tpu_custom_call.1} parent=190 // pred_check
          %p2653 = pneg %p278
        $region193: #{tpu_custom_call.1} parent=190 // pred_check_branch
          %2655 = sbr.rel (%p2653) target = $region195
        $region194: #{tpu_custom_call.1} parent=190 // pred_region
          %s2656 = sand.u32 %s263, 1
          %s2657 = sand.u32 %s263, 1
          %s2658 = smul.addr %s2657, 128
          %s2659 = scalar_lea.vmem [#allocation7], %s2658
        $region195: #{tpu_custom_call.1} parent=190 // pred_fallthru
          _
        // Predicated region
        $region196: #{tpu_custom_call.1} parent=190 // pred_check
          %p2660 = pneg %p306
        $region197: #{tpu_custom_call.1} parent=190 // pred_check_branch
          %2662 = sbr.rel (%p2660) target = $region199
        $region198: #{tpu_custom_call.1} parent=190 // pred_region
          %s2663 = sand.u32 %s291, 1
          %s2664 = sand.u32 %s291, 1
          %s2665 = smul.addr %s2664, 128
          %s2666 = scalar_lea.vmem [#allocation8], %s2665
        $region199: #{tpu_custom_call.1} parent=190 // pred_fallthru
          _
        // Predicated region
        $region200: #{tpu_custom_call.1} parent=190 // pred_check
          %p2667 = pneg %p334
        $region201: #{tpu_custom_call.1} parent=190 // pred_check_branch
          %2669 = sbr.rel (%p2667) target = $region203
        $region202: #{tpu_custom_call.1} parent=190 // pred_region
          %s2670 = sand.u32 %s319, 1
          %s2671 = sand.u32 %s319, 1
          %s2672 = smul.addr %s2671, 128
          %s2673 = scalar_lea.vmem [#allocation9], %s2672
        $region203: #{tpu_custom_call.1} parent=190 // pred_fallthru
          _
      $region191: #{tpu_custom_call.1} parent=5 // pred_fallthru
        _
    $region6: #{tpu_custom_call.1} parent=1 // loop_footer
      %s27 = sadd.s32 1, %s23
    $region7: #{tpu_custom_call.1} parent=1 // loop_footer_branch
      %22 = sbr.rel target = $region3
    $region8: #{tpu_custom_call.1} parent=1 // loop_exit
      _
    %2674 = vsyncpa [#allocation3], 1
    %s2675 = scalar_lea.sflag [#allocation3], 1
    %2676 = vsyncpa %s2675, 1
    %2677 = vsyncpa [#allocation5], 1
    %s2678 = scalar_lea.sflag [#allocation5], 1
    %2679 = vsyncpa %s2678, 1

</llo_original>
